<compile_context>
chip_gen: v6e
topology: v6e:2x2x1
jax: 0.10.0
libtpu: 0.0.40
codegen_flags: <defaults>
</compile_context>

<pallas_src>
import jax
import jax.numpy as jnp
import numpy as np
from jax.experimental import pallas as pl
from jax.experimental.pallas import tpu as pltpu

BN_EPS = 1e-5
NUM_CLASSES = 10
PAD_CLASSES = 128          # lane-dense classifier width
NEG_BIAS = -1e30           # padded-class bias -> exp() == 0; softmax over real classes unchanged
ROW_ALIGN = 8              # sublane alignment for f32 tiles
K_IN = 300                 # real input features
K_PAD = 384                # 300 padded up to a multiple of 128 lanes
TB_MAX = 1024              # batch-tile cap
VMEM_LIMIT_BYTES = 48 * 1024 * 1024   # ~15 MB working set at TB=1024; safe on v5e/v6e/v7x


def _round_up(n, m):
    return ((n + m - 1) // m) * m


def dnn_kernel(x_ref, w1_ref, b1_ref, w2_ref, b2_ref, w3_ref, b3_ref, out_ref):
    # x_ref: (TB, 384) batch tile (K zero-padded); weights are full arrays in VMEM.
    x = x_ref[...]

    # Linear(300,1024) with BN0/BN1 folded into W1/b1, then ReLU.
    h = jnp.dot(x, w1_ref[...], preferred_element_type=jnp.float32) + b1_ref[...]
    h = jnp.maximum(h, 0.0)

    # Linear(1024,256) with BN2 folded into W2/b2, then ReLU.
    h = jnp.dot(h, w2_ref[...], preferred_element_type=jnp.float32) + b2_ref[...]
    h = jnp.maximum(h, 0.0)

    # Linear(256, 128-padded classifier); padded classes carry a -1e30 bias.
    logits = jnp.dot(h, w3_ref[...], preferred_element_type=jnp.float32) + b3_ref[...]

    # softmax over the lane-dense, 128-wide class axis.
    m = jnp.max(logits, axis=1, keepdims=True)
    e = jnp.exp(logits - m)
    denom = jnp.sum(e, axis=1, keepdims=True)
    # TODO(synk): pl.reciprocal(approx=True) moves the divide to the EUP slot but costs
    # a few ULPs; kept exact to hold the 1e-5 test tolerance.
    out_ref[...] = e * pl.reciprocal(denom, approx=False)


def init_params(key):
    """Parameters matching the PyTorch module's shapes (eval-mode BN stats)."""
    def linear(key, fan_in, fan_out):
        kw, kb = jax.random.split(key)
        bound = 1.0 / np.sqrt(fan_in)
        # PyTorch stores (out, in); we keep (in, out) so the kernel does x @ W.
        w = jax.random.uniform(kw, (fan_in, fan_out), jnp.float32, -bound, bound)
        b = jax.random.uniform(kb, (1, fan_out), jnp.float32, -bound, bound)
        return w, b

    def bn_scale_shift(key, num_features):
        # Non-trivial gamma/beta/running stats so the host-side fold is exercised.
        kg, kb, km, kv = jax.random.split(key, 4)
        gamma = jax.random.uniform(kg, (1, num_features), jnp.float32, 0.5, 1.5)
        beta = 0.1 * jax.random.normal(kb, (1, num_features), jnp.float32)
        mean = 0.1 * jax.random.normal(km, (1, num_features), jnp.float32)
        var = jax.random.uniform(kv, (1, num_features), jnp.float32, 0.5, 1.5)
        scale = gamma * jax.lax.rsqrt(var + BN_EPS)
        shift = beta - mean * scale
        return scale, shift

    k1, k2, k3, k4, k5, k6 = jax.random.split(key, 6)
    w1, b1 = linear(k1, K_IN, 1024)
    w2, b2 = linear(k2, 1024, 256)
    w3, b3 = linear(k3, 256, NUM_CLASSES)
    s0, t0 = bn_scale_shift(k4, K_IN)
    s1, t1 = bn_scale_shift(k5, 1024)
    s2, t2 = bn_scale_shift(k6, 256)
    return (s0, t0, w1, b1, s1, t1, w2, b2, s2, t2, w3, b3)


def fold_params(params):
    """Fold BN affines + biases into the linear weights; pad K to 384 and classes to 128."""
    s0, t0, w1, b1, s1, t1, w2, b2, s2, t2, w3, b3 = params

    # x*s0+t0 -> @W1+b1 -> *s1+t1   ==   x @ W1' + b1'
    w1f = (s0.reshape(-1, 1) * w1) * s1
    b1f = (t0 @ w1 + b1) * s1 + t1
    # Zero rows for the padded input features (x columns 300..383 are zero-padded too).
    w1f = jnp.pad(w1f, ((0, K_PAD - K_IN), (0, 0)))

    # h @ W2 + b2 -> *s2+t2   ==   h @ W2' + b2'
    w2f = w2 * s2
    b2f = b2 * s2 + t2

    # Lane-dense classifier: zero weight columns, -1e30 bias for padded classes.
    pad = PAD_CLASSES - NUM_CLASSES
    w3p = jnp.pad(w3, ((0, 0), (0, pad)))
    b3p = jnp.pad(b3, ((0, 0), (0, pad)), constant_values=NEG_BIAS)

    return (jnp.asarray(w1f), jnp.asarray(b1f),
            jnp.asarray(w2f), jnp.asarray(b2f),
            jnp.asarray(w3p), jnp.asarray(b3p))


def _batch_tiling(B, tb_max):
    """Pick a batch tile: 8-row aligned, <= tb_max, splitting B nearly evenly into an
    even number (>=2 when B>8) of tiles so megacore 'parallel' sharding has work."""
    n_tiles = max(pl.cdiv(B, tb_max), 1)
    if B > ROW_ALIGN:
        n_tiles = max(n_tiles, 2)
        n_tiles = 2 * pl.cdiv(n_tiles, 2)        # prefer an even step count for 2 TCs
    TB = min(_round_up(pl.cdiv(B, n_tiles), ROW_ALIGN), tb_max)
    Bp = _round_up(B, TB)
    return TB, Bp


def dnn_forward(x, folded, *, tb_max=TB_MAX):
    w1, b1, w2, b2, w3, b3 = folded
    B, K = x.shape
    assert K == K_IN

    TB, Bp = _batch_tiling(B, tb_max)
    # Pad batch rows to the tile grid and the contraction 300 -> 384 lanes.
    x = jnp.pad(x, ((0, Bp - B), (0, K_PAD - K)))
    grid = (pl.cdiv(Bp, TB),)

    def run(single_buffer_weights):
        def wspec(shape):
            if single_buffer_weights:
                # Constant block index -> stays VMEM resident, no re-DMA across steps;
                # Buffered(1) drops the pointless second buffer (~2.7 MB VMEM saved).
                return pl.BlockSpec(shape, lambda i: (0, 0),
                                    pipeline_mode=pl.Buffered(1))
            return pl.BlockSpec(shape, lambda i: (0, 0))

        return pl.pallas_call(
            dnn_kernel,
            out_shape=jax.ShapeDtypeStruct((Bp, PAD_CLASSES), jnp.float32),
            grid_spec=pltpu.PrefetchScalarGridSpec(
                num_scalar_prefetch=0,
                grid=grid,
                in_specs=[
                    pl.BlockSpec((TB, K_PAD), lambda i: (i, 0)),   # x: streamed per tile
                    wspec(w1.shape), wspec(b1.shape),
                    wspec(w2.shape), wspec(b2.shape),
                    wspec(w3.shape), wspec(b3.shape),
                ],
                out_specs=pl.BlockSpec((TB, PAD_CLASSES), lambda i: (i, 0)),
            ),
            compiler_params=pltpu.CompilerParams(
                dimension_semantics=("parallel",),       # batch tiles across v7x's 2 TCs
                vmem_limit_bytes=VMEM_LIMIT_BYTES,
            ),
        )(x, w1, b1, w2, b2, w3, b3)

    try:
        out = run(single_buffer_weights=True)
    except Exception:
        # pl.Buffered(1) not accepted by this jax build: fall back to default
        # double-buffered weight blocks (slightly more VMEM, identical result).
        out = run(single_buffer_weights=False)

    return out[:B, :NUM_CLASSES]


def dnn_reference(x, params):
    """Pure-JAX reference of the unfused eval-mode forward."""
    s0, t0, w1, b1, s1, t1, w2, b2, s2, t2, w3, b3 = params
    h = x * s0 + t0
    h = (h @ w1 + b1) * s1 + t1
    h = jnp.maximum(h, 0.0)
    h = (h @ w2 + b2) * s2 + t2
    h = jnp.maximum(h, 0.0)
    logits = h @ w3 + b3
    return jax.nn.softmax(logits, axis=1)


if __name__ == "__main__":
    key = jax.random.PRNGKey(0)
    kx, kp = jax.random.split(key)

    params = init_params(kp)
    folded = fold_params(params)

    # B=8 exercises the single-tile path; B=40 exercises the even 2-tile split
    # (grid=(2,), batch padding) that feeds both TensorCores on v7x.
    for B in (8, 40):
        x = jax.random.normal(jax.random.fold_in(kx, B), (B, K_IN), jnp.float32)
        out = jax.block_until_ready(dnn_forward(x, folded))
        ref = dnn_reference(x, params)
        np.testing.assert_allclose(np.asarray(out), np.asarray(ref), rtol=1e-5, atol=1e-5)
        np.testing.assert_allclose(np.asarray(out).sum(axis=1), np.ones(B),
                                   rtol=1e-5, atol=1e-5)

    print("KERNEL_OK")
</pallas_src>

<mosaic_0001>
module attributes {stable_mosaic.version = 11 : i64} {
  func.func @dnn_kernel(%arg0: i32, %arg1: memref<8x384xf32, #tpu.memory_space<vmem>>, %arg2: memref<384x1024xf32, #tpu.memory_space<vmem>>, %arg3: memref<1x1024xf32, #tpu.memory_space<vmem>>, %arg4: memref<1024x256xf32, #tpu.memory_space<vmem>>, %arg5: memref<1x256xf32, #tpu.memory_space<vmem>>, %arg6: memref<256x128xf32, #tpu.memory_space<vmem>>, %arg7: memref<1x128xf32, #tpu.memory_space<vmem>>, %arg8: memref<8x128xf32, #tpu.memory_space<vmem>>) attributes {dimension_semantics = [#tpu.dimension_semantics<parallel>], iteration_bounds = array<i64: 1>, scalar_prefetch = 0 : i64, scratch_operands = 0 : i64, tpu.core_type = #tpu.core_type<tc>, window_params = [{transform_indices = @transform_0, window_bounds = array<i64: 8, 384>}, {pipeline_mode = #tpu.pipeline_mode<synchronous>, transform_indices = @transform_1, window_bounds = array<i64: 384, 1024>}, {pipeline_mode = #tpu.pipeline_mode<synchronous>, transform_indices = @transform_2, window_bounds = array<i64: 1, 1024>}, {pipeline_mode = #tpu.pipeline_mode<synchronous>, transform_indices = @transform_3, window_bounds = array<i64: 1024, 256>}, {pipeline_mode = #tpu.pipeline_mode<synchronous>, transform_indices = @transform_4, window_bounds = array<i64: 1, 256>}, {pipeline_mode = #tpu.pipeline_mode<synchronous>, transform_indices = @transform_5, window_bounds = array<i64: 256, 128>}, {pipeline_mode = #tpu.pipeline_mode<synchronous>, transform_indices = @transform_6, window_bounds = array<i64: 1, 128>}, {transform_indices = @transform_7, window_bounds = array<i64: 8, 128>}]} {
    %c0 = arith.constant 0 : index
    %c0_0 = arith.constant 0 : index
    %0 = vector.load %arg1[%c0, %c0_0] : memref<8x384xf32, #tpu.memory_space<vmem>>, vector<8x384xf32>
    %c0_1 = arith.constant 0 : index
    %c0_2 = arith.constant 0 : index
    %1 = vector.load %arg2[%c0_1, %c0_2] : memref<384x1024xf32, #tpu.memory_space<vmem>>, vector<384x1024xf32>
    %cst = arith.constant dense<0.000000e+00> : vector<8x1024xf32>
    %2 = tpu.matmul %0, %1, %cst {dimension_numbers = #tpu.dot_dimension_numbers<[1], [0], [0], [1], [0, 0, 1, 1], [], []>} : vector<8x384xf32>, vector<384x1024xf32>, vector<8x1024xf32> -> vector<8x1024xf32>
    %c0_3 = arith.constant 0 : index
    %c0_4 = arith.constant 0 : index
    %3 = vector.load %arg3[%c0_3, %c0_4] : memref<1x1024xf32, #tpu.memory_space<vmem>>, vector<1x1024xf32>
    %4 = vector.broadcast %3 : vector<1x1024xf32> to vector<8x1024xf32>
    %5 = arith.addf %2, %4 : vector<8x1024xf32>
    %cst_5 = arith.constant 0.000000e+00 : f32
    %6 = vector.broadcast %cst_5 : f32 to vector<8x1024xf32>
    %7 = arith.maximumf %5, %6 : vector<8x1024xf32>
    %c0_6 = arith.constant 0 : index
    %c0_7 = arith.constant 0 : index
    %8 = vector.load %arg4[%c0_6, %c0_7] : memref<1024x256xf32, #tpu.memory_space<vmem>>, vector<1024x256xf32>
    %cst_8 = arith.constant dense<0.000000e+00> : vector<8x256xf32>
    %9 = tpu.matmul %7, %8, %cst_8 {dimension_numbers = #tpu.dot_dimension_numbers<[1], [0], [0], [1], [0, 0, 1, 1], [], []>} : vector<8x1024xf32>, vector<1024x256xf32>, vector<8x256xf32> -> vector<8x256xf32>
    %c0_9 = arith.constant 0 : index
    %c0_10 = arith.constant 0 : index
    %10 = vector.load %arg5[%c0_9, %c0_10] : memref<1x256xf32, #tpu.memory_space<vmem>>, vector<1x256xf32>
    %11 = vector.broadcast %10 : vector<1x256xf32> to vector<8x256xf32>
    %12 = arith.addf %9, %11 : vector<8x256xf32>
    %cst_11 = arith.constant 0.000000e+00 : f32
    %13 = vector.broadcast %cst_11 : f32 to vector<8x256xf32>
    %14 = arith.maximumf %12, %13 : vector<8x256xf32>
    %c0_12 = arith.constant 0 : index
    %c0_13 = arith.constant 0 : index
    %15 = vector.load %arg6[%c0_12, %c0_13] : memref<256x128xf32, #tpu.memory_space<vmem>>, vector<256x128xf32>
    %cst_14 = arith.constant dense<0.000000e+00> : vector<8x128xf32>
    %16 = tpu.matmul %14, %15, %cst_14 {dimension_numbers = #tpu.dot_dimension_numbers<[1], [0], [0], [1], [0, 0, 1, 1], [], []>} : vector<8x256xf32>, vector<256x128xf32>, vector<8x128xf32> -> vector<8x128xf32>
    %c0_15 = arith.constant 0 : index
    %c0_16 = arith.constant 0 : index
    %17 = vector.load %arg7[%c0_15, %c0_16] : memref<1x128xf32, #tpu.memory_space<vmem>>, vector<1x128xf32>
    %18 = vector.broadcast %17 : vector<1x128xf32> to vector<8x128xf32>
    %19 = arith.addf %16, %18 : vector<8x128xf32>
    %cst_17 = arith.constant dense<0xFF800000> : vector<8xf32>
    %20 = vector.multi_reduction <maximumf>, %19, %cst_17 [1] : vector<8x128xf32> to vector<8xf32>
    %21 = vector.shape_cast %20 : vector<8xf32> to vector<8x1xf32>
    %22 = vector.broadcast %21 : vector<8x1xf32> to vector<8x128xf32>
    %23 = arith.subf %19, %22 : vector<8x128xf32>
    %24 = math.exp %23 : vector<8x128xf32>
    %cst_18 = arith.constant dense<0.000000e+00> : vector<8xf32>
    %25 = vector.multi_reduction <add>, %24, %cst_18 [1] : vector<8x128xf32> to vector<8xf32>
    %26 = vector.shape_cast %25 : vector<8xf32> to vector<8x1xf32>
    %27 = tpu.reciprocal %26 : vector<8x1xf32> -> vector<8x1xf32>
    %28 = vector.broadcast %27 : vector<8x1xf32> to vector<8x128xf32>
    %29 = arith.mulf %24, %28 : vector<8x128xf32>
    %c0_19 = arith.constant 0 : index
    %c0_20 = arith.constant 0 : index
    %30 = vector.load %arg8[%c0_19, %c0_20] : memref<8x128xf32, #tpu.memory_space<vmem>>, vector<8x128xf32>
    tpu.vector_store %arg8[%c0_19, %c0_20], %29 {strides = array<i32>} : memref<8x128xf32, #tpu.memory_space<vmem>>, vector<8x128xf32>,
    return
  }
  func.func @transform_0(%arg0: i32) -> (i32, i32) {
    %c0_i32 = arith.constant 0 : i32
    %c0_i32_0 = arith.constant 0 : i32
    return %arg0, %c0_i32 : i32, i32
  }
  func.func @transform_1(%arg0: i32) -> (i32, i32) {
    %c0_i32 = arith.constant 0 : i32
    %c0_i32_0 = arith.constant 0 : i32
    %c0_i32_1 = arith.constant 0 : i32
    return %c0_i32, %c0_i32_0 : i32, i32
  }
  func.func @transform_2(%arg0: i32) -> (i32, i32) {
    %c0_i32 = arith.constant 0 : i32
    %c0_i32_0 = arith.constant 0 : i32
    %c0_i32_1 = arith.constant 0 : i32
    return %c0_i32, %c0_i32_0 : i32, i32
  }
  func.func @transform_3(%arg0: i32) -> (i32, i32) {
    %c0_i32 = arith.constant 0 : i32
    %c0_i32_0 = arith.constant 0 : i32
    %c0_i32_1 = arith.constant 0 : i32
    return %c0_i32, %c0_i32_0 : i32, i32
  }
  func.func @transform_4(%arg0: i32) -> (i32, i32) {
    %c0_i32 = arith.constant 0 : i32
    %c0_i32_0 = arith.constant 0 : i32
    %c0_i32_1 = arith.constant 0 : i32
    return %c0_i32, %c0_i32_0 : i32, i32
  }
  func.func @transform_5(%arg0: i32) -> (i32, i32) {
    %c0_i32 = arith.constant 0 : i32
    %c0_i32_0 = arith.constant 0 : i32
    %c0_i32_1 = arith.constant 0 : i32
    return %c0_i32, %c0_i32_0 : i32, i32
  }
  func.func @transform_6(%arg0: i32) -> (i32, i32) {
    %c0_i32 = arith.constant 0 : i32
    %c0_i32_0 = arith.constant 0 : i32
    %c0_i32_1 = arith.constant 0 : i32
    return %c0_i32, %c0_i32_0 : i32, i32
  }
  func.func @transform_7(%arg0: i32) -> (i32, i32) {
    %c0_i32 = arith.constant 0 : i32
    %c0_i32_0 = arith.constant 0 : i32
    return %arg0, %c0_i32 : i32, i32
  }
}

module attributes {stable_mosaic.version = 11 : i64} {
  func.func @dnn_kernel(%arg0: i32, %arg1: memref<8x384xf32, #tpu.memory_space<vmem>>, %arg2: memref<384x1024xf32, #tpu.memory_space<vmem>>, %arg3: memref<1x1024xf32, #tpu.memory_space<vmem>>, %arg4: memref<1024x256xf32, #tpu.memory_space<vmem>>, %arg5: memref<1x256xf32, #tpu.memory_space<vmem>>, %arg6: memref<256x128xf32, #tpu.memory_space<vmem>>, %arg7: memref<1x128xf32, #tpu.memory_space<vmem>>, %arg8: memref<8x128xf32, #tpu.memory_space<vmem>>) attributes {dimension_semantics = [#tpu.dimension_semantics<parallel>], iteration_bounds = array<i64: 1>, scalar_prefetch = 0 : i64, scratch_operands = 0 : i64, tpu.core_type = #tpu.core_type<tc>, window_params = [{transform_indices = @transform_0, window_bounds = array<i64: 8, 384>}, {pipeline_mode = #tpu.pipeline_mode<synchronous>, transform_indices = @transform_1, window_bounds = array<i64: 384, 1024>}, {pipeline_mode = #tpu.pipeline_mode<synchronous>, transform_indices = @transform_2, window_bounds = array<i64: 1, 1024>}, {pipeline_mode = #tpu.pipeline_mode<synchronous>, transform_indices = @transform_3, window_bounds = array<i64: 1024, 256>}, {pipeline_mode = #tpu.pipeline_mode<synchronous>, transform_indices = @transform_4, window_bounds = array<i64: 1, 256>}, {pipeline_mode = #tpu.pipeline_mode<synchronous>, transform_indices = @transform_5, window_bounds = array<i64: 256, 128>}, {pipeline_mode = #tpu.pipeline_mode<synchronous>, transform_indices = @transform_6, window_bounds = array<i64: 1, 128>}, {transform_indices = @transform_7, window_bounds = array<i64: 8, 128>}]} {
    %c0 = arith.constant 0 : index
    %c0_0 = arith.constant 0 : index
    %0 = vector.load %arg1[%c0, %c0_0] : memref<8x384xf32, #tpu.memory_space<vmem>>, vector<8x384xf32>
    %c0_1 = arith.constant 0 : index
    %c0_2 = arith.constant 0 : index
    %1 = vector.load %arg2[%c0_1, %c0_2] : memref<384x1024xf32, #tpu.memory_space<vmem>>, vector<384x1024xf32>
    %cst = arith.constant dense<0.000000e+00> : vector<8x1024xf32>
    %2 = tpu.matmul %0, %1, %cst {dimension_numbers = #tpu.dot_dimension_numbers<[1], [0], [0], [1], [0, 0, 1, 1], [], []>} : vector<8x384xf32>, vector<384x1024xf32>, vector<8x1024xf32> -> vector<8x1024xf32>
    %c0_3 = arith.constant 0 : index
    %c0_4 = arith.constant 0 : index
    %3 = vector.load %arg3[%c0_3, %c0_4] : memref<1x1024xf32, #tpu.memory_space<vmem>>, vector<1x1024xf32>
    %4 = vector.broadcast %3 : vector<1x1024xf32> to vector<8x1024xf32>
    %5 = arith.addf %2, %4 : vector<8x1024xf32>
    %cst_5 = arith.constant 0.000000e+00 : f32
    %6 = vector.broadcast %cst_5 : f32 to vector<8x1024xf32>
    %7 = arith.maximumf %5, %6 : vector<8x1024xf32>
    %c0_6 = arith.constant 0 : index
    %c0_7 = arith.constant 0 : index
    %8 = vector.load %arg4[%c0_6, %c0_7] : memref<1024x256xf32, #tpu.memory_space<vmem>>, vector<1024x256xf32>
    %cst_8 = arith.constant dense<0.000000e+00> : vector<8x256xf32>
    %9 = tpu.matmul %7, %8, %cst_8 {dimension_numbers = #tpu.dot_dimension_numbers<[1], [0], [0], [1], [0, 0, 1, 1], [], []>} : vector<8x1024xf32>, vector<1024x256xf32>, vector<8x256xf32> -> vector<8x256xf32>
    %c0_9 = arith.constant 0 : index
    %c0_10 = arith.constant 0 : index
    %10 = vector.load %arg5[%c0_9, %c0_10] : memref<1x256xf32, #tpu.memory_space<vmem>>, vector<1x256xf32>
    %11 = vector.broadcast %10 : vector<1x256xf32> to vector<8x256xf32>
    %12 = arith.addf %9, %11 : vector<8x256xf32>
    %cst_11 = arith.constant 0.000000e+00 : f32
    %13 = vector.broadcast %cst_11 : f32 to vector<8x256xf32>
    %14 = arith.maximumf %12, %13 : vector<8x256xf32>
    %c0_12 = arith.constant 0 : index
    %c0_13 = arith.constant 0 : index
    %15 = vector.load %arg6[%c0_12, %c0_13] : memref<256x128xf32, #tpu.memory_space<vmem>>, vector<256x128xf32>
    %cst_14 = arith.constant dense<0.000000e+00> : vector<8x128xf32>
    %16 = tpu.matmul %14, %15, %cst_14 {dimension_numbers = #tpu.dot_dimension_numbers<[1], [0], [0], [1], [0, 0, 1, 1], [], []>} : vector<8x256xf32>, vector<256x128xf32>, vector<8x128xf32> -> vector<8x128xf32>
    %c0_15 = arith.constant 0 : index
    %c0_16 = arith.constant 0 : index
    %17 = vector.load %arg7[%c0_15, %c0_16] : memref<1x128xf32, #tpu.memory_space<vmem>>, vector<1x128xf32>
    %18 = vector.broadcast %17 : vector<1x128xf32> to vector<8x128xf32>
    %19 = arith.addf %16, %18 : vector<8x128xf32>
    %cst_17 = arith.constant dense<0xFF800000> : vector<8xf32>
    %20 = vector.multi_reduction <maximumf>, %19, %cst_17 [1] : vector<8x128xf32> to vector<8xf32>
    %21 = vector.shape_cast %20 : vector<8xf32> to vector<8x1xf32>
    %22 = vector.broadcast %21 : vector<8x1xf32> to vector<8x128xf32>
    %23 = arith.subf %19, %22 : vector<8x128xf32>
    %24 = math.exp %23 : vector<8x128xf32>
    %cst_18 = arith.constant dense<0.000000e+00> : vector<8xf32>
    %25 = vector.multi_reduction <add>, %24, %cst_18 [1] : vector<8x128xf32> to vector<8xf32>
    %26 = vector.shape_cast %25 : vector<8xf32> to vector<8x1xf32>
    %27 = tpu.reciprocal %26 : vector<8x1xf32> -> vector<8x1xf32>
    %28 = vector.broadcast %27 : vector<8x1xf32> to vector<8x128xf32>
    %29 = arith.mulf %24, %28 : vector<8x128xf32>
    %c0_19 = arith.constant 0 : index
    %c0_20 = arith.constant 0 : index
    %30 = vector.load %arg8[%c0_19, %c0_20] : memref<8x128xf32, #tpu.memory_space<vmem>>, vector<8x128xf32>
    tpu.vector_store %arg8[%c0_19, %c0_20], %29 {strides = array<i32>} : memref<8x128xf32, #tpu.memory_space<vmem>>, vector<8x128xf32>,
    return
  }
  func.func @transform_0(%arg0: i32) -> (i32, i32) {
    %c0_i32 = arith.constant 0 : i32
    %c0_i32_0 = arith.constant 0 : i32
    return %arg0, %c0_i32 : i32, i32
  }
  func.func @transform_1(%arg0: i32) -> (i32, i32) {
    %c0_i32 = arith.constant 0 : i32
    %c0_i32_0 = arith.constant 0 : i32
    %c0_i32_1 = arith.constant 0 : i32
    return %c0_i32, %c0_i32_0 : i32, i32
  }
  func.func @transform_2(%arg0: i32) -> (i32, i32) {
    %c0_i32 = arith.constant 0 : i32
    %c0_i32_0 = arith.constant 0 : i32
    %c0_i32_1 = arith.constant 0 : i32
    return %c0_i32, %c0_i32_0 : i32, i32
  }
  func.func @transform_3(%arg0: i32) -> (i32, i32) {
    %c0_i32 = arith.constant 0 : i32
    %c0_i32_0 = arith.constant 0 : i32
    %c0_i32_1 = arith.constant 0 : i32
    return %c0_i32, %c0_i32_0 : i32, i32
  }
  func.func @transform_4(%arg0: i32) -> (i32, i32) {
    %c0_i32 = arith.constant 0 : i32
    %c0_i32_0 = arith.constant 0 : i32
    %c0_i32_1 = arith.constant 0 : i32
    return %c0_i32, %c0_i32_0 : i32, i32
  }
  func.func @transform_5(%arg0: i32) -> (i32, i32) {
    %c0_i32 = arith.constant 0 : i32
    %c0_i32_0 = arith.constant 0 : i32
    %c0_i32_1 = arith.constant 0 : i32
    return %c0_i32, %c0_i32_0 : i32, i32
  }
  func.func @transform_6(%arg0: i32) -> (i32, i32) {
    %c0_i32 = arith.constant 0 : i32
    %c0_i32_0 = arith.constant 0 : i32
    %c0_i32_1 = arith.constant 0 : i32
    return %c0_i32, %c0_i32_0 : i32, i32
  }
  func.func @transform_7(%arg0: i32) -> (i32, i32) {
    %c0_i32 = arith.constant 0 : i32
    %c0_i32_0 = arith.constant 0 : i32
    return %arg0, %c0_i32 : i32, i32
  }
}

</mosaic_0001>

<llo_original>
// kernel: tpu_custom_call.1
$region0: #{tpu_custom_call.1}
  #allocation0 [shape = 'u32[]', space=smem, size = 0x4, offset = 0x4, fixed_abs, tag = 'smem constant byte address 0x4 - core index']
  #allocation1 [shape = 'u32[144,128]{1,0:T(1,128)}', space=vmem, size = 0x12000, scoped, tag = 'internal scratch']
  %s0 = inlined_call_operand.hbm [shape: f32[8,384], index: 0, kind: input, shape index: {}]
  %s1 = inlined_call_operand.hbm [shape: f32[384,1024], index: 1, kind: input, shape index: {}]
  %s2 = inlined_call_operand.hbm [shape: f32[1,1024], index: 2, kind: input, shape index: {}]
  %s3 = inlined_call_operand.hbm [shape: f32[1024,256], index: 3, kind: input, shape index: {}]
  %s4 = inlined_call_operand.hbm [shape: f32[1,256], index: 4, kind: input, shape index: {}]
  %s5 = inlined_call_operand.hbm [shape: f32[256,128], index: 5, kind: input, shape index: {}]
  %s6 = inlined_call_operand.hbm [shape: f32[1,128], index: 6, kind: input, shape index: {}]
  %s7 = inlined_call_operand.hbm [shape: f32[8,128], index: 7, kind: output, shape index: {}]
  %s8 = sld [smem:[#allocation0]]
  $region66: #{tpu_custom_call.1} parent=0
    _
  %s10 = ssub.s32 1, %s8
  %s11 = scalar_select 0, %s10, %s8
  $region1: #{tpu_custom_call.1} parent=0
    #allocation2 [shape = 'u8[12288]{0}', space=vmem, size = 0x3000, scoped, tag = 'input window, operand 0, single buffered']
    #allocation3 [shape = 's32[1]{0}', space=sflag, size = 0x4, scoped, tag = 'scoped memory for tpu_custom_call.1']
    #allocation4 [shape = 's32[1]{0}', space=sflag, size = 0x4, scoped, tag = 'scoped memory for tpu_custom_call.1']
    #allocation5 [shape = 'u8[1572864]{0}', space=vmem, size = 0x180000, scoped, tag = 'input window, operand 1, single buffered']
    #allocation6 [shape = 's32[1]{0}', space=sflag, size = 0x4, scoped, tag = 'scoped memory for tpu_custom_call.1']
    #allocation7 [shape = 'u8[4096]{0}', space=vmem, size = 0x1000, scoped, tag = 'input window, operand 2, single buffered']
    #allocation8 [shape = 'u8[1048576]{0}', space=vmem, size = 0x100000, scoped, tag = 'input window, operand 3, single buffered']
    #allocation9 [shape = 's32[1]{0}', space=sflag, size = 0x4, scoped, tag = 'scoped memory for tpu_custom_call.1']
    #allocation10 [shape = 'u8[1024]{0}', space=vmem, size = 0x400, scoped, tag = 'input window, operand 4, single buffered']
    #allocation11 [shape = 'u8[131072]{0}', space=vmem, size = 0x20000, scoped, tag = 'input window, operand 5, single buffered']
    #allocation12 [shape = 's32[1]{0}', space=sflag, size = 0x4, scoped, tag = 'scoped memory for tpu_custom_call.1']
    #allocation13 [shape = 'u8[512]{0}', space=vmem, size = 0x400, scoped, tag = 'input window, operand 6, single buffered']
    #allocation14 [shape = 'u8[4096]{0}', space=vmem, size = 0x1000, scoped, tag = 'output window, operand 0, single buffered']
    %12 = vsyncpa [#allocation3], 0
    %13 = vsyncpa [#allocation6], 0
    %14 = vsyncpa [#allocation9], 0
    %15 = vsyncpa [#allocation12], 0
    %16 = vsyncpa [#allocation4], 0
    // Predicated region
    $region2: #{tpu_custom_call.1} parent=1 // pred_check
      _
    $region3: #{tpu_custom_call.1} parent=1 // pred_check_branch
      %18 = sbr.rel (0) target = $region5
    $region4: #{tpu_custom_call.1} parent=1 // pred_region
      %s20 = ssub.s32 384, 384
      %21 = vsyncadd [#allocation3], %s20
      %s23 = sshll.u32 [#allocation2], 4
      %s24 = int_to_ptr.vmem [resolvable:$true] %s23
      %26 = dma.hbm_to_vmem [thread:$0]  %s0, 384, %s24, [#allocation3]
    $region5: #{tpu_custom_call.1} parent=1 // pred_fallthru
      _
    // Predicated region
    $region6: #{tpu_custom_call.1} parent=1 // pred_check
      _
    $region7: #{tpu_custom_call.1} parent=1 // pred_check_branch
      %28 = sbr.rel (0) target = $region9
    $region8: #{tpu_custom_call.1} parent=1 // pred_region
      %s30 = ssub.s32 49152, 49152
      %31 = vsyncadd [#allocation6], %s30
      %s32 = sshll.u32 [#allocation5], 4
      %s33 = int_to_ptr.vmem [resolvable:$true] %s32
      %38 = dma.hbm_to_vmem [thread:$0]  %s1, 49152, %s33, [#allocation6], 1024, 1024, 64
    $region9: #{tpu_custom_call.1} parent=1 // pred_fallthru
      _
    // Predicated region
    $region10: #{tpu_custom_call.1} parent=1 // pred_check
      _
    $region11: #{tpu_custom_call.1} parent=1 // pred_check_branch
      %40 = sbr.rel (0) target = $region13
    $region12: #{tpu_custom_call.1} parent=1 // pred_region
      %s42 = ssub.s32 128, 128
      %43 = vsyncadd [#allocation6], %s42
      %s45 = sshll.u32 [#allocation7], 4
      %s46 = int_to_ptr.vmem [resolvable:$true] %s45
      %48 = dma.hbm_to_vmem [thread:$0]  %s2, 128, %s46, [#allocation6]
    $region13: #{tpu_custom_call.1} parent=1 // pred_fallthru
      _
    // Predicated region
    $region14: #{tpu_custom_call.1} parent=1 // pred_check
      _
    $region15: #{tpu_custom_call.1} parent=1 // pred_check_branch
      %50 = sbr.rel (0) target = $region17
    $region16: #{tpu_custom_call.1} parent=1 // pred_region
      %s52 = ssub.s32 32768, 32768
      %53 = vsyncadd [#allocation9], %s52
      %s54 = sshll.u32 [#allocation8], 4
      %s55 = int_to_ptr.vmem [resolvable:$true] %s54
      %60 = dma.hbm_to_vmem [thread:$0]  %s3, 32768, %s55, [#allocation9], 256, 256, 16
    $region17: #{tpu_custom_call.1} parent=1 // pred_fallthru
      _
    // Predicated region
    $region18: #{tpu_custom_call.1} parent=1 // pred_check
      _
    $region19: #{tpu_custom_call.1} parent=1 // pred_check_branch
      %62 = sbr.rel (0) target = $region21
    $region20: #{tpu_custom_call.1} parent=1 // pred_region
      %s64 = ssub.s32 32, 32
      %65 = vsyncadd [#allocation9], %s64
      %s67 = sshll.u32 [#allocation10], 4
      %s68 = int_to_ptr.vmem [resolvable:$true] %s67
      %70 = dma.hbm_to_vmem [thread:$0]  %s4, 32, %s68, [#allocation9]
    $region21: #{tpu_custom_call.1} parent=1 // pred_fallthru
      _
    // Predicated region
    $region22: #{tpu_custom_call.1} parent=1 // pred_check
      _
    $region23: #{tpu_custom_call.1} parent=1 // pred_check_branch
      %72 = sbr.rel (0) target = $region25
    $region24: #{tpu_custom_call.1} parent=1 // pred_region
      %s74 = ssub.s32 4096, 4096
      %75 = vsyncadd [#allocation12], %s74
      %s76 = sshll.u32 [#allocation11], 4
      %s77 = int_to_ptr.vmem [resolvable:$true] %s76
      %82 = dma.hbm_to_vmem [thread:$0]  %s5, 4096, %s77, [#allocation12], 128, 128, 8
    $region25: #{tpu_custom_call.1} parent=1 // pred_fallthru
      _
    // Predicated region
    $region26: #{tpu_custom_call.1} parent=1 // pred_check
      _
    $region27: #{tpu_custom_call.1} parent=1 // pred_check_branch
      %84 = sbr.rel (0) target = $region29
    $region28: #{tpu_custom_call.1} parent=1 // pred_region
      %s86 = ssub.s32 16, 16
      %87 = vsyncadd [#allocation12], %s86
      %s89 = sshll.u32 [#allocation13], 4
      %s90 = int_to_ptr.vmem [resolvable:$true] %s89
      %92 = dma.hbm_to_vmem [thread:$0]  %s6, 16, %s90, [#allocation12]
    $region29: #{tpu_custom_call.1} parent=1 // pred_fallthru
      _
    // Predicated region
    $region30: #{tpu_custom_call.1} parent=1 // pred_check
      _
    $region31: #{tpu_custom_call.1} parent=1 // pred_check_branch
      %94 = sbr.rel (0) target = $region33
    $region32: #{tpu_custom_call.1} parent=1 // pred_region
      %95 = dma.done [#allocation3], 384
    $region33: #{tpu_custom_call.1} parent=1 // pred_fallthru
      _
    // Predicated region
    $region34: #{tpu_custom_call.1} parent=1 // pred_check
      _
    $region35: #{tpu_custom_call.1} parent=1 // pred_check_branch
      %97 = sbr.rel (0) target = $region37
    $region36: #{tpu_custom_call.1} parent=1 // pred_region
      %98 = dma.done [#allocation6], 49152
    $region37: #{tpu_custom_call.1} parent=1 // pred_fallthru
      _
    // Predicated region
    $region38: #{tpu_custom_call.1} parent=1 // pred_check
      _
    $region39: #{tpu_custom_call.1} parent=1 // pred_check_branch
      %100 = sbr.rel (0) target = $region41
    $region40: #{tpu_custom_call.1} parent=1 // pred_region
      %101 = dma.done [#allocation6], 128
    $region41: #{tpu_custom_call.1} parent=1 // pred_fallthru
      _
    // Predicated region
    $region42: #{tpu_custom_call.1} parent=1 // pred_check
      _
    $region43: #{tpu_custom_call.1} parent=1 // pred_check_branch
      %103 = sbr.rel (0) target = $region45
    $region44: #{tpu_custom_call.1} parent=1 // pred_region
      %104 = dma.done [#allocation9], 32768
    $region45: #{tpu_custom_call.1} parent=1 // pred_fallthru
      _
    // Predicated region
    $region46: #{tpu_custom_call.1} parent=1 // pred_check
      _
    $region47: #{tpu_custom_call.1} parent=1 // pred_check_branch
      %106 = sbr.rel (0) target = $region49
    $region48: #{tpu_custom_call.1} parent=1 // pred_region
      %107 = dma.done [#allocation9], 32
    $region49: #{tpu_custom_call.1} parent=1 // pred_fallthru
      _
    // Predicated region
    $region50: #{tpu_custom_call.1} parent=1 // pred_check
      _
    $region51: #{tpu_custom_call.1} parent=1 // pred_check_branch
      %109 = sbr.rel (0) target = $region53
    $region52: #{tpu_custom_call.1} parent=1 // pred_region
      %110 = dma.done [#allocation12], 4096
    $region53: #{tpu_custom_call.1} parent=1 // pred_fallthru
      _
    // Predicated region
    $region54: #{tpu_custom_call.1} parent=1 // pred_check
      _
    $region55: #{tpu_custom_call.1} parent=1 // pred_check_branch
      %112 = sbr.rel (0) target = $region57
    $region56: #{tpu_custom_call.1} parent=1 // pred_region
      %113 = dma.done [#allocation12], 16
    $region57: #{tpu_custom_call.1} parent=1 // pred_fallthru
      _
    %v114 = vld [vmem:[#allocation2] sm:$0xff]
    %v115 = vld [vmem:[#allocation2 + $0x8] sm:$0xff]
    %v116 = vld [vmem:[#allocation2 + $0x10] sm:$0xff]
    %v117 = vld [vmem:[#allocation5] sm:$0xff]
    %v118 = vld [vmem:[#allocation5 + $0x8] sm:$0xff]
    %v119 = vld [vmem:[#allocation5 + $0x10] sm:$0xff]
    %v120 = vld [vmem:[#allocation5 + $0x18] sm:$0xff]
    %v121 = vld [vmem:[#allocation5 + $0x20] sm:$0xff]
    %v122 = vld [vmem:[#allocation5 + $0x28] sm:$0xff]
    %v123 = vld [vmem:[#allocation5 + $0x30] sm:$0xff]
    %v124 = vld [vmem:[#allocation5 + $0x38] sm:$0xff]
    %v125 = vld [vmem:[#allocation5 + $0x40] sm:$0xff]
    %v126 = vld [vmem:[#allocation5 + $0x48] sm:$0xff]
    %v127 = vld [vmem:[#allocation5 + $0x50] sm:$0xff]
    %v128 = vld [vmem:[#allocation5 + $0x58] sm:$0xff]
    %v129 = vld [vmem:[#allocation5 + $0x60] sm:$0xff]
    %v130 = vld [vmem:[#allocation5 + $0x68] sm:$0xff]
    %v131 = vld [vmem:[#allocation5 + $0x70] sm:$0xff]
    %v132 = vld [vmem:[#allocation5 + $0x78] sm:$0xff]
    %v133 = vld [vmem:[#allocation5 + $0x80] sm:$0xff]
    %v134 = vld [vmem:[#allocation5 + $0x88] sm:$0xff]
    %v135 = vld [vmem:[#allocation5 + $0x90] sm:$0xff]
    %v136 = vld [vmem:[#allocation5 + $0x98] sm:$0xff]
    %v137 = vld [vmem:[#allocation5 + $0xa0] sm:$0xff]
    %v138 = vld [vmem:[#allocation5 + $0xa8] sm:$0xff]
    %v139 = vld [vmem:[#allocation5 + $0xb0] sm:$0xff]
    %v140 = vld [vmem:[#allocation5 + $0xb8] sm:$0xff]
    %v141 = vld [vmem:[#allocation5 + $0xc0] sm:$0xff]
    %v142 = vld [vmem:[#allocation5 + $0xc8] sm:$0xff]
    %v143 = vld [vmem:[#allocation5 + $0xd0] sm:$0xff]
    %v144 = vld [vmem:[#allocation5 + $0xd8] sm:$0xff]
    %v145 = vld [vmem:[#allocation5 + $0xe0] sm:$0xff]
    %v146 = vld [vmem:[#allocation5 + $0xe8] sm:$0xff]
    %v147 = vld [vmem:[#allocation5 + $0xf0] sm:$0xff]
    %v148 = vld [vmem:[#allocation5 + $0xf8] sm:$0xff]
    %v149 = vld [vmem:[#allocation5 + $0x100] sm:$0xff]
    %v150 = vld [vmem:[#allocation5 + $0x108] sm:$0xff]
    %v151 = vld [vmem:[#allocation5 + $0x110] sm:$0xff]
    %v152 = vld [vmem:[#allocation5 + $0x118] sm:$0xff]
    %v153 = vld [vmem:[#allocation5 + $0x120] sm:$0xff]
    %v154 = vld [vmem:[#allocation5 + $0x128] sm:$0xff]
    %v155 = vld [vmem:[#allocation5 + $0x130] sm:$0xff]
    %v156 = vld [vmem:[#allocation5 + $0x138] sm:$0xff]
    %v157 = vld [vmem:[#allocation5 + $0x140] sm:$0xff]
    %v158 = vld [vmem:[#allocation5 + $0x148] sm:$0xff]
    %v159 = vld [vmem:[#allocation5 + $0x150] sm:$0xff]
    %v160 = vld [vmem:[#allocation5 + $0x158] sm:$0xff]
    %v161 = vld [vmem:[#allocation5 + $0x160] sm:$0xff]
    %v162 = vld [vmem:[#allocation5 + $0x168] sm:$0xff]
    %v163 = vld [vmem:[#allocation5 + $0x170] sm:$0xff]
    %v164 = vld [vmem:[#allocation5 + $0x178] sm:$0xff]
    %v165 = vld [vmem:[#allocation5 + $0x180] sm:$0xff]
    %v166 = vld [vmem:[#allocation5 + $0x188] sm:$0xff]
    %v167 = vld [vmem:[#allocation5 + $0x190] sm:$0xff]
    %v168 = vld [vmem:[#allocation5 + $0x198] sm:$0xff]
    %v169 = vld [vmem:[#allocation5 + $0x1a0] sm:$0xff]
    %v170 = vld [vmem:[#allocation5 + $0x1a8] sm:$0xff]
    %v171 = vld [vmem:[#allocation5 + $0x1b0] sm:$0xff]
    %v172 = vld [vmem:[#allocation5 + $0x1b8] sm:$0xff]
    %v173 = vld [vmem:[#allocation5 + $0x1c0] sm:$0xff]
    %v174 = vld [vmem:[#allocation5 + $0x1c8] sm:$0xff]
    %v175 = vld [vmem:[#allocation5 + $0x1d0] sm:$0xff]
    %v176 = vld [vmem:[#allocation5 + $0x1d8] sm:$0xff]
    %v177 = vld [vmem:[#allocation5 + $0x1e0] sm:$0xff]
    %v178 = vld [vmem:[#allocation5 + $0x1e8] sm:$0xff]
    %v179 = vld [vmem:[#allocation5 + $0x1f0] sm:$0xff]
    %v180 = vld [vmem:[#allocation5 + $0x1f8] sm:$0xff]
    %v181 = vld [vmem:[#allocation5 + $0x200] sm:$0xff]
    %v182 = vld [vmem:[#allocation5 + $0x208] sm:$0xff]
    %v183 = vld [vmem:[#allocation5 + $0x210] sm:$0xff]
    %v184 = vld [vmem:[#allocation5 + $0x218] sm:$0xff]
    %v185 = vld [vmem:[#allocation5 + $0x220] sm:$0xff]
    %v186 = vld [vmem:[#allocation5 + $0x228] sm:$0xff]
    %v187 = vld [vmem:[#allocation5 + $0x230] sm:$0xff]
    %v188 = vld [vmem:[#allocation5 + $0x238] sm:$0xff]
    %v189 = vld [vmem:[#allocation5 + $0x240] sm:$0xff]
    %v190 = vld [vmem:[#allocation5 + $0x248] sm:$0xff]
    %v191 = vld [vmem:[#allocation5 + $0x250] sm:$0xff]
    %v192 = vld [vmem:[#allocation5 + $0x258] sm:$0xff]
    %v193 = vld [vmem:[#allocation5 + $0x260] sm:$0xff]
    %v194 = vld [vmem:[#allocation5 + $0x268] sm:$0xff]
    %v195 = vld [vmem:[#allocation5 + $0x270] sm:$0xff]
    %v196 = vld [vmem:[#allocation5 + $0x278] sm:$0xff]
    %v197 = vld [vmem:[#allocation5 + $0x280] sm:$0xff]
    %v198 = vld [vmem:[#allocation5 + $0x288] sm:$0xff]
    %v199 = vld [vmem:[#allocation5 + $0x290] sm:$0xff]
    %v200 = vld [vmem:[#allocation5 + $0x298] sm:$0xff]
    %v201 = vld [vmem:[#allocation5 + $0x2a0] sm:$0xff]
    %v202 = vld [vmem:[#allocation5 + $0x2a8] sm:$0xff]
    %v203 = vld [vmem:[#allocation5 + $0x2b0] sm:$0xff]
    %v204 = vld [vmem:[#allocation5 + $0x2b8] sm:$0xff]
    %v205 = vld [vmem:[#allocation5 + $0x2c0] sm:$0xff]
    %v206 = vld [vmem:[#allocation5 + $0x2c8] sm:$0xff]
    %v207 = vld [vmem:[#allocation5 + $0x2d0] sm:$0xff]
    %v208 = vld [vmem:[#allocation5 + $0x2d8] sm:$0xff]
    %v209 = vld [vmem:[#allocation5 + $0x2e0] sm:$0xff]
    %v210 = vld [vmem:[#allocation5 + $0x2e8] sm:$0xff]
    %v211 = vld [vmem:[#allocation5 + $0x2f0] sm:$0xff]
    %v212 = vld [vmem:[#allocation5 + $0x2f8] sm:$0xff]
    %v213 = vld [vmem:[#allocation5 + $0x300] sm:$0xff]
    %v214 = vld [vmem:[#allocation5 + $0x308] sm:$0xff]
    %v215 = vld [vmem:[#allocation5 + $0x310] sm:$0xff]
    %v216 = vld [vmem:[#allocation5 + $0x318] sm:$0xff]
    %v217 = vld [vmem:[#allocation5 + $0x320] sm:$0xff]
    %v218 = vld [vmem:[#allocation5 + $0x328] sm:$0xff]
    %v219 = vld [vmem:[#allocation5 + $0x330] sm:$0xff]
    %v220 = vld [vmem:[#allocation5 + $0x338] sm:$0xff]
    %v221 = vld [vmem:[#allocation5 + $0x340] sm:$0xff]
    %v222 = vld [vmem:[#allocation5 + $0x348] sm:$0xff]
    %v223 = vld [vmem:[#allocation5 + $0x350] sm:$0xff]
    %v224 = vld [vmem:[#allocation5 + $0x358] sm:$0xff]
    %v225 = vld [vmem:[#allocation5 + $0x360] sm:$0xff]
    %v226 = vld [vmem:[#allocation5 + $0x368] sm:$0xff]
    %v227 = vld [vmem:[#allocation5 + $0x370] sm:$0xff]
    %v228 = vld [vmem:[#allocation5 + $0x378] sm:$0xff]
    %v229 = vld [vmem:[#allocation5 + $0x380] sm:$0xff]
    %v230 = vld [vmem:[#allocation5 + $0x388] sm:$0xff]
    %v231 = vld [vmem:[#allocation5 + $0x390] sm:$0xff]
    %v232 = vld [vmem:[#allocation5 + $0x398] sm:$0xff]
    %v233 = vld [vmem:[#allocation5 + $0x3a0] sm:$0xff]
    %v234 = vld [vmem:[#allocation5 + $0x3a8] sm:$0xff]
    %v235 = vld [vmem:[#allocation5 + $0x3b0] sm:$0xff]
    %v236 = vld [vmem:[#allocation5 + $0x3b8] sm:$0xff]
    %v237 = vld [vmem:[#allocation5 + $0x3c0] sm:$0xff]
    %v238 = vld [vmem:[#allocation5 + $0x3c8] sm:$0xff]
    %v239 = vld [vmem:[#allocation5 + $0x3d0] sm:$0xff]
    %v240 = vld [vmem:[#allocation5 + $0x3d8] sm:$0xff]
    %v241 = vld [vmem:[#allocation5 + $0x3e0] sm:$0xff]
    %v242 = vld [vmem:[#allocation5 + $0x3e8] sm:$0xff]
    %v243 = vld [vmem:[#allocation5 + $0x3f0] sm:$0xff]
    %v244 = vld [vmem:[#allocation5 + $0x3f8] sm:$0xff]
    %v245 = vld [vmem:[#allocation5 + $0x400] sm:$0xff]
    %v246 = vld [vmem:[#allocation5 + $0x408] sm:$0xff]
    %v247 = vld [vmem:[#allocation5 + $0x410] sm:$0xff]
    %v248 = vld [vmem:[#allocation5 + $0x418] sm:$0xff]
    %v249 = vld [vmem:[#allocation5 + $0x420] sm:$0xff]
    %v250 = vld [vmem:[#allocation5 + $0x428] sm:$0xff]
    %v251 = vld [vmem:[#allocation5 + $0x430] sm:$0xff]
    %v252 = vld [vmem:[#allocation5 + $0x438] sm:$0xff]
    %v253 = vld [vmem:[#allocation5 + $0x440] sm:$0xff]
    %v254 = vld [vmem:[#allocation5 + $0x448] sm:$0xff]
    %v255 = vld [vmem:[#allocation5 + $0x450] sm:$0xff]
    %v256 = vld [vmem:[#allocation5 + $0x458] sm:$0xff]
    %v257 = vld [vmem:[#allocation5 + $0x460] sm:$0xff]
    %v258 = vld [vmem:[#allocation5 + $0x468] sm:$0xff]
    %v259 = vld [vmem:[#allocation5 + $0x470] sm:$0xff]
    %v260 = vld [vmem:[#allocation5 + $0x478] sm:$0xff]
    %v261 = vld [vmem:[#allocation5 + $0x480] sm:$0xff]
    %v262 = vld [vmem:[#allocation5 + $0x488] sm:$0xff]
    %v263 = vld [vmem:[#allocation5 + $0x490] sm:$0xff]
    %v264 = vld [vmem:[#allocation5 + $0x498] sm:$0xff]
    %v265 = vld [vmem:[#allocation5 + $0x4a0] sm:$0xff]
    %v266 = vld [vmem:[#allocation5 + $0x4a8] sm:$0xff]
    %v267 = vld [vmem:[#allocation5 + $0x4b0] sm:$0xff]
    %v268 = vld [vmem:[#allocation5 + $0x4b8] sm:$0xff]
    %v269 = vld [vmem:[#allocation5 + $0x4c0] sm:$0xff]
    %v270 = vld [vmem:[#allocation5 + $0x4c8] sm:$0xff]
    %v271 = vld [vmem:[#allocation5 + $0x4d0] sm:$0xff]
    %v272 = vld [vmem:[#allocation5 + $0x4d8] sm:$0xff]
    %v273 = vld [vmem:[#allocation5 + $0x4e0] sm:$0xff]
    %v274 = vld [vmem:[#allocation5 + $0x4e8] sm:$0xff]
    %v275 = vld [vmem:[#allocation5 + $0x4f0] sm:$0xff]
    %v276 = vld [vmem:[#allocation5 + $0x4f8] sm:$0xff]
    %v277 = vld [vmem:[#allocation5 + $0x500] sm:$0xff]
    %v278 = vld [vmem:[#allocation5 + $0x508] sm:$0xff]
    %v279 = vld [vmem:[#allocation5 + $0x510] sm:$0xff]
    %v280 = vld [vmem:[#allocation5 + $0x518] sm:$0xff]
    %v281 = vld [vmem:[#allocation5 + $0x520] sm:$0xff]
    %v282 = vld [vmem:[#allocation5 + $0x528] sm:$0xff]
    %v283 = vld [vmem:[#allocation5 + $0x530] sm:$0xff]
    %v284 = vld [vmem:[#allocation5 + $0x538] sm:$0xff]
    %v285 = vld [vmem:[#allocation5 + $0x540] sm:$0xff]
    %v286 = vld [vmem:[#allocation5 + $0x548] sm:$0xff]
    %v287 = vld [vmem:[#allocation5 + $0x550] sm:$0xff]
    %v288 = vld [vmem:[#allocation5 + $0x558] sm:$0xff]
    %v289 = vld [vmem:[#allocation5 + $0x560] sm:$0xff]
    %v290 = vld [vmem:[#allocation5 + $0x568] sm:$0xff]
    %v291 = vld [vmem:[#allocation5 + $0x570] sm:$0xff]
    %v292 = vld [vmem:[#allocation5 + $0x578] sm:$0xff]
    %v293 = vld [vmem:[#allocation5 + $0x580] sm:$0xff]
    %v294 = vld [vmem:[#allocation5 + $0x588] sm:$0xff]
    %v295 = vld [vmem:[#allocation5 + $0x590] sm:$0xff]
    %v296 = vld [vmem:[#allocation5 + $0x598] sm:$0xff]
    %v297 = vld [vmem:[#allocation5 + $0x5a0] sm:$0xff]
    %v298 = vld [vmem:[#allocation5 + $0x5a8] sm:$0xff]
    %v299 = vld [vmem:[#allocation5 + $0x5b0] sm:$0xff]
    %v300 = vld [vmem:[#allocation5 + $0x5b8] sm:$0xff]
    %v301 = vld [vmem:[#allocation5 + $0x5c0] sm:$0xff]
    %v302 = vld [vmem:[#allocation5 + $0x5c8] sm:$0xff]
    %v303 = vld [vmem:[#allocation5 + $0x5d0] sm:$0xff]
    %v304 = vld [vmem:[#allocation5 + $0x5d8] sm:$0xff]
    %v305 = vld [vmem:[#allocation5 + $0x5e0] sm:$0xff]
    %v306 = vld [vmem:[#allocation5 + $0x5e8] sm:$0xff]
    %v307 = vld [vmem:[#allocation5 + $0x5f0] sm:$0xff]
    %v308 = vld [vmem:[#allocation5 + $0x5f8] sm:$0xff]
    %v309 = vld [vmem:[#allocation5 + $0x600] sm:$0xff]
    %v310 = vld [vmem:[#allocation5 + $0x608] sm:$0xff]
    %v311 = vld [vmem:[#allocation5 + $0x610] sm:$0xff]
    %v312 = vld [vmem:[#allocation5 + $0x618] sm:$0xff]
    %v313 = vld [vmem:[#allocation5 + $0x620] sm:$0xff]
    %v314 = vld [vmem:[#allocation5 + $0x628] sm:$0xff]
    %v315 = vld [vmem:[#allocation5 + $0x630] sm:$0xff]
    %v316 = vld [vmem:[#allocation5 + $0x638] sm:$0xff]
    %v317 = vld [vmem:[#allocation5 + $0x640] sm:$0xff]
    %v318 = vld [vmem:[#allocation5 + $0x648] sm:$0xff]
    %v319 = vld [vmem:[#allocation5 + $0x650] sm:$0xff]
    %v320 = vld [vmem:[#allocation5 + $0x658] sm:$0xff]
    %v321 = vld [vmem:[#allocation5 + $0x660] sm:$0xff]
    %v322 = vld [vmem:[#allocation5 + $0x668] sm:$0xff]
    %v323 = vld [vmem:[#allocation5 + $0x670] sm:$0xff]
    %v324 = vld [vmem:[#allocation5 + $0x678] sm:$0xff]
    %v325 = vld [vmem:[#allocation5 + $0x680] sm:$0xff]
    %v326 = vld [vmem:[#allocation5 + $0x688] sm:$0xff]
    %v327 = vld [vmem:[#allocation5 + $0x690] sm:$0xff]
    %v328 = vld [vmem:[#allocation5 + $0x698] sm:$0xff]
    %v329 = vld [vmem:[#allocation5 + $0x6a0] sm:$0xff]
    %v330 = vld [vmem:[#allocation5 + $0x6a8] sm:$0xff]
    %v331 = vld [vmem:[#allocation5 + $0x6b0] sm:$0xff]
    %v332 = vld [vmem:[#allocation5 + $0x6b8] sm:$0xff]
    %v333 = vld [vmem:[#allocation5 + $0x6c0] sm:$0xff]
    %v334 = vld [vmem:[#allocation5 + $0x6c8] sm:$0xff]
    %v335 = vld [vmem:[#allocation5 + $0x6d0] sm:$0xff]
    %v336 = vld [vmem:[#allocation5 + $0x6d8] sm:$0xff]
    %v337 = vld [vmem:[#allocation5 + $0x6e0] sm:$0xff]
    %v338 = vld [vmem:[#allocation5 + $0x6e8] sm:$0xff]
    %v339 = vld [vmem:[#allocation5 + $0x6f0] sm:$0xff]
    %v340 = vld [vmem:[#allocation5 + $0x6f8] sm:$0xff]
    %v341 = vld [vmem:[#allocation5 + $0x700] sm:$0xff]
    %v342 = vld [vmem:[#allocation5 + $0x708] sm:$0xff]
    %v343 = vld [vmem:[#allocation5 + $0x710] sm:$0xff]
    %v344 = vld [vmem:[#allocation5 + $0x718] sm:$0xff]
    %v345 = vld [vmem:[#allocation5 + $0x720] sm:$0xff]
    %v346 = vld [vmem:[#allocation5 + $0x728] sm:$0xff]
    %v347 = vld [vmem:[#allocation5 + $0x730] sm:$0xff]
    %v348 = vld [vmem:[#allocation5 + $0x738] sm:$0xff]
    %v349 = vld [vmem:[#allocation5 + $0x740] sm:$0xff]
    %v350 = vld [vmem:[#allocation5 + $0x748] sm:$0xff]
    %v351 = vld [vmem:[#allocation5 + $0x750] sm:$0xff]
    %v352 = vld [vmem:[#allocation5 + $0x758] sm:$0xff]
    %v353 = vld [vmem:[#allocation5 + $0x760] sm:$0xff]
    %v354 = vld [vmem:[#allocation5 + $0x768] sm:$0xff]
    %v355 = vld [vmem:[#allocation5 + $0x770] sm:$0xff]
    %v356 = vld [vmem:[#allocation5 + $0x778] sm:$0xff]
    %v357 = vld [vmem:[#allocation5 + $0x780] sm:$0xff]
    %v358 = vld [vmem:[#allocation5 + $0x788] sm:$0xff]
    %v359 = vld [vmem:[#allocation5 + $0x790] sm:$0xff]
    %v360 = vld [vmem:[#allocation5 + $0x798] sm:$0xff]
    %v361 = vld [vmem:[#allocation5 + $0x7a0] sm:$0xff]
    %v362 = vld [vmem:[#allocation5 + $0x7a8] sm:$0xff]
    %v363 = vld [vmem:[#allocation5 + $0x7b0] sm:$0xff]
    %v364 = vld [vmem:[#allocation5 + $0x7b8] sm:$0xff]
    %v365 = vld [vmem:[#allocation5 + $0x7c0] sm:$0xff]
    %v366 = vld [vmem:[#allocation5 + $0x7c8] sm:$0xff]
    %v367 = vld [vmem:[#allocation5 + $0x7d0] sm:$0xff]
    %v368 = vld [vmem:[#allocation5 + $0x7d8] sm:$0xff]
    %v369 = vld [vmem:[#allocation5 + $0x7e0] sm:$0xff]
    %v370 = vld [vmem:[#allocation5 + $0x7e8] sm:$0xff]
    %v371 = vld [vmem:[#allocation5 + $0x7f0] sm:$0xff]
    %v372 = vld [vmem:[#allocation5 + $0x7f8] sm:$0xff]
    %v373 = vld [vmem:[#allocation5 + $0x800] sm:$0xff]
    %v374 = vld [vmem:[#allocation5 + $0x808] sm:$0xff]
    %v375 = vld [vmem:[#allocation5 + $0x810] sm:$0xff]
    %v376 = vld [vmem:[#allocation5 + $0x818] sm:$0xff]
    %v377 = vld [vmem:[#allocation5 + $0x820] sm:$0xff]
    %v378 = vld [vmem:[#allocation5 + $0x828] sm:$0xff]
    %v379 = vld [vmem:[#allocation5 + $0x830] sm:$0xff]
    %v380 = vld [vmem:[#allocation5 + $0x838] sm:$0xff]
    %v381 = vld [vmem:[#allocation5 + $0x840] sm:$0xff]
    %v382 = vld [vmem:[#allocation5 + $0x848] sm:$0xff]
    %v383 = vld [vmem:[#allocation5 + $0x850] sm:$0xff]
    %v384 = vld [vmem:[#allocation5 + $0x858] sm:$0xff]
    %v385 = vld [vmem:[#allocation5 + $0x860] sm:$0xff]
    %v386 = vld [vmem:[#allocation5 + $0x868] sm:$0xff]
    %v387 = vld [vmem:[#allocation5 + $0x870] sm:$0xff]
    %v388 = vld [vmem:[#allocation5 + $0x878] sm:$0xff]
    %v389 = vld [vmem:[#allocation5 + $0x880] sm:$0xff]
    %v390 = vld [vmem:[#allocation5 + $0x888] sm:$0xff]
    %v391 = vld [vmem:[#allocation5 + $0x890] sm:$0xff]
    %v392 = vld [vmem:[#allocation5 + $0x898] sm:$0xff]
    %v393 = vld [vmem:[#allocation5 + $0x8a0] sm:$0xff]
    %v394 = vld [vmem:[#allocation5 + $0x8a8] sm:$0xff]
    %v395 = vld [vmem:[#allocation5 + $0x8b0] sm:$0xff]
    %v396 = vld [vmem:[#allocation5 + $0x8b8] sm:$0xff]
    %v397 = vld [vmem:[#allocation5 + $0x8c0] sm:$0xff]
    %v398 = vld [vmem:[#allocation5 + $0x8c8] sm:$0xff]
    %v399 = vld [vmem:[#allocation5 + $0x8d0] sm:$0xff]
    %v400 = vld [vmem:[#allocation5 + $0x8d8] sm:$0xff]
    %v401 = vld [vmem:[#allocation5 + $0x8e0] sm:$0xff]
    %v402 = vld [vmem:[#allocation5 + $0x8e8] sm:$0xff]
    %v403 = vld [vmem:[#allocation5 + $0x8f0] sm:$0xff]
    %v404 = vld [vmem:[#allocation5 + $0x8f8] sm:$0xff]
    %v405 = vld [vmem:[#allocation5 + $0x900] sm:$0xff]
    %v406 = vld [vmem:[#allocation5 + $0x908] sm:$0xff]
    %v407 = vld [vmem:[#allocation5 + $0x910] sm:$0xff]
    %v408 = vld [vmem:[#allocation5 + $0x918] sm:$0xff]
    %v409 = vld [vmem:[#allocation5 + $0x920] sm:$0xff]
    %v410 = vld [vmem:[#allocation5 + $0x928] sm:$0xff]
    %v411 = vld [vmem:[#allocation5 + $0x930] sm:$0xff]
    %v412 = vld [vmem:[#allocation5 + $0x938] sm:$0xff]
    %v413 = vld [vmem:[#allocation5 + $0x940] sm:$0xff]
    %v414 = vld [vmem:[#allocation5 + $0x948] sm:$0xff]
    %v415 = vld [vmem:[#allocation5 + $0x950] sm:$0xff]
    %v416 = vld [vmem:[#allocation5 + $0x958] sm:$0xff]
    %v417 = vld [vmem:[#allocation5 + $0x960] sm:$0xff]
    %v418 = vld [vmem:[#allocation5 + $0x968] sm:$0xff]
    %v419 = vld [vmem:[#allocation5 + $0x970] sm:$0xff]
    %v420 = vld [vmem:[#allocation5 + $0x978] sm:$0xff]
    %v421 = vld [vmem:[#allocation5 + $0x980] sm:$0xff]
    %v422 = vld [vmem:[#allocation5 + $0x988] sm:$0xff]
    %v423 = vld [vmem:[#allocation5 + $0x990] sm:$0xff]
    %v424 = vld [vmem:[#allocation5 + $0x998] sm:$0xff]
    %v425 = vld [vmem:[#allocation5 + $0x9a0] sm:$0xff]
    %v426 = vld [vmem:[#allocation5 + $0x9a8] sm:$0xff]
    %v427 = vld [vmem:[#allocation5 + $0x9b0] sm:$0xff]
    %v428 = vld [vmem:[#allocation5 + $0x9b8] sm:$0xff]
    %v429 = vld [vmem:[#allocation5 + $0x9c0] sm:$0xff]
    %v430 = vld [vmem:[#allocation5 + $0x9c8] sm:$0xff]
    %v431 = vld [vmem:[#allocation5 + $0x9d0] sm:$0xff]
    %v432 = vld [vmem:[#allocation5 + $0x9d8] sm:$0xff]
    %v433 = vld [vmem:[#allocation5 + $0x9e0] sm:$0xff]
    %v434 = vld [vmem:[#allocation5 + $0x9e8] sm:$0xff]
    %v435 = vld [vmem:[#allocation5 + $0x9f0] sm:$0xff]
    %v436 = vld [vmem:[#allocation5 + $0x9f8] sm:$0xff]
    %v437 = vld [vmem:[#allocation5 + $0xa00] sm:$0xff]
    %v438 = vld [vmem:[#allocation5 + $0xa08] sm:$0xff]
    %v439 = vld [vmem:[#allocation5 + $0xa10] sm:$0xff]
    %v440 = vld [vmem:[#allocation5 + $0xa18] sm:$0xff]
    %v441 = vld [vmem:[#allocation5 + $0xa20] sm:$0xff]
    %v442 = vld [vmem:[#allocation5 + $0xa28] sm:$0xff]
    %v443 = vld [vmem:[#allocation5 + $0xa30] sm:$0xff]
    %v444 = vld [vmem:[#allocation5 + $0xa38] sm:$0xff]
    %v445 = vld [vmem:[#allocation5 + $0xa40] sm:$0xff]
    %v446 = vld [vmem:[#allocation5 + $0xa48] sm:$0xff]
    %v447 = vld [vmem:[#allocation5 + $0xa50] sm:$0xff]
    %v448 = vld [vmem:[#allocation5 + $0xa58] sm:$0xff]
    %v449 = vld [vmem:[#allocation5 + $0xa60] sm:$0xff]
    %v450 = vld [vmem:[#allocation5 + $0xa68] sm:$0xff]
    %v451 = vld [vmem:[#allocation5 + $0xa70] sm:$0xff]
    %v452 = vld [vmem:[#allocation5 + $0xa78] sm:$0xff]
    %v453 = vld [vmem:[#allocation5 + $0xa80] sm:$0xff]
    %v454 = vld [vmem:[#allocation5 + $0xa88] sm:$0xff]
    %v455 = vld [vmem:[#allocation5 + $0xa90] sm:$0xff]
    %v456 = vld [vmem:[#allocation5 + $0xa98] sm:$0xff]
    %v457 = vld [vmem:[#allocation5 + $0xaa0] sm:$0xff]
    %v458 = vld [vmem:[#allocation5 + $0xaa8] sm:$0xff]
    %v459 = vld [vmem:[#allocation5 + $0xab0] sm:$0xff]
    %v460 = vld [vmem:[#allocation5 + $0xab8] sm:$0xff]
    %v461 = vld [vmem:[#allocation5 + $0xac0] sm:$0xff]
    %v462 = vld [vmem:[#allocation5 + $0xac8] sm:$0xff]
    %v463 = vld [vmem:[#allocation5 + $0xad0] sm:$0xff]
    %v464 = vld [vmem:[#allocation5 + $0xad8] sm:$0xff]
    %v465 = vld [vmem:[#allocation5 + $0xae0] sm:$0xff]
    %v466 = vld [vmem:[#allocation5 + $0xae8] sm:$0xff]
    %v467 = vld [vmem:[#allocation5 + $0xaf0] sm:$0xff]
    %v468 = vld [vmem:[#allocation5 + $0xaf8] sm:$0xff]
    %v469 = vld [vmem:[#allocation5 + $0xb00] sm:$0xff]
    %v470 = vld [vmem:[#allocation5 + $0xb08] sm:$0xff]
    %v471 = vld [vmem:[#allocation5 + $0xb10] sm:$0xff]
    %v472 = vld [vmem:[#allocation5 + $0xb18] sm:$0xff]
    %v473 = vld [vmem:[#allocation5 + $0xb20] sm:$0xff]
    %v474 = vld [vmem:[#allocation5 + $0xb28] sm:$0xff]
    %v475 = vld [vmem:[#allocation5 + $0xb30] sm:$0xff]
    %v476 = vld [vmem:[#allocation5 + $0xb38] sm:$0xff]
    %v477 = vld [vmem:[#allocation5 + $0xb40] sm:$0xff]
    %v478 = vld [vmem:[#allocation5 + $0xb48] sm:$0xff]
    %v479 = vld [vmem:[#allocation5 + $0xb50] sm:$0xff]
    %v480 = vld [vmem:[#allocation5 + $0xb58] sm:$0xff]
    %v481 = vld [vmem:[#allocation5 + $0xb60] sm:$0xff]
    %v482 = vld [vmem:[#allocation5 + $0xb68] sm:$0xff]
    %v483 = vld [vmem:[#allocation5 + $0xb70] sm:$0xff]
    %v484 = vld [vmem:[#allocation5 + $0xb78] sm:$0xff]
    %v485 = vld [vmem:[#allocation5 + $0xb80] sm:$0xff]
    %v486 = vld [vmem:[#allocation5 + $0xb88] sm:$0xff]
    %v487 = vld [vmem:[#allocation5 + $0xb90] sm:$0xff]
    %v488 = vld [vmem:[#allocation5 + $0xb98] sm:$0xff]
    %v489 = vld [vmem:[#allocation5 + $0xba0] sm:$0xff]
    %v490 = vld [vmem:[#allocation5 + $0xba8] sm:$0xff]
    %v491 = vld [vmem:[#allocation5 + $0xbb0] sm:$0xff]
    %v492 = vld [vmem:[#allocation5 + $0xbb8] sm:$0xff]
    %v493 = vld [vmem:[#allocation5 + $0xbc0] sm:$0xff]
    %v494 = vld [vmem:[#allocation5 + $0xbc8] sm:$0xff]
    %v495 = vld [vmem:[#allocation5 + $0xbd0] sm:$0xff]
    %v496 = vld [vmem:[#allocation5 + $0xbd8] sm:$0xff]
    %v497 = vld [vmem:[#allocation5 + $0xbe0] sm:$0xff]
    %v498 = vld [vmem:[#allocation5 + $0xbe8] sm:$0xff]
    %v499 = vld [vmem:[#allocation5 + $0xbf0] sm:$0xff]
    %v500 = vld [vmem:[#allocation5 + $0xbf8] sm:$0xff]
    %v501 = vld [vmem:[#allocation7] sm:$0xff]
    %v503 = vlaneseq
    %v504 = vshrl.u32 %v503, 7
    %v505 = vsub.s32 0, %v504
    %v506 = vrot.slane %v501, %v505
    %v507 = vlaneseq
    %v508 = vshrl.u32 %v507, 7
    %v509 = vsub.s32 1, %v508
    %v510 = vrot.slane %v501, %v509
    %v511 = vlaneseq
    %v512 = vshrl.u32 %v511, 7
    %v513 = vsub.s32 2, %v512
    %v514 = vrot.slane %v501, %v513
    %v515 = vlaneseq
    %v516 = vshrl.u32 %v515, 7
    %v517 = vsub.s32 3, %v516
    %v518 = vrot.slane %v501, %v517
    %v519 = vlaneseq
    %v520 = vshrl.u32 %v519, 7
    %v521 = vsub.s32 4, %v520
    %v522 = vrot.slane %v501, %v521
    %v523 = vlaneseq
    %v524 = vshrl.u32 %v523, 7
    %v525 = vsub.s32 5, %v524
    %v526 = vrot.slane %v501, %v525
    %v527 = vlaneseq
    %v528 = vshrl.u32 %v527, 7
    %v529 = vsub.s32 6, %v528
    %v530 = vrot.slane %v501, %v529
    %v531 = vlaneseq
    %v532 = vshrl.u32 %v531, 7
    %v533 = vsub.s32 7, %v532
    %v534 = vrot.slane %v501, %v533
    %543 = vmatprep.subr.mxu0 %v238
    %544 = vmatpush1.msra.mxu0 %v237
    %545 = vmatprep.subr.mxu0 %v230
    %546 = vmatpush1.msra.mxu0 %v229
    %547 = vmatprep.subr.mxu0 %v222
    %548 = vmatpush1.msra.mxu0 %v221
    %549 = vmatprep.subr.mxu0 %v214
    %550 = vmatpush1.msra.mxu0 %v213
    %551 = vmatprep.subr.mxu0 %v206
    %552 = vmatpush1.msra.mxu0 %v205
    %553 = vmatprep.subr.mxu0 %v198
    %554 = vmatpush1.msra.mxu0 %v197
    %555 = vmatprep.subr.mxu0 %v190
    %556 = vmatpush1.msra.mxu0 %v189
    %557 = vmatprep.subr.mxu0 %v182
    %558 = vmatpush1.msra.mxu0 %v181
    %559 = vmatprep.subr.mxu0 %v174
    %560 = vmatpush1.msra.mxu0 %v173
    %561 = vmatprep.subr.mxu0 %v166
    %562 = vmatpush1.msra.mxu0 %v165
    %563 = vmatprep.subr.mxu0 %v158
    %564 = vmatpush1.msra.mxu0 %v157
    %565 = vmatprep.subr.mxu0 %v150
    %566 = vmatpush1.msra.mxu0 %v149
    %567 = vmatprep.subr.mxu0 %v142
    %568 = vmatpush1.msra.mxu0 %v141
    %569 = vmatprep.subr.mxu0 %v134
    %570 = vmatpush1.msra.mxu0 %v133
    %571 = vmatprep.subr.mxu0 %v126
    %572 = vmatpush1.msra.mxu0 %v125
    %573 = vmatprep.subr.mxu0 %v118
    %574 = vmatpush1.msra.mxu0 %v117
    %575 = vmatprep.subr.mxu0 %v366
    %576 = vmatpush2.msra.mxu0 %v365
    %577 = vmatprep.subr.mxu0 %v358
    %578 = vmatpush2.msra.mxu0 %v357
    %579 = vmatprep.subr.mxu0 %v350
    %580 = vmatpush2.msra.mxu0 %v349
    %581 = vmatprep.subr.mxu0 %v342
    %582 = vmatpush2.msra.mxu0 %v341
    %583 = vmatprep.subr.mxu0 %v334
    %584 = vmatpush2.msra.mxu0 %v333
    %585 = vmatprep.subr.mxu0 %v326
    %586 = vmatpush2.msra.mxu0 %v325
    %587 = vmatprep.subr.mxu0 %v318
    %588 = vmatpush2.msra.mxu0 %v317
    %589 = vmatprep.subr.mxu0 %v310
    %590 = vmatpush2.msra.mxu0 %v309
    %591 = vmatprep.subr.mxu0 %v302
    %592 = vmatpush2.msra.mxu0 %v301
    %593 = vmatprep.subr.mxu0 %v294
    %594 = vmatpush2.msra.mxu0 %v293
    %595 = vmatprep.subr.mxu0 %v286
    %596 = vmatpush2.msra.mxu0 %v285
    %597 = vmatprep.subr.mxu0 %v278
    %598 = vmatpush2.msra.mxu0 %v277
    %599 = vmatprep.subr.mxu0 %v270
    %600 = vmatpush2.msra.mxu0 %v269
    %601 = vmatprep.subr.mxu0 %v262
    %602 = vmatpush2.msra.mxu0 %v261
    %603 = vmatprep.subr.mxu0 %v254
    %604 = vmatpush2.msra.mxu0 %v253
    %605 = vmatprep.subr.mxu0 %v246
    %606 = vmatpush2.msra.mxu0 %v245
    %607 = vmatprep.mubr.f32.mxu0 %v115
    %608 = vmatmul.mubr.f32.gmra.mxu0 %v114
    %v609 = vpop.f32.mrf.mxu0
    %v610 = vadd.f32 %v506, %v609
    %v611 = vpop.f32.mrf.mxu0
    %v612 = vadd.f32 %v510, %v611
    %613 = vdwg.mxu0
    %614 = vmatprep.subr.mxu0 %v494
    %615 = vmatpush1.msra.mxu0 %v493
    %616 = vmatprep.subr.mxu0 %v486
    %617 = vmatpush1.msra.mxu0 %v485
    %618 = vmatprep.subr.mxu0 %v478
    %619 = vmatpush1.msra.mxu0 %v477
    %620 = vmatprep.subr.mxu0 %v470
    %621 = vmatpush1.msra.mxu0 %v469
    %622 = vmatprep.subr.mxu0 %v462
    %623 = vmatpush1.msra.mxu0 %v461
    %624 = vmatprep.subr.mxu0 %v454
    %625 = vmatpush1.msra.mxu0 %v453
    %626 = vmatprep.subr.mxu0 %v446
    %627 = vmatpush1.msra.mxu0 %v445
    %628 = vmatprep.subr.mxu0 %v438
    %629 = vmatpush1.msra.mxu0 %v437
    %630 = vmatprep.subr.mxu0 %v430
    %631 = vmatpush1.msra.mxu0 %v429
    %632 = vmatprep.subr.mxu0 %v422
    %633 = vmatpush1.msra.mxu0 %v421
    %634 = vmatprep.subr.mxu0 %v414
    %635 = vmatpush1.msra.mxu0 %v413
    %636 = vmatprep.subr.mxu0 %v406
    %637 = vmatpush1.msra.mxu0 %v405
    %638 = vmatprep.subr.mxu0 %v398
    %639 = vmatpush1.msra.mxu0 %v397
    %640 = vmatprep.subr.mxu0 %v390
    %641 = vmatpush1.msra.mxu0 %v389
    %642 = vmatprep.subr.mxu0 %v382
    %643 = vmatpush1.msra.mxu0 %v381
    %644 = vmatprep.subr.mxu0 %v374
    %645 = vmatpush1.msra.mxu0 %v373
    %646 = vmatprep.subr.mxu0 0.0
    %647 = vmatpush2.msra.mxu0 0.0
    %648 = vmatprep.subr.mxu0 0.0
    %649 = vmatpush2.msra.mxu0 0.0
    %650 = vmatprep.subr.mxu0 0.0
    %651 = vmatpush2.msra.mxu0 0.0
    %652 = vmatprep.subr.mxu0 0.0
    %653 = vmatpush2.msra.mxu0 0.0
    %654 = vmatprep.subr.mxu0 0.0
    %655 = vmatpush2.msra.mxu0 0.0
    %656 = vmatprep.subr.mxu0 0.0
    %657 = vmatpush2.msra.mxu0 0.0
    %658 = vmatprep.subr.mxu0 0.0
    %659 = vmatpush2.msra.mxu0 0.0
    %660 = vmatprep.subr.mxu0 0.0
    %661 = vmatpush2.msra.mxu0 0.0
    %662 = vmatprep.subr.mxu0 0.0
    %663 = vmatpush2.msra.mxu0 0.0
    %664 = vmatprep.subr.mxu0 0.0
    %665 = vmatpush2.msra.mxu0 0.0
    %666 = vmatprep.subr.mxu0 0.0
    %667 = vmatpush2.msra.mxu0 0.0
    %668 = vmatprep.subr.mxu0 0.0
    %669 = vmatpush2.msra.mxu0 0.0
    %670 = vmatprep.subr.mxu0 0.0
    %671 = vmatpush2.msra.mxu0 0.0
    %672 = vmatprep.subr.mxu0 0.0
    %673 = vmatpush2.msra.mxu0 0.0
    %674 = vmatprep.subr.mxu0 0.0
    %675 = vmatpush2.msra.mxu0 0.0
    %676 = vmatprep.subr.mxu0 0.0
    %677 = vmatpush2.msra.mxu0 0.0
    %678 = vmatprep.mubr.f32.mxu0 0.0
    %679 = vmatmul.mubr.f32.gmra.mxu0 %v116
    %v680 = vpop.f32.mrf.mxu0
    %v681 = vadd.f32 %v610, %v680
    %v682 = vpop.f32.mrf.mxu0
    %v683 = vadd.f32 %v612, %v682
    %684 = vdwg.mxu0
    %685 = vmatprep.subr.mxu0 %v240
    %686 = vmatpush1.msra.mxu0 %v239
    %687 = vmatprep.subr.mxu0 %v232
    %688 = vmatpush1.msra.mxu0 %v231
    %689 = vmatprep.subr.mxu0 %v224
    %690 = vmatpush1.msra.mxu0 %v223
    %691 = vmatprep.subr.mxu0 %v216
    %692 = vmatpush1.msra.mxu0 %v215
    %693 = vmatprep.subr.mxu0 %v208
    %694 = vmatpush1.msra.mxu0 %v207
    %695 = vmatprep.subr.mxu0 %v200
    %696 = vmatpush1.msra.mxu0 %v199
    %697 = vmatprep.subr.mxu0 %v192
    %698 = vmatpush1.msra.mxu0 %v191
    %699 = vmatprep.subr.mxu0 %v184
    %700 = vmatpush1.msra.mxu0 %v183
    %701 = vmatprep.subr.mxu0 %v176
    %702 = vmatpush1.msra.mxu0 %v175
    %703 = vmatprep.subr.mxu0 %v168
    %704 = vmatpush1.msra.mxu0 %v167
    %705 = vmatprep.subr.mxu0 %v160
    %706 = vmatpush1.msra.mxu0 %v159
    %707 = vmatprep.subr.mxu0 %v152
    %708 = vmatpush1.msra.mxu0 %v151
    %709 = vmatprep.subr.mxu0 %v144
    %710 = vmatpush1.msra.mxu0 %v143
    %711 = vmatprep.subr.mxu0 %v136
    %712 = vmatpush1.msra.mxu0 %v135
    %713 = vmatprep.subr.mxu0 %v128
    %714 = vmatpush1.msra.mxu0 %v127
    %715 = vmatprep.subr.mxu0 %v120
    %716 = vmatpush1.msra.mxu0 %v119
    %717 = vmatprep.subr.mxu0 %v368
    %718 = vmatpush2.msra.mxu0 %v367
    %719 = vmatprep.subr.mxu0 %v360
    %720 = vmatpush2.msra.mxu0 %v359
    %721 = vmatprep.subr.mxu0 %v352
    %722 = vmatpush2.msra.mxu0 %v351
    %723 = vmatprep.subr.mxu0 %v344
    %724 = vmatpush2.msra.mxu0 %v343
    %725 = vmatprep.subr.mxu0 %v336
    %726 = vmatpush2.msra.mxu0 %v335
    %727 = vmatprep.subr.mxu0 %v328
    %728 = vmatpush2.msra.mxu0 %v327
    %729 = vmatprep.subr.mxu0 %v320
    %730 = vmatpush2.msra.mxu0 %v319
    %731 = vmatprep.subr.mxu0 %v312
    %732 = vmatpush2.msra.mxu0 %v311
    %733 = vmatprep.subr.mxu0 %v304
    %734 = vmatpush2.msra.mxu0 %v303
    %735 = vmatprep.subr.mxu0 %v296
    %736 = vmatpush2.msra.mxu0 %v295
    %737 = vmatprep.subr.mxu0 %v288
    %738 = vmatpush2.msra.mxu0 %v287
    %739 = vmatprep.subr.mxu0 %v280
    %740 = vmatpush2.msra.mxu0 %v279
    %741 = vmatprep.subr.mxu0 %v272
    %742 = vmatpush2.msra.mxu0 %v271
    %743 = vmatprep.subr.mxu0 %v264
    %744 = vmatpush2.msra.mxu0 %v263
    %745 = vmatprep.subr.mxu0 %v256
    %746 = vmatpush2.msra.mxu0 %v255
    %747 = vmatprep.subr.mxu0 %v248
    %748 = vmatpush2.msra.mxu0 %v247
    %749 = vmatprep.mubr.f32.mxu0 %v115
    %750 = vmatmul.mubr.f32.gmra.mxu0 %v114
    %v751 = vpop.f32.mrf.mxu0
    %v752 = vadd.f32 %v514, %v751
    %v753 = vpop.f32.mrf.mxu0
    %v754 = vadd.f32 %v518, %v753
    %755 = vdwg.mxu0
    %756 = vmatprep.subr.mxu0 %v496
    %757 = vmatpush1.msra.mxu0 %v495
    %758 = vmatprep.subr.mxu0 %v488
    %759 = vmatpush1.msra.mxu0 %v487
    %760 = vmatprep.subr.mxu0 %v480
    %761 = vmatpush1.msra.mxu0 %v479
    %762 = vmatprep.subr.mxu0 %v472
    %763 = vmatpush1.msra.mxu0 %v471
    %764 = vmatprep.subr.mxu0 %v464
    %765 = vmatpush1.msra.mxu0 %v463
    %766 = vmatprep.subr.mxu0 %v456
    %767 = vmatpush1.msra.mxu0 %v455
    %768 = vmatprep.subr.mxu0 %v448
    %769 = vmatpush1.msra.mxu0 %v447
    %770 = vmatprep.subr.mxu0 %v440
    %771 = vmatpush1.msra.mxu0 %v439
    %772 = vmatprep.subr.mxu0 %v432
    %773 = vmatpush1.msra.mxu0 %v431
    %774 = vmatprep.subr.mxu0 %v424
    %775 = vmatpush1.msra.mxu0 %v423
    %776 = vmatprep.subr.mxu0 %v416
    %777 = vmatpush1.msra.mxu0 %v415
    %778 = vmatprep.subr.mxu0 %v408
    %779 = vmatpush1.msra.mxu0 %v407
    %780 = vmatprep.subr.mxu0 %v400
    %781 = vmatpush1.msra.mxu0 %v399
    %782 = vmatprep.subr.mxu0 %v392
    %783 = vmatpush1.msra.mxu0 %v391
    %784 = vmatprep.subr.mxu0 %v384
    %785 = vmatpush1.msra.mxu0 %v383
    %786 = vmatprep.subr.mxu0 %v376
    %787 = vmatpush1.msra.mxu0 %v375
    %788 = vmatprep.subr.mxu0 0.0
    %789 = vmatpush2.msra.mxu0 0.0
    %790 = vmatprep.subr.mxu0 0.0
    %791 = vmatpush2.msra.mxu0 0.0
    %792 = vmatprep.subr.mxu0 0.0
    %793 = vmatpush2.msra.mxu0 0.0
    %794 = vmatprep.subr.mxu0 0.0
    %795 = vmatpush2.msra.mxu0 0.0
    %796 = vmatprep.subr.mxu0 0.0
    %797 = vmatpush2.msra.mxu0 0.0
    %798 = vmatprep.subr.mxu0 0.0
    %799 = vmatpush2.msra.mxu0 0.0
    %800 = vmatprep.subr.mxu0 0.0
    %801 = vmatpush2.msra.mxu0 0.0
    %802 = vmatprep.subr.mxu0 0.0
    %803 = vmatpush2.msra.mxu0 0.0
    %804 = vmatprep.subr.mxu0 0.0
    %805 = vmatpush2.msra.mxu0 0.0
    %806 = vmatprep.subr.mxu0 0.0
    %807 = vmatpush2.msra.mxu0 0.0
    %808 = vmatprep.subr.mxu0 0.0
    %809 = vmatpush2.msra.mxu0 0.0
    %810 = vmatprep.subr.mxu0 0.0
    %811 = vmatpush2.msra.mxu0 0.0
    %812 = vmatprep.subr.mxu0 0.0
    %813 = vmatpush2.msra.mxu0 0.0
    %814 = vmatprep.subr.mxu0 0.0
    %815 = vmatpush2.msra.mxu0 0.0
    %816 = vmatprep.subr.mxu0 0.0
    %817 = vmatpush2.msra.mxu0 0.0
    %818 = vmatprep.subr.mxu0 0.0
    %819 = vmatpush2.msra.mxu0 0.0
    %820 = vmatprep.mubr.f32.mxu0 0.0
    %821 = vmatmul.mubr.f32.gmra.mxu0 %v116
    %v822 = vpop.f32.mrf.mxu0
    %v823 = vadd.f32 %v752, %v822
    %v824 = vpop.f32.mrf.mxu0
    %v825 = vadd.f32 %v754, %v824
    %826 = vdwg.mxu0
    %827 = vmatprep.subr.mxu0 %v242
    %828 = vmatpush1.msra.mxu0 %v241
    %829 = vmatprep.subr.mxu0 %v234
    %830 = vmatpush1.msra.mxu0 %v233
    %831 = vmatprep.subr.mxu0 %v226
    %832 = vmatpush1.msra.mxu0 %v225
    %833 = vmatprep.subr.mxu0 %v218
    %834 = vmatpush1.msra.mxu0 %v217
    %835 = vmatprep.subr.mxu0 %v210
    %836 = vmatpush1.msra.mxu0 %v209
    %837 = vmatprep.subr.mxu0 %v202
    %838 = vmatpush1.msra.mxu0 %v201
    %839 = vmatprep.subr.mxu0 %v194
    %840 = vmatpush1.msra.mxu0 %v193
    %841 = vmatprep.subr.mxu0 %v186
    %842 = vmatpush1.msra.mxu0 %v185
    %843 = vmatprep.subr.mxu0 %v178
    %844 = vmatpush1.msra.mxu0 %v177
    %845 = vmatprep.subr.mxu0 %v170
    %846 = vmatpush1.msra.mxu0 %v169
    %847 = vmatprep.subr.mxu0 %v162
    %848 = vmatpush1.msra.mxu0 %v161
    %849 = vmatprep.subr.mxu0 %v154
    %850 = vmatpush1.msra.mxu0 %v153
    %851 = vmatprep.subr.mxu0 %v146
    %852 = vmatpush1.msra.mxu0 %v145
    %853 = vmatprep.subr.mxu0 %v138
    %854 = vmatpush1.msra.mxu0 %v137
    %855 = vmatprep.subr.mxu0 %v130
    %856 = vmatpush1.msra.mxu0 %v129
    %857 = vmatprep.subr.mxu0 %v122
    %858 = vmatpush1.msra.mxu0 %v121
    %859 = vmatprep.subr.mxu0 %v370
    %860 = vmatpush2.msra.mxu0 %v369
    %861 = vmatprep.subr.mxu0 %v362
    %862 = vmatpush2.msra.mxu0 %v361
    %863 = vmatprep.subr.mxu0 %v354
    %864 = vmatpush2.msra.mxu0 %v353
    %865 = vmatprep.subr.mxu0 %v346
    %866 = vmatpush2.msra.mxu0 %v345
    %867 = vmatprep.subr.mxu0 %v338
    %868 = vmatpush2.msra.mxu0 %v337
    %869 = vmatprep.subr.mxu0 %v330
    %870 = vmatpush2.msra.mxu0 %v329
    %871 = vmatprep.subr.mxu0 %v322
    %872 = vmatpush2.msra.mxu0 %v321
    %873 = vmatprep.subr.mxu0 %v314
    %874 = vmatpush2.msra.mxu0 %v313
    %875 = vmatprep.subr.mxu0 %v306
    %876 = vmatpush2.msra.mxu0 %v305
    %877 = vmatprep.subr.mxu0 %v298
    %878 = vmatpush2.msra.mxu0 %v297
    %879 = vmatprep.subr.mxu0 %v290
    %880 = vmatpush2.msra.mxu0 %v289
    %881 = vmatprep.subr.mxu0 %v282
    %882 = vmatpush2.msra.mxu0 %v281
    %883 = vmatprep.subr.mxu0 %v274
    %884 = vmatpush2.msra.mxu0 %v273
    %885 = vmatprep.subr.mxu0 %v266
    %886 = vmatpush2.msra.mxu0 %v265
    %887 = vmatprep.subr.mxu0 %v258
    %888 = vmatpush2.msra.mxu0 %v257
    %889 = vmatprep.subr.mxu0 %v250
    %890 = vmatpush2.msra.mxu0 %v249
    %891 = vmatprep.mubr.f32.mxu0 %v115
    %892 = vmatmul.mubr.f32.gmra.mxu0 %v114
    %v893 = vpop.f32.mrf.mxu0
    %v894 = vadd.f32 %v522, %v893
    %v895 = vpop.f32.mrf.mxu0
    %v896 = vadd.f32 %v526, %v895
    %897 = vdwg.mxu0
    %898 = vmatprep.subr.mxu0 %v498
    %899 = vmatpush1.msra.mxu0 %v497
    %900 = vmatprep.subr.mxu0 %v490
    %901 = vmatpush1.msra.mxu0 %v489
    %902 = vmatprep.subr.mxu0 %v482
    %903 = vmatpush1.msra.mxu0 %v481
    %904 = vmatprep.subr.mxu0 %v474
    %905 = vmatpush1.msra.mxu0 %v473
    %906 = vmatprep.subr.mxu0 %v466
    %907 = vmatpush1.msra.mxu0 %v465
    %908 = vmatprep.subr.mxu0 %v458
    %909 = vmatpush1.msra.mxu0 %v457
    %910 = vmatprep.subr.mxu0 %v450
    %911 = vmatpush1.msra.mxu0 %v449
    %912 = vmatprep.subr.mxu0 %v442
    %913 = vmatpush1.msra.mxu0 %v441
    %914 = vmatprep.subr.mxu0 %v434
    %915 = vmatpush1.msra.mxu0 %v433
    %916 = vmatprep.subr.mxu0 %v426
    %917 = vmatpush1.msra.mxu0 %v425
    %918 = vmatprep.subr.mxu0 %v418
    %919 = vmatpush1.msra.mxu0 %v417
    %920 = vmatprep.subr.mxu0 %v410
    %921 = vmatpush1.msra.mxu0 %v409
    %922 = vmatprep.subr.mxu0 %v402
    %923 = vmatpush1.msra.mxu0 %v401
    %924 = vmatprep.subr.mxu0 %v394
    %925 = vmatpush1.msra.mxu0 %v393
    %926 = vmatprep.subr.mxu0 %v386
    %927 = vmatpush1.msra.mxu0 %v385
    %928 = vmatprep.subr.mxu0 %v378
    %929 = vmatpush1.msra.mxu0 %v377
    %930 = vmatprep.subr.mxu0 0.0
    %931 = vmatpush2.msra.mxu0 0.0
    %932 = vmatprep.subr.mxu0 0.0
    %933 = vmatpush2.msra.mxu0 0.0
    %934 = vmatprep.subr.mxu0 0.0
    %935 = vmatpush2.msra.mxu0 0.0
    %936 = vmatprep.subr.mxu0 0.0
    %937 = vmatpush2.msra.mxu0 0.0
    %938 = vmatprep.subr.mxu0 0.0
    %939 = vmatpush2.msra.mxu0 0.0
    %940 = vmatprep.subr.mxu0 0.0
    %941 = vmatpush2.msra.mxu0 0.0
    %942 = vmatprep.subr.mxu0 0.0
    %943 = vmatpush2.msra.mxu0 0.0
    %944 = vmatprep.subr.mxu0 0.0
    %945 = vmatpush2.msra.mxu0 0.0
    %946 = vmatprep.subr.mxu0 0.0
    %947 = vmatpush2.msra.mxu0 0.0
    %948 = vmatprep.subr.mxu0 0.0
    %949 = vmatpush2.msra.mxu0 0.0
    %950 = vmatprep.subr.mxu0 0.0
    %951 = vmatpush2.msra.mxu0 0.0
    %952 = vmatprep.subr.mxu0 0.0
    %953 = vmatpush2.msra.mxu0 0.0
    %954 = vmatprep.subr.mxu0 0.0
    %955 = vmatpush2.msra.mxu0 0.0
    %956 = vmatprep.subr.mxu0 0.0
    %957 = vmatpush2.msra.mxu0 0.0
    %958 = vmatprep.subr.mxu0 0.0
    %959 = vmatpush2.msra.mxu0 0.0
    %960 = vmatprep.subr.mxu0 0.0
    %961 = vmatpush2.msra.mxu0 0.0
    %962 = vmatprep.mubr.f32.mxu0 0.0
    %963 = vmatmul.mubr.f32.gmra.mxu0 %v116
    %v964 = vpop.f32.mrf.mxu0
    %v965 = vadd.f32 %v894, %v964
    %v966 = vpop.f32.mrf.mxu0
    %v967 = vadd.f32 %v896, %v966
    %968 = vdwg.mxu0
    %969 = vmatprep.subr.mxu0 %v244
    %970 = vmatpush1.msra.mxu0 %v243
    %971 = vmatprep.subr.mxu0 %v236
    %972 = vmatpush1.msra.mxu0 %v235
    %973 = vmatprep.subr.mxu0 %v228
    %974 = vmatpush1.msra.mxu0 %v227
    %975 = vmatprep.subr.mxu0 %v220
    %976 = vmatpush1.msra.mxu0 %v219
    %977 = vmatprep.subr.mxu0 %v212
    %978 = vmatpush1.msra.mxu0 %v211
    %979 = vmatprep.subr.mxu0 %v204
    %980 = vmatpush1.msra.mxu0 %v203
    %981 = vmatprep.subr.mxu0 %v196
    %982 = vmatpush1.msra.mxu0 %v195
    %983 = vmatprep.subr.mxu0 %v188
    %984 = vmatpush1.msra.mxu0 %v187
    %985 = vmatprep.subr.mxu0 %v180
    %986 = vmatpush1.msra.mxu0 %v179
    %987 = vmatprep.subr.mxu0 %v172
    %988 = vmatpush1.msra.mxu0 %v171
    %989 = vmatprep.subr.mxu0 %v164
    %990 = vmatpush1.msra.mxu0 %v163
    %991 = vmatprep.subr.mxu0 %v156
    %992 = vmatpush1.msra.mxu0 %v155
    %993 = vmatprep.subr.mxu0 %v148
    %994 = vmatpush1.msra.mxu0 %v147
    %995 = vmatprep.subr.mxu0 %v140
    %996 = vmatpush1.msra.mxu0 %v139
    %997 = vmatprep.subr.mxu0 %v132
    %998 = vmatpush1.msra.mxu0 %v131
    %999 = vmatprep.subr.mxu0 %v124
    %1000 = vmatpush1.msra.mxu0 %v123
    %1001 = vmatprep.subr.mxu0 %v372
    %1002 = vmatpush2.msra.mxu0 %v371
    %1003 = vmatprep.subr.mxu0 %v364
    %1004 = vmatpush2.msra.mxu0 %v363
    %1005 = vmatprep.subr.mxu0 %v356
    %1006 = vmatpush2.msra.mxu0 %v355
    %1007 = vmatprep.subr.mxu0 %v348
    %1008 = vmatpush2.msra.mxu0 %v347
    %1009 = vmatprep.subr.mxu0 %v340
    %1010 = vmatpush2.msra.mxu0 %v339
    %1011 = vmatprep.subr.mxu0 %v332
    %1012 = vmatpush2.msra.mxu0 %v331
    %1013 = vmatprep.subr.mxu0 %v324
    %1014 = vmatpush2.msra.mxu0 %v323
    %1015 = vmatprep.subr.mxu0 %v316
    %1016 = vmatpush2.msra.mxu0 %v315
    %1017 = vmatprep.subr.mxu0 %v308
    %1018 = vmatpush2.msra.mxu0 %v307
    %1019 = vmatprep.subr.mxu0 %v300
    %1020 = vmatpush2.msra.mxu0 %v299
    %1021 = vmatprep.subr.mxu0 %v292
    %1022 = vmatpush2.msra.mxu0 %v291
    %1023 = vmatprep.subr.mxu0 %v284
    %1024 = vmatpush2.msra.mxu0 %v283
    %1025 = vmatprep.subr.mxu0 %v276
    %1026 = vmatpush2.msra.mxu0 %v275
    %1027 = vmatprep.subr.mxu0 %v268
    %1028 = vmatpush2.msra.mxu0 %v267
    %1029 = vmatprep.subr.mxu0 %v260
    %1030 = vmatpush2.msra.mxu0 %v259
    %1031 = vmatprep.subr.mxu0 %v252
    %1032 = vmatpush2.msra.mxu0 %v251
    %1033 = vmatprep.mubr.f32.mxu0 %v115
    %1034 = vmatmul.mubr.f32.gmra.mxu0 %v114
    %v1035 = vpop.f32.mrf.mxu0
    %v1036 = vadd.f32 %v530, %v1035
    %v1037 = vpop.f32.mrf.mxu0
    %v1038 = vadd.f32 %v534, %v1037
    %1039 = vdwg.mxu0
    %1040 = vmatprep.subr.mxu0 %v500
    %1041 = vmatpush1.msra.mxu0 %v499
    %1042 = vmatprep.subr.mxu0 %v492
    %1043 = vmatpush1.msra.mxu0 %v491
    %1044 = vmatprep.subr.mxu0 %v484
    %1045 = vmatpush1.msra.mxu0 %v483
    %1046 = vmatprep.subr.mxu0 %v476
    %1047 = vmatpush1.msra.mxu0 %v475
    %1048 = vmatprep.subr.mxu0 %v468
    %1049 = vmatpush1.msra.mxu0 %v467
    %1050 = vmatprep.subr.mxu0 %v460
    %1051 = vmatpush1.msra.mxu0 %v459
    %1052 = vmatprep.subr.mxu0 %v452
    %1053 = vmatpush1.msra.mxu0 %v451
    %1054 = vmatprep.subr.mxu0 %v444
    %1055 = vmatpush1.msra.mxu0 %v443
    %1056 = vmatprep.subr.mxu0 %v436
    %1057 = vmatpush1.msra.mxu0 %v435
    %1058 = vmatprep.subr.mxu0 %v428
    %1059 = vmatpush1.msra.mxu0 %v427
    %1060 = vmatprep.subr.mxu0 %v420
    %1061 = vmatpush1.msra.mxu0 %v419
    %1062 = vmatprep.subr.mxu0 %v412
    %1063 = vmatpush1.msra.mxu0 %v411
    %1064 = vmatprep.subr.mxu0 %v404
    %1065 = vmatpush1.msra.mxu0 %v403
    %1066 = vmatprep.subr.mxu0 %v396
    %1067 = vmatpush1.msra.mxu0 %v395
    %1068 = vmatprep.subr.mxu0 %v388
    %1069 = vmatpush1.msra.mxu0 %v387
    %1070 = vmatprep.subr.mxu0 %v380
    %1071 = vmatpush1.msra.mxu0 %v379
    %1072 = vmatprep.subr.mxu0 0.0
    %1073 = vmatpush2.msra.mxu0 0.0
    %1074 = vmatprep.subr.mxu0 0.0
    %1075 = vmatpush2.msra.mxu0 0.0
    %1076 = vmatprep.subr.mxu0 0.0
    %1077 = vmatpush2.msra.mxu0 0.0
    %1078 = vmatprep.subr.mxu0 0.0
    %1079 = vmatpush2.msra.mxu0 0.0
    %1080 = vmatprep.subr.mxu0 0.0
    %1081 = vmatpush2.msra.mxu0 0.0
    %1082 = vmatprep.subr.mxu0 0.0
    %1083 = vmatpush2.msra.mxu0 0.0
    %1084 = vmatprep.subr.mxu0 0.0
    %1085 = vmatpush2.msra.mxu0 0.0
    %1086 = vmatprep.subr.mxu0 0.0
    %1087 = vmatpush2.msra.mxu0 0.0
    %1088 = vmatprep.subr.mxu0 0.0
    %1089 = vmatpush2.msra.mxu0 0.0
    %1090 = vmatprep.subr.mxu0 0.0
    %1091 = vmatpush2.msra.mxu0 0.0
    %1092 = vmatprep.subr.mxu0 0.0
    %1093 = vmatpush2.msra.mxu0 0.0
    %1094 = vmatprep.subr.mxu0 0.0
    %1095 = vmatpush2.msra.mxu0 0.0
    %1096 = vmatprep.subr.mxu0 0.0
    %1097 = vmatpush2.msra.mxu0 0.0
    %1098 = vmatprep.subr.mxu0 0.0
    %1099 = vmatpush2.msra.mxu0 0.0
    %1100 = vmatprep.subr.mxu0 0.0
    %1101 = vmatpush2.msra.mxu0 0.0
    %1102 = vmatprep.subr.mxu0 0.0
    %1103 = vmatpush2.msra.mxu0 0.0
    %1104 = vmatprep.mubr.f32.mxu0 0.0
    %1105 = vmatmul.mubr.f32.gmra.mxu0 %v116
    %v1106 = vpop.f32.mrf.mxu0
    %v1107 = vadd.f32 %v1036, %v1106
    %v1108 = vpop.f32.mrf.mxu0
    %v1109 = vadd.f32 %v1038, %v1108
    %1110 = vdwg.mxu0
    %v1111 = vmax.f32 %v681, 0.0
    %v1112 = vmax.f32 %v683, 0.0
    %v1113 = vmax.f32 %v823, 0.0
    %v1114 = vmax.f32 %v825, 0.0
    %v1115 = vmax.f32 %v965, 0.0
    %v1116 = vmax.f32 %v967, 0.0
    %v1117 = vmax.f32 %v1107, 0.0
    %v1118 = vmax.f32 %v1109, 0.0
    %v1119 = vld [vmem:[#allocation8] sm:$0xff]
    %v1120 = vld [vmem:[#allocation8 + $0x8] sm:$0xff]
    %v1121 = vld [vmem:[#allocation8 + $0x10] sm:$0xff]
    %v1122 = vld [vmem:[#allocation8 + $0x18] sm:$0xff]
    %v1123 = vld [vmem:[#allocation8 + $0x20] sm:$0xff]
    %v1124 = vld [vmem:[#allocation8 + $0x28] sm:$0xff]
    %v1125 = vld [vmem:[#allocation8 + $0x30] sm:$0xff]
    %v1126 = vld [vmem:[#allocation8 + $0x38] sm:$0xff]
    %v1127 = vld [vmem:[#allocation8 + $0x40] sm:$0xff]
    %v1128 = vld [vmem:[#allocation8 + $0x48] sm:$0xff]
    %v1129 = vld [vmem:[#allocation8 + $0x50] sm:$0xff]
    %v1130 = vld [vmem:[#allocation8 + $0x58] sm:$0xff]
    %v1131 = vld [vmem:[#allocation8 + $0x60] sm:$0xff]
    %v1132 = vld [vmem:[#allocation8 + $0x68] sm:$0xff]
    %v1133 = vld [vmem:[#allocation8 + $0x70] sm:$0xff]
    %v1134 = vld [vmem:[#allocation8 + $0x78] sm:$0xff]
    %v1135 = vld [vmem:[#allocation8 + $0x80] sm:$0xff]
    %v1136 = vld [vmem:[#allocation8 + $0x88] sm:$0xff]
    %v1137 = vld [vmem:[#allocation8 + $0x90] sm:$0xff]
    %v1138 = vld [vmem:[#allocation8 + $0x98] sm:$0xff]
    %v1139 = vld [vmem:[#allocation8 + $0xa0] sm:$0xff]
    %v1140 = vld [vmem:[#allocation8 + $0xa8] sm:$0xff]
    %v1141 = vld [vmem:[#allocation8 + $0xb0] sm:$0xff]
    %v1142 = vld [vmem:[#allocation8 + $0xb8] sm:$0xff]
    %v1143 = vld [vmem:[#allocation8 + $0xc0] sm:$0xff]
    %v1144 = vld [vmem:[#allocation8 + $0xc8] sm:$0xff]
    %v1145 = vld [vmem:[#allocation8 + $0xd0] sm:$0xff]
    %v1146 = vld [vmem:[#allocation8 + $0xd8] sm:$0xff]
    %v1147 = vld [vmem:[#allocation8 + $0xe0] sm:$0xff]
    %v1148 = vld [vmem:[#allocation8 + $0xe8] sm:$0xff]
    %v1149 = vld [vmem:[#allocation8 + $0xf0] sm:$0xff]
    %v1150 = vld [vmem:[#allocation8 + $0xf8] sm:$0xff]
    %v1151 = vld [vmem:[#allocation8 + $0x100] sm:$0xff]
    %v1152 = vld [vmem:[#allocation8 + $0x108] sm:$0xff]
    %v1153 = vld [vmem:[#allocation8 + $0x110] sm:$0xff]
    %v1154 = vld [vmem:[#allocation8 + $0x118] sm:$0xff]
    %v1155 = vld [vmem:[#allocation8 + $0x120] sm:$0xff]
    %v1156 = vld [vmem:[#allocation8 + $0x128] sm:$0xff]
    %v1157 = vld [vmem:[#allocation8 + $0x130] sm:$0xff]
    %v1158 = vld [vmem:[#allocation8 + $0x138] sm:$0xff]
    %v1159 = vld [vmem:[#allocation8 + $0x140] sm:$0xff]
    %v1160 = vld [vmem:[#allocation8 + $0x148] sm:$0xff]
    %v1161 = vld [vmem:[#allocation8 + $0x150] sm:$0xff]
    %v1162 = vld [vmem:[#allocation8 + $0x158] sm:$0xff]
    %v1163 = vld [vmem:[#allocation8 + $0x160] sm:$0xff]
    %v1164 = vld [vmem:[#allocation8 + $0x168] sm:$0xff]
    %v1165 = vld [vmem:[#allocation8 + $0x170] sm:$0xff]
    %v1166 = vld [vmem:[#allocation8 + $0x178] sm:$0xff]
    %v1167 = vld [vmem:[#allocation8 + $0x180] sm:$0xff]
    %v1168 = vld [vmem:[#allocation8 + $0x188] sm:$0xff]
    %v1169 = vld [vmem:[#allocation8 + $0x190] sm:$0xff]
    %v1170 = vld [vmem:[#allocation8 + $0x198] sm:$0xff]
    %v1171 = vld [vmem:[#allocation8 + $0x1a0] sm:$0xff]
    %v1172 = vld [vmem:[#allocation8 + $0x1a8] sm:$0xff]
    %v1173 = vld [vmem:[#allocation8 + $0x1b0] sm:$0xff]
    %v1174 = vld [vmem:[#allocation8 + $0x1b8] sm:$0xff]
    %v1175 = vld [vmem:[#allocation8 + $0x1c0] sm:$0xff]
    %v1176 = vld [vmem:[#allocation8 + $0x1c8] sm:$0xff]
    %v1177 = vld [vmem:[#allocation8 + $0x1d0] sm:$0xff]
    %v1178 = vld [vmem:[#allocation8 + $0x1d8] sm:$0xff]
    %v1179 = vld [vmem:[#allocation8 + $0x1e0] sm:$0xff]
    %v1180 = vld [vmem:[#allocation8 + $0x1e8] sm:$0xff]
    %v1181 = vld [vmem:[#allocation8 + $0x1f0] sm:$0xff]
    %v1182 = vld [vmem:[#allocation8 + $0x1f8] sm:$0xff]
    %v1183 = vld [vmem:[#allocation8 + $0x200] sm:$0xff]
    %v1184 = vld [vmem:[#allocation8 + $0x208] sm:$0xff]
    %v1185 = vld [vmem:[#allocation8 + $0x210] sm:$0xff]
    %v1186 = vld [vmem:[#allocation8 + $0x218] sm:$0xff]
    %v1187 = vld [vmem:[#allocation8 + $0x220] sm:$0xff]
    %v1188 = vld [vmem:[#allocation8 + $0x228] sm:$0xff]
    %v1189 = vld [vmem:[#allocation8 + $0x230] sm:$0xff]
    %v1190 = vld [vmem:[#allocation8 + $0x238] sm:$0xff]
    %v1191 = vld [vmem:[#allocation8 + $0x240] sm:$0xff]
    %v1192 = vld [vmem:[#allocation8 + $0x248] sm:$0xff]
    %v1193 = vld [vmem:[#allocation8 + $0x250] sm:$0xff]
    %v1194 = vld [vmem:[#allocation8 + $0x258] sm:$0xff]
    %v1195 = vld [vmem:[#allocation8 + $0x260] sm:$0xff]
    %v1196 = vld [vmem:[#allocation8 + $0x268] sm:$0xff]
    %v1197 = vld [vmem:[#allocation8 + $0x270] sm:$0xff]
    %v1198 = vld [vmem:[#allocation8 + $0x278] sm:$0xff]
    %v1199 = vld [vmem:[#allocation8 + $0x280] sm:$0xff]
    %v1200 = vld [vmem:[#allocation8 + $0x288] sm:$0xff]
    %v1201 = vld [vmem:[#allocation8 + $0x290] sm:$0xff]
    %v1202 = vld [vmem:[#allocation8 + $0x298] sm:$0xff]
    %v1203 = vld [vmem:[#allocation8 + $0x2a0] sm:$0xff]
    %v1204 = vld [vmem:[#allocation8 + $0x2a8] sm:$0xff]
    %v1205 = vld [vmem:[#allocation8 + $0x2b0] sm:$0xff]
    %v1206 = vld [vmem:[#allocation8 + $0x2b8] sm:$0xff]
    %v1207 = vld [vmem:[#allocation8 + $0x2c0] sm:$0xff]
    %v1208 = vld [vmem:[#allocation8 + $0x2c8] sm:$0xff]
    %v1209 = vld [vmem:[#allocation8 + $0x2d0] sm:$0xff]
    %v1210 = vld [vmem:[#allocation8 + $0x2d8] sm:$0xff]
    %v1211 = vld [vmem:[#allocation8 + $0x2e0] sm:$0xff]
    %v1212 = vld [vmem:[#allocation8 + $0x2e8] sm:$0xff]
    %v1213 = vld [vmem:[#allocation8 + $0x2f0] sm:$0xff]
    %v1214 = vld [vmem:[#allocation8 + $0x2f8] sm:$0xff]
    %v1215 = vld [vmem:[#allocation8 + $0x300] sm:$0xff]
    %v1216 = vld [vmem:[#allocation8 + $0x308] sm:$0xff]
    %v1217 = vld [vmem:[#allocation8 + $0x310] sm:$0xff]
    %v1218 = vld [vmem:[#allocation8 + $0x318] sm:$0xff]
    %v1219 = vld [vmem:[#allocation8 + $0x320] sm:$0xff]
    %v1220 = vld [vmem:[#allocation8 + $0x328] sm:$0xff]
    %v1221 = vld [vmem:[#allocation8 + $0x330] sm:$0xff]
    %v1222 = vld [vmem:[#allocation8 + $0x338] sm:$0xff]
    %v1223 = vld [vmem:[#allocation8 + $0x340] sm:$0xff]
    %v1224 = vld [vmem:[#allocation8 + $0x348] sm:$0xff]
    %v1225 = vld [vmem:[#allocation8 + $0x350] sm:$0xff]
    %v1226 = vld [vmem:[#allocation8 + $0x358] sm:$0xff]
    %v1227 = vld [vmem:[#allocation8 + $0x360] sm:$0xff]
    %v1228 = vld [vmem:[#allocation8 + $0x368] sm:$0xff]
    %v1229 = vld [vmem:[#allocation8 + $0x370] sm:$0xff]
    %v1230 = vld [vmem:[#allocation8 + $0x378] sm:$0xff]
    %v1231 = vld [vmem:[#allocation8 + $0x380] sm:$0xff]
    %v1232 = vld [vmem:[#allocation8 + $0x388] sm:$0xff]
    %v1233 = vld [vmem:[#allocation8 + $0x390] sm:$0xff]
    %v1234 = vld [vmem:[#allocation8 + $0x398] sm:$0xff]
    %v1235 = vld [vmem:[#allocation8 + $0x3a0] sm:$0xff]
    %v1236 = vld [vmem:[#allocation8 + $0x3a8] sm:$0xff]
    %v1237 = vld [vmem:[#allocation8 + $0x3b0] sm:$0xff]
    %v1238 = vld [vmem:[#allocation8 + $0x3b8] sm:$0xff]
    %v1239 = vld [vmem:[#allocation8 + $0x3c0] sm:$0xff]
    %v1240 = vld [vmem:[#allocation8 + $0x3c8] sm:$0xff]
    %v1241 = vld [vmem:[#allocation8 + $0x3d0] sm:$0xff]
    %v1242 = vld [vmem:[#allocation8 + $0x3d8] sm:$0xff]
    %v1243 = vld [vmem:[#allocation8 + $0x3e0] sm:$0xff]
    %v1244 = vld [vmem:[#allocation8 + $0x3e8] sm:$0xff]
    %v1245 = vld [vmem:[#allocation8 + $0x3f0] sm:$0xff]
    %v1246 = vld [vmem:[#allocation8 + $0x3f8] sm:$0xff]
    %v1247 = vld [vmem:[#allocation8 + $0x400] sm:$0xff]
    %v1248 = vld [vmem:[#allocation8 + $0x408] sm:$0xff]
    %v1249 = vld [vmem:[#allocation8 + $0x410] sm:$0xff]
    %v1250 = vld [vmem:[#allocation8 + $0x418] sm:$0xff]
    %v1251 = vld [vmem:[#allocation8 + $0x420] sm:$0xff]
    %v1252 = vld [vmem:[#allocation8 + $0x428] sm:$0xff]
    %v1253 = vld [vmem:[#allocation8 + $0x430] sm:$0xff]
    %v1254 = vld [vmem:[#allocation8 + $0x438] sm:$0xff]
    %v1255 = vld [vmem:[#allocation8 + $0x440] sm:$0xff]
    %v1256 = vld [vmem:[#allocation8 + $0x448] sm:$0xff]
    %v1257 = vld [vmem:[#allocation8 + $0x450] sm:$0xff]
    %v1258 = vld [vmem:[#allocation8 + $0x458] sm:$0xff]
    %v1259 = vld [vmem:[#allocation8 + $0x460] sm:$0xff]
    %v1260 = vld [vmem:[#allocation8 + $0x468] sm:$0xff]
    %v1261 = vld [vmem:[#allocation8 + $0x470] sm:$0xff]
    %v1262 = vld [vmem:[#allocation8 + $0x478] sm:$0xff]
    %v1263 = vld [vmem:[#allocation8 + $0x480] sm:$0xff]
    %v1264 = vld [vmem:[#allocation8 + $0x488] sm:$0xff]
    %v1265 = vld [vmem:[#allocation8 + $0x490] sm:$0xff]
    %v1266 = vld [vmem:[#allocation8 + $0x498] sm:$0xff]
    %v1267 = vld [vmem:[#allocation8 + $0x4a0] sm:$0xff]
    %v1268 = vld [vmem:[#allocation8 + $0x4a8] sm:$0xff]
    %v1269 = vld [vmem:[#allocation8 + $0x4b0] sm:$0xff]
    %v1270 = vld [vmem:[#allocation8 + $0x4b8] sm:$0xff]
    %v1271 = vld [vmem:[#allocation8 + $0x4c0] sm:$0xff]
    %v1272 = vld [vmem:[#allocation8 + $0x4c8] sm:$0xff]
    %v1273 = vld [vmem:[#allocation8 + $0x4d0] sm:$0xff]
    %v1274 = vld [vmem:[#allocation8 + $0x4d8] sm:$0xff]
    %v1275 = vld [vmem:[#allocation8 + $0x4e0] sm:$0xff]
    %v1276 = vld [vmem:[#allocation8 + $0x4e8] sm:$0xff]
    %v1277 = vld [vmem:[#allocation8 + $0x4f0] sm:$0xff]
    %v1278 = vld [vmem:[#allocation8 + $0x4f8] sm:$0xff]
    %v1279 = vld [vmem:[#allocation8 + $0x500] sm:$0xff]
    %v1280 = vld [vmem:[#allocation8 + $0x508] sm:$0xff]
    %v1281 = vld [vmem:[#allocation8 + $0x510] sm:$0xff]
    %v1282 = vld [vmem:[#allocation8 + $0x518] sm:$0xff]
    %v1283 = vld [vmem:[#allocation8 + $0x520] sm:$0xff]
    %v1284 = vld [vmem:[#allocation8 + $0x528] sm:$0xff]
    %v1285 = vld [vmem:[#allocation8 + $0x530] sm:$0xff]
    %v1286 = vld [vmem:[#allocation8 + $0x538] sm:$0xff]
    %v1287 = vld [vmem:[#allocation8 + $0x540] sm:$0xff]
    %v1288 = vld [vmem:[#allocation8 + $0x548] sm:$0xff]
    %v1289 = vld [vmem:[#allocation8 + $0x550] sm:$0xff]
    %v1290 = vld [vmem:[#allocation8 + $0x558] sm:$0xff]
    %v1291 = vld [vmem:[#allocation8 + $0x560] sm:$0xff]
    %v1292 = vld [vmem:[#allocation8 + $0x568] sm:$0xff]
    %v1293 = vld [vmem:[#allocation8 + $0x570] sm:$0xff]
    %v1294 = vld [vmem:[#allocation8 + $0x578] sm:$0xff]
    %v1295 = vld [vmem:[#allocation8 + $0x580] sm:$0xff]
    %v1296 = vld [vmem:[#allocation8 + $0x588] sm:$0xff]
    %v1297 = vld [vmem:[#allocation8 + $0x590] sm:$0xff]
    %v1298 = vld [vmem:[#allocation8 + $0x598] sm:$0xff]
    %v1299 = vld [vmem:[#allocation8 + $0x5a0] sm:$0xff]
    %v1300 = vld [vmem:[#allocation8 + $0x5a8] sm:$0xff]
    %v1301 = vld [vmem:[#allocation8 + $0x5b0] sm:$0xff]
    %v1302 = vld [vmem:[#allocation8 + $0x5b8] sm:$0xff]
    %v1303 = vld [vmem:[#allocation8 + $0x5c0] sm:$0xff]
    %v1304 = vld [vmem:[#allocation8 + $0x5c8] sm:$0xff]
    %v1305 = vld [vmem:[#allocation8 + $0x5d0] sm:$0xff]
    %v1306 = vld [vmem:[#allocation8 + $0x5d8] sm:$0xff]
    %v1307 = vld [vmem:[#allocation8 + $0x5e0] sm:$0xff]
    %v1308 = vld [vmem:[#allocation8 + $0x5e8] sm:$0xff]
    %v1309 = vld [vmem:[#allocation8 + $0x5f0] sm:$0xff]
    %v1310 = vld [vmem:[#allocation8 + $0x5f8] sm:$0xff]
    %v1311 = vld [vmem:[#allocation8 + $0x600] sm:$0xff]
    %v1312 = vld [vmem:[#allocation8 + $0x608] sm:$0xff]
    %v1313 = vld [vmem:[#allocation8 + $0x610] sm:$0xff]
    %v1314 = vld [vmem:[#allocation8 + $0x618] sm:$0xff]
    %v1315 = vld [vmem:[#allocation8 + $0x620] sm:$0xff]
    %v1316 = vld [vmem:[#allocation8 + $0x628] sm:$0xff]
    %v1317 = vld [vmem:[#allocation8 + $0x630] sm:$0xff]
    %v1318 = vld [vmem:[#allocation8 + $0x638] sm:$0xff]
    %v1319 = vld [vmem:[#allocation8 + $0x640] sm:$0xff]
    %v1320 = vld [vmem:[#allocation8 + $0x648] sm:$0xff]
    %v1321 = vld [vmem:[#allocation8 + $0x650] sm:$0xff]
    %v1322 = vld [vmem:[#allocation8 + $0x658] sm:$0xff]
    %v1323 = vld [vmem:[#allocation8 + $0x660] sm:$0xff]
    %v1324 = vld [vmem:[#allocation8 + $0x668] sm:$0xff]
    %v1325 = vld [vmem:[#allocation8 + $0x670] sm:$0xff]
    %v1326 = vld [vmem:[#allocation8 + $0x678] sm:$0xff]
    %v1327 = vld [vmem:[#allocation8 + $0x680] sm:$0xff]
    %v1328 = vld [vmem:[#allocation8 + $0x688] sm:$0xff]
    %v1329 = vld [vmem:[#allocation8 + $0x690] sm:$0xff]
    %v1330 = vld [vmem:[#allocation8 + $0x698] sm:$0xff]
    %v1331 = vld [vmem:[#allocation8 + $0x6a0] sm:$0xff]
    %v1332 = vld [vmem:[#allocation8 + $0x6a8] sm:$0xff]
    %v1333 = vld [vmem:[#allocation8 + $0x6b0] sm:$0xff]
    %v1334 = vld [vmem:[#allocation8 + $0x6b8] sm:$0xff]
    %v1335 = vld [vmem:[#allocation8 + $0x6c0] sm:$0xff]
    %v1336 = vld [vmem:[#allocation8 + $0x6c8] sm:$0xff]
    %v1337 = vld [vmem:[#allocation8 + $0x6d0] sm:$0xff]
    %v1338 = vld [vmem:[#allocation8 + $0x6d8] sm:$0xff]
    %v1339 = vld [vmem:[#allocation8 + $0x6e0] sm:$0xff]
    %v1340 = vld [vmem:[#allocation8 + $0x6e8] sm:$0xff]
    %v1341 = vld [vmem:[#allocation8 + $0x6f0] sm:$0xff]
    %v1342 = vld [vmem:[#allocation8 + $0x6f8] sm:$0xff]
    %v1343 = vld [vmem:[#allocation8 + $0x700] sm:$0xff]
    %v1344 = vld [vmem:[#allocation8 + $0x708] sm:$0xff]
    %v1345 = vld [vmem:[#allocation8 + $0x710] sm:$0xff]
    %v1346 = vld [vmem:[#allocation8 + $0x718] sm:$0xff]
    %v1347 = vld [vmem:[#allocation8 + $0x720] sm:$0xff]
    %v1348 = vld [vmem:[#allocation8 + $0x728] sm:$0xff]
    %v1349 = vld [vmem:[#allocation8 + $0x730] sm:$0xff]
    %v1350 = vld [vmem:[#allocation8 + $0x738] sm:$0xff]
    %v1351 = vld [vmem:[#allocation8 + $0x740] sm:$0xff]
    %v1352 = vld [vmem:[#allocation8 + $0x748] sm:$0xff]
    %v1353 = vld [vmem:[#allocation8 + $0x750] sm:$0xff]
    %v1354 = vld [vmem:[#allocation8 + $0x758] sm:$0xff]
    %v1355 = vld [vmem:[#allocation8 + $0x760] sm:$0xff]
    %v1356 = vld [vmem:[#allocation8 + $0x768] sm:$0xff]
    %v1357 = vld [vmem:[#allocation8 + $0x770] sm:$0xff]
    %v1358 = vld [vmem:[#allocation8 + $0x778] sm:$0xff]
    %v1359 = vld [vmem:[#allocation8 + $0x780] sm:$0xff]
    %v1360 = vld [vmem:[#allocation8 + $0x788] sm:$0xff]
    %v1361 = vld [vmem:[#allocation8 + $0x790] sm:$0xff]
    %v1362 = vld [vmem:[#allocation8 + $0x798] sm:$0xff]
    %v1363 = vld [vmem:[#allocation8 + $0x7a0] sm:$0xff]
    %v1364 = vld [vmem:[#allocation8 + $0x7a8] sm:$0xff]
    %v1365 = vld [vmem:[#allocation8 + $0x7b0] sm:$0xff]
    %v1366 = vld [vmem:[#allocation8 + $0x7b8] sm:$0xff]
    %v1367 = vld [vmem:[#allocation8 + $0x7c0] sm:$0xff]
    %v1368 = vld [vmem:[#allocation8 + $0x7c8] sm:$0xff]
    %v1369 = vld [vmem:[#allocation8 + $0x7d0] sm:$0xff]
    %v1370 = vld [vmem:[#allocation8 + $0x7d8] sm:$0xff]
    %v1371 = vld [vmem:[#allocation8 + $0x7e0] sm:$0xff]
    %v1372 = vld [vmem:[#allocation8 + $0x7e8] sm:$0xff]
    %v1373 = vld [vmem:[#allocation8 + $0x7f0] sm:$0xff]
    %v1374 = vld [vmem:[#allocation8 + $0x7f8] sm:$0xff]
    %v1375 = vld [vmem:[#allocation10] sm:$0x3]
    %v1377 = vlaneseq
    %v1378 = vshrl.u32 %v1377, 7
    %v1379 = vsub.s32 0, %v1378
    %v1380 = vrot.slane %v1375, %v1379
    %v1381 = vlaneseq
    %v1382 = vshrl.u32 %v1381, 7
    %v1383 = vsub.s32 1, %v1382
    %v1384 = vrot.slane %v1375, %v1383
    %1387 = vmatprep.subr.mxu0 %v1150
    %1388 = vmatpush1.msra.mxu0 %v1149
    %1389 = vmatprep.subr.mxu0 %v1148
    %1390 = vmatpush1.msra.mxu0 %v1147
    %1391 = vmatprep.subr.mxu0 %v1146
    %1392 = vmatpush1.msra.mxu0 %v1145
    %1393 = vmatprep.subr.mxu0 %v1144
    %1394 = vmatpush1.msra.mxu0 %v1143
    %1395 = vmatprep.subr.mxu0 %v1142
    %1396 = vmatpush1.msra.mxu0 %v1141
    %1397 = vmatprep.subr.mxu0 %v1140
    %1398 = vmatpush1.msra.mxu0 %v1139
    %1399 = vmatprep.subr.mxu0 %v1138
    %1400 = vmatpush1.msra.mxu0 %v1137
    %1401 = vmatprep.subr.mxu0 %v1136
    %1402 = vmatpush1.msra.mxu0 %v1135
    %1403 = vmatprep.subr.mxu0 %v1134
    %1404 = vmatpush1.msra.mxu0 %v1133
    %1405 = vmatprep.subr.mxu0 %v1132
    %1406 = vmatpush1.msra.mxu0 %v1131
    %1407 = vmatprep.subr.mxu0 %v1130
    %1408 = vmatpush1.msra.mxu0 %v1129
    %1409 = vmatprep.subr.mxu0 %v1128
    %1410 = vmatpush1.msra.mxu0 %v1127
    %1411 = vmatprep.subr.mxu0 %v1126
    %1412 = vmatpush1.msra.mxu0 %v1125
    %1413 = vmatprep.subr.mxu0 %v1124
    %1414 = vmatpush1.msra.mxu0 %v1123
    %1415 = vmatprep.subr.mxu0 %v1122
    %1416 = vmatpush1.msra.mxu0 %v1121
    %1417 = vmatprep.subr.mxu0 %v1120
    %1418 = vmatpush1.msra.mxu0 %v1119
    %1419 = vmatprep.subr.mxu0 %v1182
    %1420 = vmatpush2.msra.mxu0 %v1181
    %1421 = vmatprep.subr.mxu0 %v1180
    %1422 = vmatpush2.msra.mxu0 %v1179
    %1423 = vmatprep.subr.mxu0 %v1178
    %1424 = vmatpush2.msra.mxu0 %v1177
    %1425 = vmatprep.subr.mxu0 %v1176
    %1426 = vmatpush2.msra.mxu0 %v1175
    %1427 = vmatprep.subr.mxu0 %v1174
    %1428 = vmatpush2.msra.mxu0 %v1173
    %1429 = vmatprep.subr.mxu0 %v1172
    %1430 = vmatpush2.msra.mxu0 %v1171
    %1431 = vmatprep.subr.mxu0 %v1170
    %1432 = vmatpush2.msra.mxu0 %v1169
    %1433 = vmatprep.subr.mxu0 %v1168
    %1434 = vmatpush2.msra.mxu0 %v1167
    %1435 = vmatprep.subr.mxu0 %v1166
    %1436 = vmatpush2.msra.mxu0 %v1165
    %1437 = vmatprep.subr.mxu0 %v1164
    %1438 = vmatpush2.msra.mxu0 %v1163
    %1439 = vmatprep.subr.mxu0 %v1162
    %1440 = vmatpush2.msra.mxu0 %v1161
    %1441 = vmatprep.subr.mxu0 %v1160
    %1442 = vmatpush2.msra.mxu0 %v1159
    %1443 = vmatprep.subr.mxu0 %v1158
    %1444 = vmatpush2.msra.mxu0 %v1157
    %1445 = vmatprep.subr.mxu0 %v1156
    %1446 = vmatpush2.msra.mxu0 %v1155
    %1447 = vmatprep.subr.mxu0 %v1154
    %1448 = vmatpush2.msra.mxu0 %v1153
    %1449 = vmatprep.subr.mxu0 %v1152
    %1450 = vmatpush2.msra.mxu0 %v1151
    %1451 = vmatprep.mubr.f32.mxu0 %v1112
    %1452 = vmatmul.mubr.f32.gmra.mxu0 %v1111
    %v1453 = vpop.f32.mrf.mxu0
    %v1454 = vadd.f32 %v1380, %v1453
    %v1455 = vpop.f32.mrf.mxu0
    %v1456 = vadd.f32 %v1384, %v1455
    %1457 = vdwg.mxu0
    %1458 = vmatprep.subr.mxu0 %v1214
    %1459 = vmatpush1.msra.mxu0 %v1213
    %1460 = vmatprep.subr.mxu0 %v1212
    %1461 = vmatpush1.msra.mxu0 %v1211
    %1462 = vmatprep.subr.mxu0 %v1210
    %1463 = vmatpush1.msra.mxu0 %v1209
    %1464 = vmatprep.subr.mxu0 %v1208
    %1465 = vmatpush1.msra.mxu0 %v1207
    %1466 = vmatprep.subr.mxu0 %v1206
    %1467 = vmatpush1.msra.mxu0 %v1205
    %1468 = vmatprep.subr.mxu0 %v1204
    %1469 = vmatpush1.msra.mxu0 %v1203
    %1470 = vmatprep.subr.mxu0 %v1202
    %1471 = vmatpush1.msra.mxu0 %v1201
    %1472 = vmatprep.subr.mxu0 %v1200
    %1473 = vmatpush1.msra.mxu0 %v1199
    %1474 = vmatprep.subr.mxu0 %v1198
    %1475 = vmatpush1.msra.mxu0 %v1197
    %1476 = vmatprep.subr.mxu0 %v1196
    %1477 = vmatpush1.msra.mxu0 %v1195
    %1478 = vmatprep.subr.mxu0 %v1194
    %1479 = vmatpush1.msra.mxu0 %v1193
    %1480 = vmatprep.subr.mxu0 %v1192
    %1481 = vmatpush1.msra.mxu0 %v1191
    %1482 = vmatprep.subr.mxu0 %v1190
    %1483 = vmatpush1.msra.mxu0 %v1189
    %1484 = vmatprep.subr.mxu0 %v1188
    %1485 = vmatpush1.msra.mxu0 %v1187
    %1486 = vmatprep.subr.mxu0 %v1186
    %1487 = vmatpush1.msra.mxu0 %v1185
    %1488 = vmatprep.subr.mxu0 %v1184
    %1489 = vmatpush1.msra.mxu0 %v1183
    %1490 = vmatprep.subr.mxu0 %v1246
    %1491 = vmatpush2.msra.mxu0 %v1245
    %1492 = vmatprep.subr.mxu0 %v1244
    %1493 = vmatpush2.msra.mxu0 %v1243
    %1494 = vmatprep.subr.mxu0 %v1242
    %1495 = vmatpush2.msra.mxu0 %v1241
    %1496 = vmatprep.subr.mxu0 %v1240
    %1497 = vmatpush2.msra.mxu0 %v1239
    %1498 = vmatprep.subr.mxu0 %v1238
    %1499 = vmatpush2.msra.mxu0 %v1237
    %1500 = vmatprep.subr.mxu0 %v1236
    %1501 = vmatpush2.msra.mxu0 %v1235
    %1502 = vmatprep.subr.mxu0 %v1234
    %1503 = vmatpush2.msra.mxu0 %v1233
    %1504 = vmatprep.subr.mxu0 %v1232
    %1505 = vmatpush2.msra.mxu0 %v1231
    %1506 = vmatprep.subr.mxu0 %v1230
    %1507 = vmatpush2.msra.mxu0 %v1229
    %1508 = vmatprep.subr.mxu0 %v1228
    %1509 = vmatpush2.msra.mxu0 %v1227
    %1510 = vmatprep.subr.mxu0 %v1226
    %1511 = vmatpush2.msra.mxu0 %v1225
    %1512 = vmatprep.subr.mxu0 %v1224
    %1513 = vmatpush2.msra.mxu0 %v1223
    %1514 = vmatprep.subr.mxu0 %v1222
    %1515 = vmatpush2.msra.mxu0 %v1221
    %1516 = vmatprep.subr.mxu0 %v1220
    %1517 = vmatpush2.msra.mxu0 %v1219
    %1518 = vmatprep.subr.mxu0 %v1218
    %1519 = vmatpush2.msra.mxu0 %v1217
    %1520 = vmatprep.subr.mxu0 %v1216
    %1521 = vmatpush2.msra.mxu0 %v1215
    %1522 = vmatprep.mubr.f32.mxu0 %v1114
    %1523 = vmatmul.mubr.f32.gmra.mxu0 %v1113
    %v1524 = vpop.f32.mrf.mxu0
    %v1525 = vadd.f32 %v1454, %v1524
    %v1526 = vpop.f32.mrf.mxu0
    %v1527 = vadd.f32 %v1456, %v1526
    %1528 = vdwg.mxu0
    %1529 = vmatprep.subr.mxu0 %v1278
    %1530 = vmatpush1.msra.mxu0 %v1277
    %1531 = vmatprep.subr.mxu0 %v1276
    %1532 = vmatpush1.msra.mxu0 %v1275
    %1533 = vmatprep.subr.mxu0 %v1274
    %1534 = vmatpush1.msra.mxu0 %v1273
    %1535 = vmatprep.subr.mxu0 %v1272
    %1536 = vmatpush1.msra.mxu0 %v1271
    %1537 = vmatprep.subr.mxu0 %v1270
    %1538 = vmatpush1.msra.mxu0 %v1269
    %1539 = vmatprep.subr.mxu0 %v1268
    %1540 = vmatpush1.msra.mxu0 %v1267
    %1541 = vmatprep.subr.mxu0 %v1266
    %1542 = vmatpush1.msra.mxu0 %v1265
    %1543 = vmatprep.subr.mxu0 %v1264
    %1544 = vmatpush1.msra.mxu0 %v1263
    %1545 = vmatprep.subr.mxu0 %v1262
    %1546 = vmatpush1.msra.mxu0 %v1261
    %1547 = vmatprep.subr.mxu0 %v1260
    %1548 = vmatpush1.msra.mxu0 %v1259
    %1549 = vmatprep.subr.mxu0 %v1258
    %1550 = vmatpush1.msra.mxu0 %v1257
    %1551 = vmatprep.subr.mxu0 %v1256
    %1552 = vmatpush1.msra.mxu0 %v1255
    %1553 = vmatprep.subr.mxu0 %v1254
    %1554 = vmatpush1.msra.mxu0 %v1253
    %1555 = vmatprep.subr.mxu0 %v1252
    %1556 = vmatpush1.msra.mxu0 %v1251
    %1557 = vmatprep.subr.mxu0 %v1250
    %1558 = vmatpush1.msra.mxu0 %v1249
    %1559 = vmatprep.subr.mxu0 %v1248
    %1560 = vmatpush1.msra.mxu0 %v1247
    %1561 = vmatprep.subr.mxu0 %v1310
    %1562 = vmatpush2.msra.mxu0 %v1309
    %1563 = vmatprep.subr.mxu0 %v1308
    %1564 = vmatpush2.msra.mxu0 %v1307
    %1565 = vmatprep.subr.mxu0 %v1306
    %1566 = vmatpush2.msra.mxu0 %v1305
    %1567 = vmatprep.subr.mxu0 %v1304
    %1568 = vmatpush2.msra.mxu0 %v1303
    %1569 = vmatprep.subr.mxu0 %v1302
    %1570 = vmatpush2.msra.mxu0 %v1301
    %1571 = vmatprep.subr.mxu0 %v1300
    %1572 = vmatpush2.msra.mxu0 %v1299
    %1573 = vmatprep.subr.mxu0 %v1298
    %1574 = vmatpush2.msra.mxu0 %v1297
    %1575 = vmatprep.subr.mxu0 %v1296
    %1576 = vmatpush2.msra.mxu0 %v1295
    %1577 = vmatprep.subr.mxu0 %v1294
    %1578 = vmatpush2.msra.mxu0 %v1293
    %1579 = vmatprep.subr.mxu0 %v1292
    %1580 = vmatpush2.msra.mxu0 %v1291
    %1581 = vmatprep.subr.mxu0 %v1290
    %1582 = vmatpush2.msra.mxu0 %v1289
    %1583 = vmatprep.subr.mxu0 %v1288
    %1584 = vmatpush2.msra.mxu0 %v1287
    %1585 = vmatprep.subr.mxu0 %v1286
    %1586 = vmatpush2.msra.mxu0 %v1285
    %1587 = vmatprep.subr.mxu0 %v1284
    %1588 = vmatpush2.msra.mxu0 %v1283
    %1589 = vmatprep.subr.mxu0 %v1282
    %1590 = vmatpush2.msra.mxu0 %v1281
    %1591 = vmatprep.subr.mxu0 %v1280
    %1592 = vmatpush2.msra.mxu0 %v1279
    %1593 = vmatprep.mubr.f32.mxu0 %v1116
    %1594 = vmatmul.mubr.f32.gmra.mxu0 %v1115
    %v1595 = vpop.f32.mrf.mxu0
    %v1596 = vadd.f32 %v1525, %v1595
    %v1597 = vpop.f32.mrf.mxu0
    %v1598 = vadd.f32 %v1527, %v1597
    %1599 = vdwg.mxu0
    %1600 = vmatprep.subr.mxu0 %v1342
    %1601 = vmatpush1.msra.mxu0 %v1341
    %1602 = vmatprep.subr.mxu0 %v1340
    %1603 = vmatpush1.msra.mxu0 %v1339
    %1604 = vmatprep.subr.mxu0 %v1338
    %1605 = vmatpush1.msra.mxu0 %v1337
    %1606 = vmatprep.subr.mxu0 %v1336
    %1607 = vmatpush1.msra.mxu0 %v1335
    %1608 = vmatprep.subr.mxu0 %v1334
    %1609 = vmatpush1.msra.mxu0 %v1333
    %1610 = vmatprep.subr.mxu0 %v1332
    %1611 = vmatpush1.msra.mxu0 %v1331
    %1612 = vmatprep.subr.mxu0 %v1330
    %1613 = vmatpush1.msra.mxu0 %v1329
    %1614 = vmatprep.subr.mxu0 %v1328
    %1615 = vmatpush1.msra.mxu0 %v1327
    %1616 = vmatprep.subr.mxu0 %v1326
    %1617 = vmatpush1.msra.mxu0 %v1325
    %1618 = vmatprep.subr.mxu0 %v1324
    %1619 = vmatpush1.msra.mxu0 %v1323
    %1620 = vmatprep.subr.mxu0 %v1322
    %1621 = vmatpush1.msra.mxu0 %v1321
    %1622 = vmatprep.subr.mxu0 %v1320
    %1623 = vmatpush1.msra.mxu0 %v1319
    %1624 = vmatprep.subr.mxu0 %v1318
    %1625 = vmatpush1.msra.mxu0 %v1317
    %1626 = vmatprep.subr.mxu0 %v1316
    %1627 = vmatpush1.msra.mxu0 %v1315
    %1628 = vmatprep.subr.mxu0 %v1314
    %1629 = vmatpush1.msra.mxu0 %v1313
    %1630 = vmatprep.subr.mxu0 %v1312
    %1631 = vmatpush1.msra.mxu0 %v1311
    %1632 = vmatprep.subr.mxu0 %v1374
    %1633 = vmatpush2.msra.mxu0 %v1373
    %1634 = vmatprep.subr.mxu0 %v1372
    %1635 = vmatpush2.msra.mxu0 %v1371
    %1636 = vmatprep.subr.mxu0 %v1370
    %1637 = vmatpush2.msra.mxu0 %v1369
    %1638 = vmatprep.subr.mxu0 %v1368
    %1639 = vmatpush2.msra.mxu0 %v1367
    %1640 = vmatprep.subr.mxu0 %v1366
    %1641 = vmatpush2.msra.mxu0 %v1365
    %1642 = vmatprep.subr.mxu0 %v1364
    %1643 = vmatpush2.msra.mxu0 %v1363
    %1644 = vmatprep.subr.mxu0 %v1362
    %1645 = vmatpush2.msra.mxu0 %v1361
    %1646 = vmatprep.subr.mxu0 %v1360
    %1647 = vmatpush2.msra.mxu0 %v1359
    %1648 = vmatprep.subr.mxu0 %v1358
    %1649 = vmatpush2.msra.mxu0 %v1357
    %1650 = vmatprep.subr.mxu0 %v1356
    %1651 = vmatpush2.msra.mxu0 %v1355
    %1652 = vmatprep.subr.mxu0 %v1354
    %1653 = vmatpush2.msra.mxu0 %v1353
    %1654 = vmatprep.subr.mxu0 %v1352
    %1655 = vmatpush2.msra.mxu0 %v1351
    %1656 = vmatprep.subr.mxu0 %v1350
    %1657 = vmatpush2.msra.mxu0 %v1349
    %1658 = vmatprep.subr.mxu0 %v1348
    %1659 = vmatpush2.msra.mxu0 %v1347
    %1660 = vmatprep.subr.mxu0 %v1346
    %1661 = vmatpush2.msra.mxu0 %v1345
    %1662 = vmatprep.subr.mxu0 %v1344
    %1663 = vmatpush2.msra.mxu0 %v1343
    %1664 = vmatprep.mubr.f32.mxu0 %v1118
    %1665 = vmatmul.mubr.f32.gmra.mxu0 %v1117
    %v1666 = vpop.f32.mrf.mxu0
    %v1667 = vadd.f32 %v1596, %v1666
    %v1668 = vpop.f32.mrf.mxu0
    %v1669 = vadd.f32 %v1598, %v1668
    %1670 = vdwg.mxu0
    %v1671 = vmax.f32 %v1667, 0.0
    %v1672 = vmax.f32 %v1669, 0.0
    %v1673 = vld [vmem:[#allocation11] sm:$0xff]
    %v1674 = vld [vmem:[#allocation11 + $0x8] sm:$0xff]
    %v1675 = vld [vmem:[#allocation11 + $0x10] sm:$0xff]
    %v1676 = vld [vmem:[#allocation11 + $0x18] sm:$0xff]
    %v1677 = vld [vmem:[#allocation11 + $0x20] sm:$0xff]
    %v1678 = vld [vmem:[#allocation11 + $0x28] sm:$0xff]
    %v1679 = vld [vmem:[#allocation11 + $0x30] sm:$0xff]
    %v1680 = vld [vmem:[#allocation11 + $0x38] sm:$0xff]
    %v1681 = vld [vmem:[#allocation11 + $0x40] sm:$0xff]
    %v1682 = vld [vmem:[#allocation11 + $0x48] sm:$0xff]
    %v1683 = vld [vmem:[#allocation11 + $0x50] sm:$0xff]
    %v1684 = vld [vmem:[#allocation11 + $0x58] sm:$0xff]
    %v1685 = vld [vmem:[#allocation11 + $0x60] sm:$0xff]
    %v1686 = vld [vmem:[#allocation11 + $0x68] sm:$0xff]
    %v1687 = vld [vmem:[#allocation11 + $0x70] sm:$0xff]
    %v1688 = vld [vmem:[#allocation11 + $0x78] sm:$0xff]
    %v1689 = vld [vmem:[#allocation11 + $0x80] sm:$0xff]
    %v1690 = vld [vmem:[#allocation11 + $0x88] sm:$0xff]
    %v1691 = vld [vmem:[#allocation11 + $0x90] sm:$0xff]
    %v1692 = vld [vmem:[#allocation11 + $0x98] sm:$0xff]
    %v1693 = vld [vmem:[#allocation11 + $0xa0] sm:$0xff]
    %v1694 = vld [vmem:[#allocation11 + $0xa8] sm:$0xff]
    %v1695 = vld [vmem:[#allocation11 + $0xb0] sm:$0xff]
    %v1696 = vld [vmem:[#allocation11 + $0xb8] sm:$0xff]
    %v1697 = vld [vmem:[#allocation11 + $0xc0] sm:$0xff]
    %v1698 = vld [vmem:[#allocation11 + $0xc8] sm:$0xff]
    %v1699 = vld [vmem:[#allocation11 + $0xd0] sm:$0xff]
    %v1700 = vld [vmem:[#allocation11 + $0xd8] sm:$0xff]
    %v1701 = vld [vmem:[#allocation11 + $0xe0] sm:$0xff]
    %v1702 = vld [vmem:[#allocation11 + $0xe8] sm:$0xff]
    %v1703 = vld [vmem:[#allocation11 + $0xf0] sm:$0xff]
    %v1704 = vld [vmem:[#allocation11 + $0xf8] sm:$0xff]
    %v1705 = vld [vmem:[#allocation13] sm:$0x1]
    %v1707 = vlaneseq
    %v1708 = vshrl.u32 %v1707, 7
    %v1709 = vsub.s32 0, %v1708
    %v1710 = vrot.slane %v1705, %v1709
    %1712 = vmatprep.subr.mxu0 0.0
    %1713 = vmatpush1.msra.mxu0 %v1688
    %1714 = vmatprep.subr.mxu0 0.0
    %1715 = vmatpush1.msra.mxu0 %v1687
    %1716 = vmatprep.subr.mxu0 0.0
    %1717 = vmatpush1.msra.mxu0 %v1686
    %1718 = vmatprep.subr.mxu0 0.0
    %1719 = vmatpush1.msra.mxu0 %v1685
    %1720 = vmatprep.subr.mxu0 0.0
    %1721 = vmatpush1.msra.mxu0 %v1684
    %1722 = vmatprep.subr.mxu0 0.0
    %1723 = vmatpush1.msra.mxu0 %v1683
    %1724 = vmatprep.subr.mxu0 0.0
    %1725 = vmatpush1.msra.mxu0 %v1682
    %1726 = vmatprep.subr.mxu0 0.0
    %1727 = vmatpush1.msra.mxu0 %v1681
    %1728 = vmatprep.subr.mxu0 0.0
    %1729 = vmatpush1.msra.mxu0 %v1680
    %1730 = vmatprep.subr.mxu0 0.0
    %1731 = vmatpush1.msra.mxu0 %v1679
    %1732 = vmatprep.subr.mxu0 0.0
    %1733 = vmatpush1.msra.mxu0 %v1678
    %1734 = vmatprep.subr.mxu0 0.0
    %1735 = vmatpush1.msra.mxu0 %v1677
    %1736 = vmatprep.subr.mxu0 0.0
    %1737 = vmatpush1.msra.mxu0 %v1676
    %1738 = vmatprep.subr.mxu0 0.0
    %1739 = vmatpush1.msra.mxu0 %v1675
    %1740 = vmatprep.subr.mxu0 0.0
    %1741 = vmatpush1.msra.mxu0 %v1674
    %1742 = vmatprep.subr.mxu0 0.0
    %1743 = vmatpush1.msra.mxu0 %v1673
    %1744 = vmatprep.subr.mxu0 0.0
    %1745 = vmatpush2.msra.mxu0 %v1704
    %1746 = vmatprep.subr.mxu0 0.0
    %1747 = vmatpush2.msra.mxu0 %v1703
    %1748 = vmatprep.subr.mxu0 0.0
    %1749 = vmatpush2.msra.mxu0 %v1702
    %1750 = vmatprep.subr.mxu0 0.0
    %1751 = vmatpush2.msra.mxu0 %v1701
    %1752 = vmatprep.subr.mxu0 0.0
    %1753 = vmatpush2.msra.mxu0 %v1700
    %1754 = vmatprep.subr.mxu0 0.0
    %1755 = vmatpush2.msra.mxu0 %v1699
    %1756 = vmatprep.subr.mxu0 0.0
    %1757 = vmatpush2.msra.mxu0 %v1698
    %1758 = vmatprep.subr.mxu0 0.0
    %1759 = vmatpush2.msra.mxu0 %v1697
    %1760 = vmatprep.subr.mxu0 0.0
    %1761 = vmatpush2.msra.mxu0 %v1696
    %1762 = vmatprep.subr.mxu0 0.0
    %1763 = vmatpush2.msra.mxu0 %v1695
    %1764 = vmatprep.subr.mxu0 0.0
    %1765 = vmatpush2.msra.mxu0 %v1694
    %1766 = vmatprep.subr.mxu0 0.0
    %1767 = vmatpush2.msra.mxu0 %v1693
    %1768 = vmatprep.subr.mxu0 0.0
    %1769 = vmatpush2.msra.mxu0 %v1692
    %1770 = vmatprep.subr.mxu0 0.0
    %1771 = vmatpush2.msra.mxu0 %v1691
    %1772 = vmatprep.subr.mxu0 0.0
    %1773 = vmatpush2.msra.mxu0 %v1690
    %1774 = vmatprep.subr.mxu0 0.0
    %1775 = vmatpush2.msra.mxu0 %v1689
    %1776 = vmatprep.mubr.f32.mxu0 %v1672
    %1777 = vmatmul.mubr.f32.gmra.mxu0 %v1671
    %v1778 = vpop.f32.mrf.mxu0
    %v1779 = vadd.f32 %v1710, %v1778
    %v1780 = vpop.f32.mrf.mxu0
    %1781 = vdwg.mxu0
    %1782 = vmax.xlane.f32.xlu0 %v1779
    %v1783 = vpop.xlane.xlu0 %1782
    %v1784 = vsub.f32 %v1779, %v1783
    %v1785 = vmul.f32 %v1784, 1.442695
    %v1786 = vpow.pop %v1785
    %1787 = vadd.xlane.f32.xlu0 %v1786
    %v1788 = vpop.xlane.xlu0 %1787
    %v1789 = vrcp.pop %v1788
    %v1790 = vmul.f32 %v1786, %v1789
    %1791 = vst [vmem:[#allocation14] sm:$0xff] %v1790
    // Predicated region
    $region58: #{tpu_custom_call.1} parent=1 // pred_check
      _
    $region59: #{tpu_custom_call.1} parent=1 // pred_check_branch
      %1793 = sbr.rel (0) target = $region61
    $region60: #{tpu_custom_call.1} parent=1 // pred_region
      %s1795 = ssub.s32 128, 128
      %1796 = vsyncadd [#allocation4], %s1795
      %s1798 = sshll.u32 [#allocation14], 4
      %s1799 = int_to_ptr.vmem [resolvable:$true] %s1798
      %1801 = dma.vmem_to_hbm [thread:$0]  %s1799, 128, %s7, [#allocation4]
    $region61: #{tpu_custom_call.1} parent=1 // pred_fallthru
      _
    // Predicated region
    $region62: #{tpu_custom_call.1} parent=1 // pred_check
      _
    $region63: #{tpu_custom_call.1} parent=1 // pred_check_branch
      %1803 = sbr.rel (0) target = $region65
    $region64: #{tpu_custom_call.1} parent=1 // pred_region
      %1804 = dma.done [#allocation4], 128
    $region65: #{tpu_custom_call.1} parent=1 // pred_fallthru
      _
    %1805 = vsyncpa [#allocation3], 1
    %1806 = vsyncpa [#allocation6], 1
    %1807 = vsyncpa [#allocation9], 1
    %1808 = vsyncpa [#allocation12], 1
    %1809 = vsyncpa [#allocation4], 1

// kernel: tpu_custom_call.1
$region0: #{tpu_custom_call.1}
  #allocation0 [shape = 'u32[]', space=smem, size = 0x4, offset = 0x4, fixed_abs, tag = 'smem constant byte address 0x4 - core index']
  #allocation1 [shape = 'u32[144,128]{1,0:T(1,128)}', space=vmem, size = 0x12000, scoped, tag = 'internal scratch']
  %s0 = inlined_call_operand.hbm [shape: f32[8,384], index: 0, kind: input, shape index: {}]
  %s1 = inlined_call_operand.hbm [shape: f32[384,1024], index: 1, kind: input, shape index: {}]
  %s2 = inlined_call_operand.hbm [shape: f32[1,1024], index: 2, kind: input, shape index: {}]
  %s3 = inlined_call_operand.hbm [shape: f32[1024,256], index: 3, kind: input, shape index: {}]
  %s4 = inlined_call_operand.hbm [shape: f32[1,256], index: 4, kind: input, shape index: {}]
  %s5 = inlined_call_operand.hbm [shape: f32[256,128], index: 5, kind: input, shape index: {}]
  %s6 = inlined_call_operand.hbm [shape: f32[1,128], index: 6, kind: input, shape index: {}]
  %s7 = inlined_call_operand.hbm [shape: f32[8,128], index: 7, kind: output, shape index: {}]
  %s8 = sld [smem:[#allocation0]]
  $region66: #{tpu_custom_call.1} parent=0
    _
  %s10 = ssub.s32 1, %s8
  %s11 = scalar_select 0, %s10, %s8
  $region1: #{tpu_custom_call.1} parent=0
    #allocation2 [shape = 'u8[12288]{0}', space=vmem, size = 0x3000, scoped, tag = 'input window, operand 0, single buffered']
    #allocation3 [shape = 's32[1]{0}', space=sflag, size = 0x4, scoped, tag = 'scoped memory for tpu_custom_call.1']
    #allocation4 [shape = 's32[1]{0}', space=sflag, size = 0x4, scoped, tag = 'scoped memory for tpu_custom_call.1']
    #allocation5 [shape = 'u8[1572864]{0}', space=vmem, size = 0x180000, scoped, tag = 'input window, operand 1, single buffered']
    #allocation6 [shape = 's32[1]{0}', space=sflag, size = 0x4, scoped, tag = 'scoped memory for tpu_custom_call.1']
    #allocation7 [shape = 'u8[4096]{0}', space=vmem, size = 0x1000, scoped, tag = 'input window, operand 2, single buffered']
    #allocation8 [shape = 'u8[1048576]{0}', space=vmem, size = 0x100000, scoped, tag = 'input window, operand 3, single buffered']
    #allocation9 [shape = 's32[1]{0}', space=sflag, size = 0x4, scoped, tag = 'scoped memory for tpu_custom_call.1']
    #allocation10 [shape = 'u8[1024]{0}', space=vmem, size = 0x400, scoped, tag = 'input window, operand 4, single buffered']
    #allocation11 [shape = 'u8[131072]{0}', space=vmem, size = 0x20000, scoped, tag = 'input window, operand 5, single buffered']
    #allocation12 [shape = 's32[1]{0}', space=sflag, size = 0x4, scoped, tag = 'scoped memory for tpu_custom_call.1']
    #allocation13 [shape = 'u8[512]{0}', space=vmem, size = 0x400, scoped, tag = 'input window, operand 6, single buffered']
    #allocation14 [shape = 'u8[4096]{0}', space=vmem, size = 0x1000, scoped, tag = 'output window, operand 0, single buffered']
    %12 = vsyncpa [#allocation3], 0
    %13 = vsyncpa [#allocation6], 0
    %14 = vsyncpa [#allocation9], 0
    %15 = vsyncpa [#allocation12], 0
    %16 = vsyncpa [#allocation4], 0
    // Predicated region
    $region2: #{tpu_custom_call.1} parent=1 // pred_check
      _
    $region3: #{tpu_custom_call.1} parent=1 // pred_check_branch
      %18 = sbr.rel (0) target = $region5
    $region4: #{tpu_custom_call.1} parent=1 // pred_region
      %s20 = ssub.s32 384, 384
      %21 = vsyncadd [#allocation3], %s20
      %s23 = sshll.u32 [#allocation2], 4
      %s24 = int_to_ptr.vmem [resolvable:$true] %s23
      %26 = dma.hbm_to_vmem [thread:$0]  %s0, 384, %s24, [#allocation3]
    $region5: #{tpu_custom_call.1} parent=1 // pred_fallthru
      _
    // Predicated region
    $region6: #{tpu_custom_call.1} parent=1 // pred_check
      _
    $region7: #{tpu_custom_call.1} parent=1 // pred_check_branch
      %28 = sbr.rel (0) target = $region9
    $region8: #{tpu_custom_call.1} parent=1 // pred_region
      %s30 = ssub.s32 49152, 49152
      %31 = vsyncadd [#allocation6], %s30
      %s32 = sshll.u32 [#allocation5], 4
      %s33 = int_to_ptr.vmem [resolvable:$true] %s32
      %38 = dma.hbm_to_vmem [thread:$0]  %s1, 49152, %s33, [#allocation6], 1024, 1024, 64
    $region9: #{tpu_custom_call.1} parent=1 // pred_fallthru
      _
    // Predicated region
    $region10: #{tpu_custom_call.1} parent=1 // pred_check
      _
    $region11: #{tpu_custom_call.1} parent=1 // pred_check_branch
      %40 = sbr.rel (0) target = $region13
    $region12: #{tpu_custom_call.1} parent=1 // pred_region
      %s42 = ssub.s32 128, 128
      %43 = vsyncadd [#allocation6], %s42
      %s45 = sshll.u32 [#allocation7], 4
      %s46 = int_to_ptr.vmem [resolvable:$true] %s45
      %48 = dma.hbm_to_vmem [thread:$0]  %s2, 128, %s46, [#allocation6]
    $region13: #{tpu_custom_call.1} parent=1 // pred_fallthru
      _
    // Predicated region
    $region14: #{tpu_custom_call.1} parent=1 // pred_check
      _
    $region15: #{tpu_custom_call.1} parent=1 // pred_check_branch
      %50 = sbr.rel (0) target = $region17
    $region16: #{tpu_custom_call.1} parent=1 // pred_region
      %s52 = ssub.s32 32768, 32768
      %53 = vsyncadd [#allocation9], %s52
      %s54 = sshll.u32 [#allocation8], 4
      %s55 = int_to_ptr.vmem [resolvable:$true] %s54
      %60 = dma.hbm_to_vmem [thread:$0]  %s3, 32768, %s55, [#allocation9], 256, 256, 16
    $region17: #{tpu_custom_call.1} parent=1 // pred_fallthru
      _
    // Predicated region
    $region18: #{tpu_custom_call.1} parent=1 // pred_check
      _
    $region19: #{tpu_custom_call.1} parent=1 // pred_check_branch
      %62 = sbr.rel (0) target = $region21
    $region20: #{tpu_custom_call.1} parent=1 // pred_region
      %s64 = ssub.s32 32, 32
      %65 = vsyncadd [#allocation9], %s64
      %s67 = sshll.u32 [#allocation10], 4
      %s68 = int_to_ptr.vmem [resolvable:$true] %s67
      %70 = dma.hbm_to_vmem [thread:$0]  %s4, 32, %s68, [#allocation9]
    $region21: #{tpu_custom_call.1} parent=1 // pred_fallthru
      _
    // Predicated region
    $region22: #{tpu_custom_call.1} parent=1 // pred_check
      _
    $region23: #{tpu_custom_call.1} parent=1 // pred_check_branch
      %72 = sbr.rel (0) target = $region25
    $region24: #{tpu_custom_call.1} parent=1 // pred_region
      %s74 = ssub.s32 4096, 4096
      %75 = vsyncadd [#allocation12], %s74
      %s76 = sshll.u32 [#allocation11], 4
      %s77 = int_to_ptr.vmem [resolvable:$true] %s76
      %82 = dma.hbm_to_vmem [thread:$0]  %s5, 4096, %s77, [#allocation12], 128, 128, 8
    $region25: #{tpu_custom_call.1} parent=1 // pred_fallthru
      _
    // Predicated region
    $region26: #{tpu_custom_call.1} parent=1 // pred_check
      _
    $region27: #{tpu_custom_call.1} parent=1 // pred_check_branch
      %84 = sbr.rel (0) target = $region29
    $region28: #{tpu_custom_call.1} parent=1 // pred_region
      %s86 = ssub.s32 16, 16
      %87 = vsyncadd [#allocation12], %s86
      %s89 = sshll.u32 [#allocation13], 4
      %s90 = int_to_ptr.vmem [resolvable:$true] %s89
      %92 = dma.hbm_to_vmem [thread:$0]  %s6, 16, %s90, [#allocation12]
    $region29: #{tpu_custom_call.1} parent=1 // pred_fallthru
      _
    // Predicated region
    $region30: #{tpu_custom_call.1} parent=1 // pred_check
      _
    $region31: #{tpu_custom_call.1} parent=1 // pred_check_branch
      %94 = sbr.rel (0) target = $region33
    $region32: #{tpu_custom_call.1} parent=1 // pred_region
      %95 = dma.done [#allocation3], 384
    $region33: #{tpu_custom_call.1} parent=1 // pred_fallthru
      _
    // Predicated region
    $region34: #{tpu_custom_call.1} parent=1 // pred_check
      _
    $region35: #{tpu_custom_call.1} parent=1 // pred_check_branch
      %97 = sbr.rel (0) target = $region37
    $region36: #{tpu_custom_call.1} parent=1 // pred_region
      %98 = dma.done [#allocation6], 49152
    $region37: #{tpu_custom_call.1} parent=1 // pred_fallthru
      _
    // Predicated region
    $region38: #{tpu_custom_call.1} parent=1 // pred_check
      _
    $region39: #{tpu_custom_call.1} parent=1 // pred_check_branch
      %100 = sbr.rel (0) target = $region41
    $region40: #{tpu_custom_call.1} parent=1 // pred_region
      %101 = dma.done [#allocation6], 128
    $region41: #{tpu_custom_call.1} parent=1 // pred_fallthru
      _
    // Predicated region
    $region42: #{tpu_custom_call.1} parent=1 // pred_check
      _
    $region43: #{tpu_custom_call.1} parent=1 // pred_check_branch
      %103 = sbr.rel (0) target = $region45
    $region44: #{tpu_custom_call.1} parent=1 // pred_region
      %104 = dma.done [#allocation9], 32768
    $region45: #{tpu_custom_call.1} parent=1 // pred_fallthru
      _
    // Predicated region
    $region46: #{tpu_custom_call.1} parent=1 // pred_check
      _
    $region47: #{tpu_custom_call.1} parent=1 // pred_check_branch
      %106 = sbr.rel (0) target = $region49
    $region48: #{tpu_custom_call.1} parent=1 // pred_region
      %107 = dma.done [#allocation9], 32
    $region49: #{tpu_custom_call.1} parent=1 // pred_fallthru
      _
    // Predicated region
    $region50: #{tpu_custom_call.1} parent=1 // pred_check
      _
    $region51: #{tpu_custom_call.1} parent=1 // pred_check_branch
      %109 = sbr.rel (0) target = $region53
    $region52: #{tpu_custom_call.1} parent=1 // pred_region
      %110 = dma.done [#allocation12], 4096
    $region53: #{tpu_custom_call.1} parent=1 // pred_fallthru
      _
    // Predicated region
    $region54: #{tpu_custom_call.1} parent=1 // pred_check
      _
    $region55: #{tpu_custom_call.1} parent=1 // pred_check_branch
      %112 = sbr.rel (0) target = $region57
    $region56: #{tpu_custom_call.1} parent=1 // pred_region
      %113 = dma.done [#allocation12], 16
    $region57: #{tpu_custom_call.1} parent=1 // pred_fallthru
      _
    %v114 = vld [vmem:[#allocation2] sm:$0xff]
    %v115 = vld [vmem:[#allocation2 + $0x8] sm:$0xff]
    %v116 = vld [vmem:[#allocation2 + $0x10] sm:$0xff]
    %v117 = vld [vmem:[#allocation5] sm:$0xff]
    %v118 = vld [vmem:[#allocation5 + $0x8] sm:$0xff]
    %v119 = vld [vmem:[#allocation5 + $0x10] sm:$0xff]
    %v120 = vld [vmem:[#allocation5 + $0x18] sm:$0xff]
    %v121 = vld [vmem:[#allocation5 + $0x20] sm:$0xff]
    %v122 = vld [vmem:[#allocation5 + $0x28] sm:$0xff]
    %v123 = vld [vmem:[#allocation5 + $0x30] sm:$0xff]
    %v124 = vld [vmem:[#allocation5 + $0x38] sm:$0xff]
    %v125 = vld [vmem:[#allocation5 + $0x40] sm:$0xff]
    %v126 = vld [vmem:[#allocation5 + $0x48] sm:$0xff]
    %v127 = vld [vmem:[#allocation5 + $0x50] sm:$0xff]
    %v128 = vld [vmem:[#allocation5 + $0x58] sm:$0xff]
    %v129 = vld [vmem:[#allocation5 + $0x60] sm:$0xff]
    %v130 = vld [vmem:[#allocation5 + $0x68] sm:$0xff]
    %v131 = vld [vmem:[#allocation5 + $0x70] sm:$0xff]
    %v132 = vld [vmem:[#allocation5 + $0x78] sm:$0xff]
    %v133 = vld [vmem:[#allocation5 + $0x80] sm:$0xff]
    %v134 = vld [vmem:[#allocation5 + $0x88] sm:$0xff]
    %v135 = vld [vmem:[#allocation5 + $0x90] sm:$0xff]
    %v136 = vld [vmem:[#allocation5 + $0x98] sm:$0xff]
    %v137 = vld [vmem:[#allocation5 + $0xa0] sm:$0xff]
    %v138 = vld [vmem:[#allocation5 + $0xa8] sm:$0xff]
    %v139 = vld [vmem:[#allocation5 + $0xb0] sm:$0xff]
    %v140 = vld [vmem:[#allocation5 + $0xb8] sm:$0xff]
    %v141 = vld [vmem:[#allocation5 + $0xc0] sm:$0xff]
    %v142 = vld [vmem:[#allocation5 + $0xc8] sm:$0xff]
    %v143 = vld [vmem:[#allocation5 + $0xd0] sm:$0xff]
    %v144 = vld [vmem:[#allocation5 + $0xd8] sm:$0xff]
    %v145 = vld [vmem:[#allocation5 + $0xe0] sm:$0xff]
    %v146 = vld [vmem:[#allocation5 + $0xe8] sm:$0xff]
    %v147 = vld [vmem:[#allocation5 + $0xf0] sm:$0xff]
    %v148 = vld [vmem:[#allocation5 + $0xf8] sm:$0xff]
    %v149 = vld [vmem:[#allocation5 + $0x100] sm:$0xff]
    %v150 = vld [vmem:[#allocation5 + $0x108] sm:$0xff]
    %v151 = vld [vmem:[#allocation5 + $0x110] sm:$0xff]
    %v152 = vld [vmem:[#allocation5 + $0x118] sm:$0xff]
    %v153 = vld [vmem:[#allocation5 + $0x120] sm:$0xff]
    %v154 = vld [vmem:[#allocation5 + $0x128] sm:$0xff]
    %v155 = vld [vmem:[#allocation5 + $0x130] sm:$0xff]
    %v156 = vld [vmem:[#allocation5 + $0x138] sm:$0xff]
    %v157 = vld [vmem:[#allocation5 + $0x140] sm:$0xff]
    %v158 = vld [vmem:[#allocation5 + $0x148] sm:$0xff]
    %v159 = vld [vmem:[#allocation5 + $0x150] sm:$0xff]
    %v160 = vld [vmem:[#allocation5 + $0x158] sm:$0xff]
    %v161 = vld [vmem:[#allocation5 + $0x160] sm:$0xff]
    %v162 = vld [vmem:[#allocation5 + $0x168] sm:$0xff]
    %v163 = vld [vmem:[#allocation5 + $0x170] sm:$0xff]
    %v164 = vld [vmem:[#allocation5 + $0x178] sm:$0xff]
    %v165 = vld [vmem:[#allocation5 + $0x180] sm:$0xff]
    %v166 = vld [vmem:[#allocation5 + $0x188] sm:$0xff]
    %v167 = vld [vmem:[#allocation5 + $0x190] sm:$0xff]
    %v168 = vld [vmem:[#allocation5 + $0x198] sm:$0xff]
    %v169 = vld [vmem:[#allocation5 + $0x1a0] sm:$0xff]
    %v170 = vld [vmem:[#allocation5 + $0x1a8] sm:$0xff]
    %v171 = vld [vmem:[#allocation5 + $0x1b0] sm:$0xff]
    %v172 = vld [vmem:[#allocation5 + $0x1b8] sm:$0xff]
    %v173 = vld [vmem:[#allocation5 + $0x1c0] sm:$0xff]
    %v174 = vld [vmem:[#allocation5 + $0x1c8] sm:$0xff]
    %v175 = vld [vmem:[#allocation5 + $0x1d0] sm:$0xff]
    %v176 = vld [vmem:[#allocation5 + $0x1d8] sm:$0xff]
    %v177 = vld [vmem:[#allocation5 + $0x1e0] sm:$0xff]
    %v178 = vld [vmem:[#allocation5 + $0x1e8] sm:$0xff]
    %v179 = vld [vmem:[#allocation5 + $0x1f0] sm:$0xff]
    %v180 = vld [vmem:[#allocation5 + $0x1f8] sm:$0xff]
    %v181 = vld [vmem:[#allocation5 + $0x200] sm:$0xff]
    %v182 = vld [vmem:[#allocation5 + $0x208] sm:$0xff]
    %v183 = vld [vmem:[#allocation5 + $0x210] sm:$0xff]
    %v184 = vld [vmem:[#allocation5 + $0x218] sm:$0xff]
    %v185 = vld [vmem:[#allocation5 + $0x220] sm:$0xff]
    %v186 = vld [vmem:[#allocation5 + $0x228] sm:$0xff]
    %v187 = vld [vmem:[#allocation5 + $0x230] sm:$0xff]
    %v188 = vld [vmem:[#allocation5 + $0x238] sm:$0xff]
    %v189 = vld [vmem:[#allocation5 + $0x240] sm:$0xff]
    %v190 = vld [vmem:[#allocation5 + $0x248] sm:$0xff]
    %v191 = vld [vmem:[#allocation5 + $0x250] sm:$0xff]
    %v192 = vld [vmem:[#allocation5 + $0x258] sm:$0xff]
    %v193 = vld [vmem:[#allocation5 + $0x260] sm:$0xff]
    %v194 = vld [vmem:[#allocation5 + $0x268] sm:$0xff]
    %v195 = vld [vmem:[#allocation5 + $0x270] sm:$0xff]
    %v196 = vld [vmem:[#allocation5 + $0x278] sm:$0xff]
    %v197 = vld [vmem:[#allocation5 + $0x280] sm:$0xff]
    %v198 = vld [vmem:[#allocation5 + $0x288] sm:$0xff]
    %v199 = vld [vmem:[#allocation5 + $0x290] sm:$0xff]
    %v200 = vld [vmem:[#allocation5 + $0x298] sm:$0xff]
    %v201 = vld [vmem:[#allocation5 + $0x2a0] sm:$0xff]
    %v202 = vld [vmem:[#allocation5 + $0x2a8] sm:$0xff]
    %v203 = vld [vmem:[#allocation5 + $0x2b0] sm:$0xff]
    %v204 = vld [vmem:[#allocation5 + $0x2b8] sm:$0xff]
    %v205 = vld [vmem:[#allocation5 + $0x2c0] sm:$0xff]
    %v206 = vld [vmem:[#allocation5 + $0x2c8] sm:$0xff]
    %v207 = vld [vmem:[#allocation5 + $0x2d0] sm:$0xff]
    %v208 = vld [vmem:[#allocation5 + $0x2d8] sm:$0xff]
    %v209 = vld [vmem:[#allocation5 + $0x2e0] sm:$0xff]
    %v210 = vld [vmem:[#allocation5 + $0x2e8] sm:$0xff]
    %v211 = vld [vmem:[#allocation5 + $0x2f0] sm:$0xff]
    %v212 = vld [vmem:[#allocation5 + $0x2f8] sm:$0xff]
    %v213 = vld [vmem:[#allocation5 + $0x300] sm:$0xff]
    %v214 = vld [vmem:[#allocation5 + $0x308] sm:$0xff]
    %v215 = vld [vmem:[#allocation5 + $0x310] sm:$0xff]
    %v216 = vld [vmem:[#allocation5 + $0x318] sm:$0xff]
    %v217 = vld [vmem:[#allocation5 + $0x320] sm:$0xff]
    %v218 = vld [vmem:[#allocation5 + $0x328] sm:$0xff]
    %v219 = vld [vmem:[#allocation5 + $0x330] sm:$0xff]
    %v220 = vld [vmem:[#allocation5 + $0x338] sm:$0xff]
    %v221 = vld [vmem:[#allocation5 + $0x340] sm:$0xff]
    %v222 = vld [vmem:[#allocation5 + $0x348] sm:$0xff]
    %v223 = vld [vmem:[#allocation5 + $0x350] sm:$0xff]
    %v224 = vld [vmem:[#allocation5 + $0x358] sm:$0xff]
    %v225 = vld [vmem:[#allocation5 + $0x360] sm:$0xff]
    %v226 = vld [vmem:[#allocation5 + $0x368] sm:$0xff]
    %v227 = vld [vmem:[#allocation5 + $0x370] sm:$0xff]
    %v228 = vld [vmem:[#allocation5 + $0x378] sm:$0xff]
    %v229 = vld [vmem:[#allocation5 + $0x380] sm:$0xff]
    %v230 = vld [vmem:[#allocation5 + $0x388] sm:$0xff]
    %v231 = vld [vmem:[#allocation5 + $0x390] sm:$0xff]
    %v232 = vld [vmem:[#allocation5 + $0x398] sm:$0xff]
    %v233 = vld [vmem:[#allocation5 + $0x3a0] sm:$0xff]
    %v234 = vld [vmem:[#allocation5 + $0x3a8] sm:$0xff]
    %v235 = vld [vmem:[#allocation5 + $0x3b0] sm:$0xff]
    %v236 = vld [vmem:[#allocation5 + $0x3b8] sm:$0xff]
    %v237 = vld [vmem:[#allocation5 + $0x3c0] sm:$0xff]
    %v238 = vld [vmem:[#allocation5 + $0x3c8] sm:$0xff]
    %v239 = vld [vmem:[#allocation5 + $0x3d0] sm:$0xff]
    %v240 = vld [vmem:[#allocation5 + $0x3d8] sm:$0xff]
    %v241 = vld [vmem:[#allocation5 + $0x3e0] sm:$0xff]
    %v242 = vld [vmem:[#allocation5 + $0x3e8] sm:$0xff]
    %v243 = vld [vmem:[#allocation5 + $0x3f0] sm:$0xff]
    %v244 = vld [vmem:[#allocation5 + $0x3f8] sm:$0xff]
    %v245 = vld [vmem:[#allocation5 + $0x400] sm:$0xff]
    %v246 = vld [vmem:[#allocation5 + $0x408] sm:$0xff]
    %v247 = vld [vmem:[#allocation5 + $0x410] sm:$0xff]
    %v248 = vld [vmem:[#allocation5 + $0x418] sm:$0xff]
    %v249 = vld [vmem:[#allocation5 + $0x420] sm:$0xff]
    %v250 = vld [vmem:[#allocation5 + $0x428] sm:$0xff]
    %v251 = vld [vmem:[#allocation5 + $0x430] sm:$0xff]
    %v252 = vld [vmem:[#allocation5 + $0x438] sm:$0xff]
    %v253 = vld [vmem:[#allocation5 + $0x440] sm:$0xff]
    %v254 = vld [vmem:[#allocation5 + $0x448] sm:$0xff]
    %v255 = vld [vmem:[#allocation5 + $0x450] sm:$0xff]
    %v256 = vld [vmem:[#allocation5 + $0x458] sm:$0xff]
    %v257 = vld [vmem:[#allocation5 + $0x460] sm:$0xff]
    %v258 = vld [vmem:[#allocation5 + $0x468] sm:$0xff]
    %v259 = vld [vmem:[#allocation5 + $0x470] sm:$0xff]
    %v260 = vld [vmem:[#allocation5 + $0x478] sm:$0xff]
    %v261 = vld [vmem:[#allocation5 + $0x480] sm:$0xff]
    %v262 = vld [vmem:[#allocation5 + $0x488] sm:$0xff]
    %v263 = vld [vmem:[#allocation5 + $0x490] sm:$0xff]
    %v264 = vld [vmem:[#allocation5 + $0x498] sm:$0xff]
    %v265 = vld [vmem:[#allocation5 + $0x4a0] sm:$0xff]
    %v266 = vld [vmem:[#allocation5 + $0x4a8] sm:$0xff]
    %v267 = vld [vmem:[#allocation5 + $0x4b0] sm:$0xff]
    %v268 = vld [vmem:[#allocation5 + $0x4b8] sm:$0xff]
    %v269 = vld [vmem:[#allocation5 + $0x4c0] sm:$0xff]
    %v270 = vld [vmem:[#allocation5 + $0x4c8] sm:$0xff]
    %v271 = vld [vmem:[#allocation5 + $0x4d0] sm:$0xff]
    %v272 = vld [vmem:[#allocation5 + $0x4d8] sm:$0xff]
    %v273 = vld [vmem:[#allocation5 + $0x4e0] sm:$0xff]
    %v274 = vld [vmem:[#allocation5 + $0x4e8] sm:$0xff]
    %v275 = vld [vmem:[#allocation5 + $0x4f0] sm:$0xff]
    %v276 = vld [vmem:[#allocation5 + $0x4f8] sm:$0xff]
    %v277 = vld [vmem:[#allocation5 + $0x500] sm:$0xff]
    %v278 = vld [vmem:[#allocation5 + $0x508] sm:$0xff]
    %v279 = vld [vmem:[#allocation5 + $0x510] sm:$0xff]
    %v280 = vld [vmem:[#allocation5 + $0x518] sm:$0xff]
    %v281 = vld [vmem:[#allocation5 + $0x520] sm:$0xff]
    %v282 = vld [vmem:[#allocation5 + $0x528] sm:$0xff]
    %v283 = vld [vmem:[#allocation5 + $0x530] sm:$0xff]
    %v284 = vld [vmem:[#allocation5 + $0x538] sm:$0xff]
    %v285 = vld [vmem:[#allocation5 + $0x540] sm:$0xff]
    %v286 = vld [vmem:[#allocation5 + $0x548] sm:$0xff]
    %v287 = vld [vmem:[#allocation5 + $0x550] sm:$0xff]
    %v288 = vld [vmem:[#allocation5 + $0x558] sm:$0xff]
    %v289 = vld [vmem:[#allocation5 + $0x560] sm:$0xff]
    %v290 = vld [vmem:[#allocation5 + $0x568] sm:$0xff]
    %v291 = vld [vmem:[#allocation5 + $0x570] sm:$0xff]
    %v292 = vld [vmem:[#allocation5 + $0x578] sm:$0xff]
    %v293 = vld [vmem:[#allocation5 + $0x580] sm:$0xff]
    %v294 = vld [vmem:[#allocation5 + $0x588] sm:$0xff]
    %v295 = vld [vmem:[#allocation5 + $0x590] sm:$0xff]
    %v296 = vld [vmem:[#allocation5 + $0x598] sm:$0xff]
    %v297 = vld [vmem:[#allocation5 + $0x5a0] sm:$0xff]
    %v298 = vld [vmem:[#allocation5 + $0x5a8] sm:$0xff]
    %v299 = vld [vmem:[#allocation5 + $0x5b0] sm:$0xff]
    %v300 = vld [vmem:[#allocation5 + $0x5b8] sm:$0xff]
    %v301 = vld [vmem:[#allocation5 + $0x5c0] sm:$0xff]
    %v302 = vld [vmem:[#allocation5 + $0x5c8] sm:$0xff]
    %v303 = vld [vmem:[#allocation5 + $0x5d0] sm:$0xff]
    %v304 = vld [vmem:[#allocation5 + $0x5d8] sm:$0xff]
    %v305 = vld [vmem:[#allocation5 + $0x5e0] sm:$0xff]
    %v306 = vld [vmem:[#allocation5 + $0x5e8] sm:$0xff]
    %v307 = vld [vmem:[#allocation5 + $0x5f0] sm:$0xff]
    %v308 = vld [vmem:[#allocation5 + $0x5f8] sm:$0xff]
    %v309 = vld [vmem:[#allocation5 + $0x600] sm:$0xff]
    %v310 = vld [vmem:[#allocation5 + $0x608] sm:$0xff]
    %v311 = vld [vmem:[#allocation5 + $0x610] sm:$0xff]
    %v312 = vld [vmem:[#allocation5 + $0x618] sm:$0xff]
    %v313 = vld [vmem:[#allocation5 + $0x620] sm:$0xff]
    %v314 = vld [vmem:[#allocation5 + $0x628] sm:$0xff]
    %v315 = vld [vmem:[#allocation5 + $0x630] sm:$0xff]
    %v316 = vld [vmem:[#allocation5 + $0x638] sm:$0xff]
    %v317 = vld [vmem:[#allocation5 + $0x640] sm:$0xff]
    %v318 = vld [vmem:[#allocation5 + $0x648] sm:$0xff]
    %v319 = vld [vmem:[#allocation5 + $0x650] sm:$0xff]
    %v320 = vld [vmem:[#allocation5 + $0x658] sm:$0xff]
    %v321 = vld [vmem:[#allocation5 + $0x660] sm:$0xff]
    %v322 = vld [vmem:[#allocation5 + $0x668] sm:$0xff]
    %v323 = vld [vmem:[#allocation5 + $0x670] sm:$0xff]
    %v324 = vld [vmem:[#allocation5 + $0x678] sm:$0xff]
    %v325 = vld [vmem:[#allocation5 + $0x680] sm:$0xff]
    %v326 = vld [vmem:[#allocation5 + $0x688] sm:$0xff]
    %v327 = vld [vmem:[#allocation5 + $0x690] sm:$0xff]
    %v328 = vld [vmem:[#allocation5 + $0x698] sm:$0xff]
    %v329 = vld [vmem:[#allocation5 + $0x6a0] sm:$0xff]
    %v330 = vld [vmem:[#allocation5 + $0x6a8] sm:$0xff]
    %v331 = vld [vmem:[#allocation5 + $0x6b0] sm:$0xff]
    %v332 = vld [vmem:[#allocation5 + $0x6b8] sm:$0xff]
    %v333 = vld [vmem:[#allocation5 + $0x6c0] sm:$0xff]
    %v334 = vld [vmem:[#allocation5 + $0x6c8] sm:$0xff]
    %v335 = vld [vmem:[#allocation5 + $0x6d0] sm:$0xff]
    %v336 = vld [vmem:[#allocation5 + $0x6d8] sm:$0xff]
    %v337 = vld [vmem:[#allocation5 + $0x6e0] sm:$0xff]
    %v338 = vld [vmem:[#allocation5 + $0x6e8] sm:$0xff]
    %v339 = vld [vmem:[#allocation5 + $0x6f0] sm:$0xff]
    %v340 = vld [vmem:[#allocation5 + $0x6f8] sm:$0xff]
    %v341 = vld [vmem:[#allocation5 + $0x700] sm:$0xff]
    %v342 = vld [vmem:[#allocation5 + $0x708] sm:$0xff]
    %v343 = vld [vmem:[#allocation5 + $0x710] sm:$0xff]
    %v344 = vld [vmem:[#allocation5 + $0x718] sm:$0xff]
    %v345 = vld [vmem:[#allocation5 + $0x720] sm:$0xff]
    %v346 = vld [vmem:[#allocation5 + $0x728] sm:$0xff]
    %v347 = vld [vmem:[#allocation5 + $0x730] sm:$0xff]
    %v348 = vld [vmem:[#allocation5 + $0x738] sm:$0xff]
    %v349 = vld [vmem:[#allocation5 + $0x740] sm:$0xff]
    %v350 = vld [vmem:[#allocation5 + $0x748] sm:$0xff]
    %v351 = vld [vmem:[#allocation5 + $0x750] sm:$0xff]
    %v352 = vld [vmem:[#allocation5 + $0x758] sm:$0xff]
    %v353 = vld [vmem:[#allocation5 + $0x760] sm:$0xff]
    %v354 = vld [vmem:[#allocation5 + $0x768] sm:$0xff]
    %v355 = vld [vmem:[#allocation5 + $0x770] sm:$0xff]
    %v356 = vld [vmem:[#allocation5 + $0x778] sm:$0xff]
    %v357 = vld [vmem:[#allocation5 + $0x780] sm:$0xff]
    %v358 = vld [vmem:[#allocation5 + $0x788] sm:$0xff]
    %v359 = vld [vmem:[#allocation5 + $0x790] sm:$0xff]
    %v360 = vld [vmem:[#allocation5 + $0x798] sm:$0xff]
    %v361 = vld [vmem:[#allocation5 + $0x7a0] sm:$0xff]
    %v362 = vld [vmem:[#allocation5 + $0x7a8] sm:$0xff]
    %v363 = vld [vmem:[#allocation5 + $0x7b0] sm:$0xff]
    %v364 = vld [vmem:[#allocation5 + $0x7b8] sm:$0xff]
    %v365 = vld [vmem:[#allocation5 + $0x7c0] sm:$0xff]
    %v366 = vld [vmem:[#allocation5 + $0x7c8] sm:$0xff]
    %v367 = vld [vmem:[#allocation5 + $0x7d0] sm:$0xff]
    %v368 = vld [vmem:[#allocation5 + $0x7d8] sm:$0xff]
    %v369 = vld [vmem:[#allocation5 + $0x7e0] sm:$0xff]
    %v370 = vld [vmem:[#allocation5 + $0x7e8] sm:$0xff]
    %v371 = vld [vmem:[#allocation5 + $0x7f0] sm:$0xff]
    %v372 = vld [vmem:[#allocation5 + $0x7f8] sm:$0xff]
    %v373 = vld [vmem:[#allocation5 + $0x800] sm:$0xff]
    %v374 = vld [vmem:[#allocation5 + $0x808] sm:$0xff]
    %v375 = vld [vmem:[#allocation5 + $0x810] sm:$0xff]
    %v376 = vld [vmem:[#allocation5 + $0x818] sm:$0xff]
    %v377 = vld [vmem:[#allocation5 + $0x820] sm:$0xff]
    %v378 = vld [vmem:[#allocation5 + $0x828] sm:$0xff]
    %v379 = vld [vmem:[#allocation5 + $0x830] sm:$0xff]
    %v380 = vld [vmem:[#allocation5 + $0x838] sm:$0xff]
    %v381 = vld [vmem:[#allocation5 + $0x840] sm:$0xff]
    %v382 = vld [vmem:[#allocation5 + $0x848] sm:$0xff]
    %v383 = vld [vmem:[#allocation5 + $0x850] sm:$0xff]
    %v384 = vld [vmem:[#allocation5 + $0x858] sm:$0xff]
    %v385 = vld [vmem:[#allocation5 + $0x860] sm:$0xff]
    %v386 = vld [vmem:[#allocation5 + $0x868] sm:$0xff]
    %v387 = vld [vmem:[#allocation5 + $0x870] sm:$0xff]
    %v388 = vld [vmem:[#allocation5 + $0x878] sm:$0xff]
    %v389 = vld [vmem:[#allocation5 + $0x880] sm:$0xff]
    %v390 = vld [vmem:[#allocation5 + $0x888] sm:$0xff]
    %v391 = vld [vmem:[#allocation5 + $0x890] sm:$0xff]
    %v392 = vld [vmem:[#allocation5 + $0x898] sm:$0xff]
    %v393 = vld [vmem:[#allocation5 + $0x8a0] sm:$0xff]
    %v394 = vld [vmem:[#allocation5 + $0x8a8] sm:$0xff]
    %v395 = vld [vmem:[#allocation5 + $0x8b0] sm:$0xff]
    %v396 = vld [vmem:[#allocation5 + $0x8b8] sm:$0xff]
    %v397 = vld [vmem:[#allocation5 + $0x8c0] sm:$0xff]
    %v398 = vld [vmem:[#allocation5 + $0x8c8] sm:$0xff]
    %v399 = vld [vmem:[#allocation5 + $0x8d0] sm:$0xff]
    %v400 = vld [vmem:[#allocation5 + $0x8d8] sm:$0xff]
    %v401 = vld [vmem:[#allocation5 + $0x8e0] sm:$0xff]
    %v402 = vld [vmem:[#allocation5 + $0x8e8] sm:$0xff]
    %v403 = vld [vmem:[#allocation5 + $0x8f0] sm:$0xff]
    %v404 = vld [vmem:[#allocation5 + $0x8f8] sm:$0xff]
    %v405 = vld [vmem:[#allocation5 + $0x900] sm:$0xff]
    %v406 = vld [vmem:[#allocation5 + $0x908] sm:$0xff]
    %v407 = vld [vmem:[#allocation5 + $0x910] sm:$0xff]
    %v408 = vld [vmem:[#allocation5 + $0x918] sm:$0xff]
    %v409 = vld [vmem:[#allocation5 + $0x920] sm:$0xff]
    %v410 = vld [vmem:[#allocation5 + $0x928] sm:$0xff]
    %v411 = vld [vmem:[#allocation5 + $0x930] sm:$0xff]
    %v412 = vld [vmem:[#allocation5 + $0x938] sm:$0xff]
    %v413 = vld [vmem:[#allocation5 + $0x940] sm:$0xff]
    %v414 = vld [vmem:[#allocation5 + $0x948] sm:$0xff]
    %v415 = vld [vmem:[#allocation5 + $0x950] sm:$0xff]
    %v416 = vld [vmem:[#allocation5 + $0x958] sm:$0xff]
    %v417 = vld [vmem:[#allocation5 + $0x960] sm:$0xff]
    %v418 = vld [vmem:[#allocation5 + $0x968] sm:$0xff]
    %v419 = vld [vmem:[#allocation5 + $0x970] sm:$0xff]
    %v420 = vld [vmem:[#allocation5 + $0x978] sm:$0xff]
    %v421 = vld [vmem:[#allocation5 + $0x980] sm:$0xff]
    %v422 = vld [vmem:[#allocation5 + $0x988] sm:$0xff]
    %v423 = vld [vmem:[#allocation5 + $0x990] sm:$0xff]
    %v424 = vld [vmem:[#allocation5 + $0x998] sm:$0xff]
    %v425 = vld [vmem:[#allocation5 + $0x9a0] sm:$0xff]
    %v426 = vld [vmem:[#allocation5 + $0x9a8] sm:$0xff]
    %v427 = vld [vmem:[#allocation5 + $0x9b0] sm:$0xff]
    %v428 = vld [vmem:[#allocation5 + $0x9b8] sm:$0xff]
    %v429 = vld [vmem:[#allocation5 + $0x9c0] sm:$0xff]
    %v430 = vld [vmem:[#allocation5 + $0x9c8] sm:$0xff]
    %v431 = vld [vmem:[#allocation5 + $0x9d0] sm:$0xff]
    %v432 = vld [vmem:[#allocation5 + $0x9d8] sm:$0xff]
    %v433 = vld [vmem:[#allocation5 + $0x9e0] sm:$0xff]
    %v434 = vld [vmem:[#allocation5 + $0x9e8] sm:$0xff]
    %v435 = vld [vmem:[#allocation5 + $0x9f0] sm:$0xff]
    %v436 = vld [vmem:[#allocation5 + $0x9f8] sm:$0xff]
    %v437 = vld [vmem:[#allocation5 + $0xa00] sm:$0xff]
    %v438 = vld [vmem:[#allocation5 + $0xa08] sm:$0xff]
    %v439 = vld [vmem:[#allocation5 + $0xa10] sm:$0xff]
    %v440 = vld [vmem:[#allocation5 + $0xa18] sm:$0xff]
    %v441 = vld [vmem:[#allocation5 + $0xa20] sm:$0xff]
    %v442 = vld [vmem:[#allocation5 + $0xa28] sm:$0xff]
    %v443 = vld [vmem:[#allocation5 + $0xa30] sm:$0xff]
    %v444 = vld [vmem:[#allocation5 + $0xa38] sm:$0xff]
    %v445 = vld [vmem:[#allocation5 + $0xa40] sm:$0xff]
    %v446 = vld [vmem:[#allocation5 + $0xa48] sm:$0xff]
    %v447 = vld [vmem:[#allocation5 + $0xa50] sm:$0xff]
    %v448 = vld [vmem:[#allocation5 + $0xa58] sm:$0xff]
    %v449 = vld [vmem:[#allocation5 + $0xa60] sm:$0xff]
    %v450 = vld [vmem:[#allocation5 + $0xa68] sm:$0xff]
    %v451 = vld [vmem:[#allocation5 + $0xa70] sm:$0xff]
    %v452 = vld [vmem:[#allocation5 + $0xa78] sm:$0xff]
    %v453 = vld [vmem:[#allocation5 + $0xa80] sm:$0xff]
    %v454 = vld [vmem:[#allocation5 + $0xa88] sm:$0xff]
    %v455 = vld [vmem:[#allocation5 + $0xa90] sm:$0xff]
    %v456 = vld [vmem:[#allocation5 + $0xa98] sm:$0xff]
    %v457 = vld [vmem:[#allocation5 + $0xaa0] sm:$0xff]
    %v458 = vld [vmem:[#allocation5 + $0xaa8] sm:$0xff]
    %v459 = vld [vmem:[#allocation5 + $0xab0] sm:$0xff]
    %v460 = vld [vmem:[#allocation5 + $0xab8] sm:$0xff]
    %v461 = vld [vmem:[#allocation5 + $0xac0] sm:$0xff]
    %v462 = vld [vmem:[#allocation5 + $0xac8] sm:$0xff]
    %v463 = vld [vmem:[#allocation5 + $0xad0] sm:$0xff]
    %v464 = vld [vmem:[#allocation5 + $0xad8] sm:$0xff]
    %v465 = vld [vmem:[#allocation5 + $0xae0] sm:$0xff]
    %v466 = vld [vmem:[#allocation5 + $0xae8] sm:$0xff]
    %v467 = vld [vmem:[#allocation5 + $0xaf0] sm:$0xff]
    %v468 = vld [vmem:[#allocation5 + $0xaf8] sm:$0xff]
    %v469 = vld [vmem:[#allocation5 + $0xb00] sm:$0xff]
    %v470 = vld [vmem:[#allocation5 + $0xb08] sm:$0xff]
    %v471 = vld [vmem:[#allocation5 + $0xb10] sm:$0xff]
    %v472 = vld [vmem:[#allocation5 + $0xb18] sm:$0xff]
    %v473 = vld [vmem:[#allocation5 + $0xb20] sm:$0xff]
    %v474 = vld [vmem:[#allocation5 + $0xb28] sm:$0xff]
    %v475 = vld [vmem:[#allocation5 + $0xb30] sm:$0xff]
    %v476 = vld [vmem:[#allocation5 + $0xb38] sm:$0xff]
    %v477 = vld [vmem:[#allocation5 + $0xb40] sm:$0xff]
    %v478 = vld [vmem:[#allocation5 + $0xb48] sm:$0xff]
    %v479 = vld [vmem:[#allocation5 + $0xb50] sm:$0xff]
    %v480 = vld [vmem:[#allocation5 + $0xb58] sm:$0xff]
    %v481 = vld [vmem:[#allocation5 + $0xb60] sm:$0xff]
    %v482 = vld [vmem:[#allocation5 + $0xb68] sm:$0xff]
    %v483 = vld [vmem:[#allocation5 + $0xb70] sm:$0xff]
    %v484 = vld [vmem:[#allocation5 + $0xb78] sm:$0xff]
    %v485 = vld [vmem:[#allocation5 + $0xb80] sm:$0xff]
    %v486 = vld [vmem:[#allocation5 + $0xb88] sm:$0xff]
    %v487 = vld [vmem:[#allocation5 + $0xb90] sm:$0xff]
    %v488 = vld [vmem:[#allocation5 + $0xb98] sm:$0xff]
    %v489 = vld [vmem:[#allocation5 + $0xba0] sm:$0xff]
    %v490 = vld [vmem:[#allocation5 + $0xba8] sm:$0xff]
    %v491 = vld [vmem:[#allocation5 + $0xbb0] sm:$0xff]
    %v492 = vld [vmem:[#allocation5 + $0xbb8] sm:$0xff]
    %v493 = vld [vmem:[#allocation5 + $0xbc0] sm:$0xff]
    %v494 = vld [vmem:[#allocation5 + $0xbc8] sm:$0xff]
    %v495 = vld [vmem:[#allocation5 + $0xbd0] sm:$0xff]
    %v496 = vld [vmem:[#allocation5 + $0xbd8] sm:$0xff]
    %v497 = vld [vmem:[#allocation5 + $0xbe0] sm:$0xff]
    %v498 = vld [vmem:[#allocation5 + $0xbe8] sm:$0xff]
    %v499 = vld [vmem:[#allocation5 + $0xbf0] sm:$0xff]
    %v500 = vld [vmem:[#allocation5 + $0xbf8] sm:$0xff]
    %v501 = vld [vmem:[#allocation7] sm:$0xff]
    %v503 = vlaneseq
    %v504 = vshrl.u32 %v503, 7
    %v505 = vsub.s32 0, %v504
    %v506 = vrot.slane %v501, %v505
    %v507 = vlaneseq
    %v508 = vshrl.u32 %v507, 7
    %v509 = vsub.s32 1, %v508
    %v510 = vrot.slane %v501, %v509
    %v511 = vlaneseq
    %v512 = vshrl.u32 %v511, 7
    %v513 = vsub.s32 2, %v512
    %v514 = vrot.slane %v501, %v513
    %v515 = vlaneseq
    %v516 = vshrl.u32 %v515, 7
    %v517 = vsub.s32 3, %v516
    %v518 = vrot.slane %v501, %v517
    %v519 = vlaneseq
    %v520 = vshrl.u32 %v519, 7
    %v521 = vsub.s32 4, %v520
    %v522 = vrot.slane %v501, %v521
    %v523 = vlaneseq
    %v524 = vshrl.u32 %v523, 7
    %v525 = vsub.s32 5, %v524
    %v526 = vrot.slane %v501, %v525
    %v527 = vlaneseq
    %v528 = vshrl.u32 %v527, 7
    %v529 = vsub.s32 6, %v528
    %v530 = vrot.slane %v501, %v529
    %v531 = vlaneseq
    %v532 = vshrl.u32 %v531, 7
    %v533 = vsub.s32 7, %v532
    %v534 = vrot.slane %v501, %v533
    %543 = vmatprep.subr.mxu0 %v238
    %544 = vmatpush1.msra.mxu0 %v237
    %545 = vmatprep.subr.mxu0 %v230
    %546 = vmatpush1.msra.mxu0 %v229
    %547 = vmatprep.subr.mxu0 %v222
    %548 = vmatpush1.msra.mxu0 %v221
    %549 = vmatprep.subr.mxu0 %v214
    %550 = vmatpush1.msra.mxu0 %v213
    %551 = vmatprep.subr.mxu0 %v206
    %552 = vmatpush1.msra.mxu0 %v205
    %553 = vmatprep.subr.mxu0 %v198
    %554 = vmatpush1.msra.mxu0 %v197
    %555 = vmatprep.subr.mxu0 %v190
    %556 = vmatpush1.msra.mxu0 %v189
    %557 = vmatprep.subr.mxu0 %v182
    %558 = vmatpush1.msra.mxu0 %v181
    %559 = vmatprep.subr.mxu0 %v174
    %560 = vmatpush1.msra.mxu0 %v173
    %561 = vmatprep.subr.mxu0 %v166
    %562 = vmatpush1.msra.mxu0 %v165
    %563 = vmatprep.subr.mxu0 %v158
    %564 = vmatpush1.msra.mxu0 %v157
    %565 = vmatprep.subr.mxu0 %v150
    %566 = vmatpush1.msra.mxu0 %v149
    %567 = vmatprep.subr.mxu0 %v142
    %568 = vmatpush1.msra.mxu0 %v141
    %569 = vmatprep.subr.mxu0 %v134
    %570 = vmatpush1.msra.mxu0 %v133
    %571 = vmatprep.subr.mxu0 %v126
    %572 = vmatpush1.msra.mxu0 %v125
    %573 = vmatprep.subr.mxu0 %v118
    %574 = vmatpush1.msra.mxu0 %v117
    %575 = vmatprep.subr.mxu0 %v366
    %576 = vmatpush2.msra.mxu0 %v365
    %577 = vmatprep.subr.mxu0 %v358
    %578 = vmatpush2.msra.mxu0 %v357
    %579 = vmatprep.subr.mxu0 %v350
    %580 = vmatpush2.msra.mxu0 %v349
    %581 = vmatprep.subr.mxu0 %v342
    %582 = vmatpush2.msra.mxu0 %v341
    %583 = vmatprep.subr.mxu0 %v334
    %584 = vmatpush2.msra.mxu0 %v333
    %585 = vmatprep.subr.mxu0 %v326
    %586 = vmatpush2.msra.mxu0 %v325
    %587 = vmatprep.subr.mxu0 %v318
    %588 = vmatpush2.msra.mxu0 %v317
    %589 = vmatprep.subr.mxu0 %v310
    %590 = vmatpush2.msra.mxu0 %v309
    %591 = vmatprep.subr.mxu0 %v302
    %592 = vmatpush2.msra.mxu0 %v301
    %593 = vmatprep.subr.mxu0 %v294
    %594 = vmatpush2.msra.mxu0 %v293
    %595 = vmatprep.subr.mxu0 %v286
    %596 = vmatpush2.msra.mxu0 %v285
    %597 = vmatprep.subr.mxu0 %v278
    %598 = vmatpush2.msra.mxu0 %v277
    %599 = vmatprep.subr.mxu0 %v270
    %600 = vmatpush2.msra.mxu0 %v269
    %601 = vmatprep.subr.mxu0 %v262
    %602 = vmatpush2.msra.mxu0 %v261
    %603 = vmatprep.subr.mxu0 %v254
    %604 = vmatpush2.msra.mxu0 %v253
    %605 = vmatprep.subr.mxu0 %v246
    %606 = vmatpush2.msra.mxu0 %v245
    %607 = vmatprep.mubr.f32.mxu0 %v115
    %608 = vmatmul.mubr.f32.gmra.mxu0 %v114
    %v609 = vpop.f32.mrf.mxu0
    %v610 = vadd.f32 %v506, %v609
    %v611 = vpop.f32.mrf.mxu0
    %v612 = vadd.f32 %v510, %v611
    %613 = vdwg.mxu0
    %614 = vmatprep.subr.mxu0 %v494
    %615 = vmatpush1.msra.mxu0 %v493
    %616 = vmatprep.subr.mxu0 %v486
    %617 = vmatpush1.msra.mxu0 %v485
    %618 = vmatprep.subr.mxu0 %v478
    %619 = vmatpush1.msra.mxu0 %v477
    %620 = vmatprep.subr.mxu0 %v470
    %621 = vmatpush1.msra.mxu0 %v469
    %622 = vmatprep.subr.mxu0 %v462
    %623 = vmatpush1.msra.mxu0 %v461
    %624 = vmatprep.subr.mxu0 %v454
    %625 = vmatpush1.msra.mxu0 %v453
    %626 = vmatprep.subr.mxu0 %v446
    %627 = vmatpush1.msra.mxu0 %v445
    %628 = vmatprep.subr.mxu0 %v438
    %629 = vmatpush1.msra.mxu0 %v437
    %630 = vmatprep.subr.mxu0 %v430
    %631 = vmatpush1.msra.mxu0 %v429
    %632 = vmatprep.subr.mxu0 %v422
    %633 = vmatpush1.msra.mxu0 %v421
    %634 = vmatprep.subr.mxu0 %v414
    %635 = vmatpush1.msra.mxu0 %v413
    %636 = vmatprep.subr.mxu0 %v406
    %637 = vmatpush1.msra.mxu0 %v405
    %638 = vmatprep.subr.mxu0 %v398
    %639 = vmatpush1.msra.mxu0 %v397
    %640 = vmatprep.subr.mxu0 %v390
    %641 = vmatpush1.msra.mxu0 %v389
    %642 = vmatprep.subr.mxu0 %v382
    %643 = vmatpush1.msra.mxu0 %v381
    %644 = vmatprep.subr.mxu0 %v374
    %645 = vmatpush1.msra.mxu0 %v373
    %646 = vmatprep.subr.mxu0 0.0
    %647 = vmatpush2.msra.mxu0 0.0
    %648 = vmatprep.subr.mxu0 0.0
    %649 = vmatpush2.msra.mxu0 0.0
    %650 = vmatprep.subr.mxu0 0.0
    %651 = vmatpush2.msra.mxu0 0.0
    %652 = vmatprep.subr.mxu0 0.0
    %653 = vmatpush2.msra.mxu0 0.0
    %654 = vmatprep.subr.mxu0 0.0
    %655 = vmatpush2.msra.mxu0 0.0
    %656 = vmatprep.subr.mxu0 0.0
    %657 = vmatpush2.msra.mxu0 0.0
    %658 = vmatprep.subr.mxu0 0.0
    %659 = vmatpush2.msra.mxu0 0.0
    %660 = vmatprep.subr.mxu0 0.0
    %661 = vmatpush2.msra.mxu0 0.0
    %662 = vmatprep.subr.mxu0 0.0
    %663 = vmatpush2.msra.mxu0 0.0
    %664 = vmatprep.subr.mxu0 0.0
    %665 = vmatpush2.msra.mxu0 0.0
    %666 = vmatprep.subr.mxu0 0.0
    %667 = vmatpush2.msra.mxu0 0.0
    %668 = vmatprep.subr.mxu0 0.0
    %669 = vmatpush2.msra.mxu0 0.0
    %670 = vmatprep.subr.mxu0 0.0
    %671 = vmatpush2.msra.mxu0 0.0
    %672 = vmatprep.subr.mxu0 0.0
    %673 = vmatpush2.msra.mxu0 0.0
    %674 = vmatprep.subr.mxu0 0.0
    %675 = vmatpush2.msra.mxu0 0.0
    %676 = vmatprep.subr.mxu0 0.0
    %677 = vmatpush2.msra.mxu0 0.0
    %678 = vmatprep.mubr.f32.mxu0 0.0
    %679 = vmatmul.mubr.f32.gmra.mxu0 %v116
    %v680 = vpop.f32.mrf.mxu0
    %v681 = vadd.f32 %v610, %v680
    %v682 = vpop.f32.mrf.mxu0
    %v683 = vadd.f32 %v612, %v682
    %684 = vdwg.mxu0
    %685 = vmatprep.subr.mxu0 %v240
    %686 = vmatpush1.msra.mxu0 %v239
    %687 = vmatprep.subr.mxu0 %v232
    %688 = vmatpush1.msra.mxu0 %v231
    %689 = vmatprep.subr.mxu0 %v224
    %690 = vmatpush1.msra.mxu0 %v223
    %691 = vmatprep.subr.mxu0 %v216
    %692 = vmatpush1.msra.mxu0 %v215
    %693 = vmatprep.subr.mxu0 %v208
    %694 = vmatpush1.msra.mxu0 %v207
    %695 = vmatprep.subr.mxu0 %v200
    %696 = vmatpush1.msra.mxu0 %v199
    %697 = vmatprep.subr.mxu0 %v192
    %698 = vmatpush1.msra.mxu0 %v191
    %699 = vmatprep.subr.mxu0 %v184
    %700 = vmatpush1.msra.mxu0 %v183
    %701 = vmatprep.subr.mxu0 %v176
    %702 = vmatpush1.msra.mxu0 %v175
    %703 = vmatprep.subr.mxu0 %v168
    %704 = vmatpush1.msra.mxu0 %v167
    %705 = vmatprep.subr.mxu0 %v160
    %706 = vmatpush1.msra.mxu0 %v159
    %707 = vmatprep.subr.mxu0 %v152
    %708 = vmatpush1.msra.mxu0 %v151
    %709 = vmatprep.subr.mxu0 %v144
    %710 = vmatpush1.msra.mxu0 %v143
    %711 = vmatprep.subr.mxu0 %v136
    %712 = vmatpush1.msra.mxu0 %v135
    %713 = vmatprep.subr.mxu0 %v128
    %714 = vmatpush1.msra.mxu0 %v127
    %715 = vmatprep.subr.mxu0 %v120
    %716 = vmatpush1.msra.mxu0 %v119
    %717 = vmatprep.subr.mxu0 %v368
    %718 = vmatpush2.msra.mxu0 %v367
    %719 = vmatprep.subr.mxu0 %v360
    %720 = vmatpush2.msra.mxu0 %v359
    %721 = vmatprep.subr.mxu0 %v352
    %722 = vmatpush2.msra.mxu0 %v351
    %723 = vmatprep.subr.mxu0 %v344
    %724 = vmatpush2.msra.mxu0 %v343
    %725 = vmatprep.subr.mxu0 %v336
    %726 = vmatpush2.msra.mxu0 %v335
    %727 = vmatprep.subr.mxu0 %v328
    %728 = vmatpush2.msra.mxu0 %v327
    %729 = vmatprep.subr.mxu0 %v320
    %730 = vmatpush2.msra.mxu0 %v319
    %731 = vmatprep.subr.mxu0 %v312
    %732 = vmatpush2.msra.mxu0 %v311
    %733 = vmatprep.subr.mxu0 %v304
    %734 = vmatpush2.msra.mxu0 %v303
    %735 = vmatprep.subr.mxu0 %v296
    %736 = vmatpush2.msra.mxu0 %v295
    %737 = vmatprep.subr.mxu0 %v288
    %738 = vmatpush2.msra.mxu0 %v287
    %739 = vmatprep.subr.mxu0 %v280
    %740 = vmatpush2.msra.mxu0 %v279
    %741 = vmatprep.subr.mxu0 %v272
    %742 = vmatpush2.msra.mxu0 %v271
    %743 = vmatprep.subr.mxu0 %v264
    %744 = vmatpush2.msra.mxu0 %v263
    %745 = vmatprep.subr.mxu0 %v256
    %746 = vmatpush2.msra.mxu0 %v255
    %747 = vmatprep.subr.mxu0 %v248
    %748 = vmatpush2.msra.mxu0 %v247
    %749 = vmatprep.mubr.f32.mxu0 %v115
    %750 = vmatmul.mubr.f32.gmra.mxu0 %v114
    %v751 = vpop.f32.mrf.mxu0
    %v752 = vadd.f32 %v514, %v751
    %v753 = vpop.f32.mrf.mxu0
    %v754 = vadd.f32 %v518, %v753
    %755 = vdwg.mxu0
    %756 = vmatprep.subr.mxu0 %v496
    %757 = vmatpush1.msra.mxu0 %v495
    %758 = vmatprep.subr.mxu0 %v488
    %759 = vmatpush1.msra.mxu0 %v487
    %760 = vmatprep.subr.mxu0 %v480
    %761 = vmatpush1.msra.mxu0 %v479
    %762 = vmatprep.subr.mxu0 %v472
    %763 = vmatpush1.msra.mxu0 %v471
    %764 = vmatprep.subr.mxu0 %v464
    %765 = vmatpush1.msra.mxu0 %v463
    %766 = vmatprep.subr.mxu0 %v456
    %767 = vmatpush1.msra.mxu0 %v455
    %768 = vmatprep.subr.mxu0 %v448
    %769 = vmatpush1.msra.mxu0 %v447
    %770 = vmatprep.subr.mxu0 %v440
    %771 = vmatpush1.msra.mxu0 %v439
    %772 = vmatprep.subr.mxu0 %v432
    %773 = vmatpush1.msra.mxu0 %v431
    %774 = vmatprep.subr.mxu0 %v424
    %775 = vmatpush1.msra.mxu0 %v423
    %776 = vmatprep.subr.mxu0 %v416
    %777 = vmatpush1.msra.mxu0 %v415
    %778 = vmatprep.subr.mxu0 %v408
    %779 = vmatpush1.msra.mxu0 %v407
    %780 = vmatprep.subr.mxu0 %v400
    %781 = vmatpush1.msra.mxu0 %v399
    %782 = vmatprep.subr.mxu0 %v392
    %783 = vmatpush1.msra.mxu0 %v391
    %784 = vmatprep.subr.mxu0 %v384
    %785 = vmatpush1.msra.mxu0 %v383
    %786 = vmatprep.subr.mxu0 %v376
    %787 = vmatpush1.msra.mxu0 %v375
    %788 = vmatprep.subr.mxu0 0.0
    %789 = vmatpush2.msra.mxu0 0.0
    %790 = vmatprep.subr.mxu0 0.0
    %791 = vmatpush2.msra.mxu0 0.0
    %792 = vmatprep.subr.mxu0 0.0
    %793 = vmatpush2.msra.mxu0 0.0
    %794 = vmatprep.subr.mxu0 0.0
    %795 = vmatpush2.msra.mxu0 0.0
    %796 = vmatprep.subr.mxu0 0.0
    %797 = vmatpush2.msra.mxu0 0.0
    %798 = vmatprep.subr.mxu0 0.0
    %799 = vmatpush2.msra.mxu0 0.0
    %800 = vmatprep.subr.mxu0 0.0
    %801 = vmatpush2.msra.mxu0 0.0
    %802 = vmatprep.subr.mxu0 0.0
    %803 = vmatpush2.msra.mxu0 0.0
    %804 = vmatprep.subr.mxu0 0.0
    %805 = vmatpush2.msra.mxu0 0.0
    %806 = vmatprep.subr.mxu0 0.0
    %807 = vmatpush2.msra.mxu0 0.0
    %808 = vmatprep.subr.mxu0 0.0
    %809 = vmatpush2.msra.mxu0 0.0
    %810 = vmatprep.subr.mxu0 0.0
    %811 = vmatpush2.msra.mxu0 0.0
    %812 = vmatprep.subr.mxu0 0.0
    %813 = vmatpush2.msra.mxu0 0.0
    %814 = vmatprep.subr.mxu0 0.0
    %815 = vmatpush2.msra.mxu0 0.0
    %816 = vmatprep.subr.mxu0 0.0
    %817 = vmatpush2.msra.mxu0 0.0
    %818 = vmatprep.subr.mxu0 0.0
    %819 = vmatpush2.msra.mxu0 0.0
    %820 = vmatprep.mubr.f32.mxu0 0.0
    %821 = vmatmul.mubr.f32.gmra.mxu0 %v116
    %v822 = vpop.f32.mrf.mxu0
    %v823 = vadd.f32 %v752, %v822
    %v824 = vpop.f32.mrf.mxu0
    %v825 = vadd.f32 %v754, %v824
    %826 = vdwg.mxu0
    %827 = vmatprep.subr.mxu0 %v242
    %828 = vmatpush1.msra.mxu0 %v241
    %829 = vmatprep.subr.mxu0 %v234
    %830 = vmatpush1.msra.mxu0 %v233
    %831 = vmatprep.subr.mxu0 %v226
    %832 = vmatpush1.msra.mxu0 %v225
    %833 = vmatprep.subr.mxu0 %v218
    %834 = vmatpush1.msra.mxu0 %v217
    %835 = vmatprep.subr.mxu0 %v210
    %836 = vmatpush1.msra.mxu0 %v209
    %837 = vmatprep.subr.mxu0 %v202
    %838 = vmatpush1.msra.mxu0 %v201
    %839 = vmatprep.subr.mxu0 %v194
    %840 = vmatpush1.msra.mxu0 %v193
    %841 = vmatprep.subr.mxu0 %v186
    %842 = vmatpush1.msra.mxu0 %v185
    %843 = vmatprep.subr.mxu0 %v178
    %844 = vmatpush1.msra.mxu0 %v177
    %845 = vmatprep.subr.mxu0 %v170
    %846 = vmatpush1.msra.mxu0 %v169
    %847 = vmatprep.subr.mxu0 %v162
    %848 = vmatpush1.msra.mxu0 %v161
    %849 = vmatprep.subr.mxu0 %v154
    %850 = vmatpush1.msra.mxu0 %v153
    %851 = vmatprep.subr.mxu0 %v146
    %852 = vmatpush1.msra.mxu0 %v145
    %853 = vmatprep.subr.mxu0 %v138
    %854 = vmatpush1.msra.mxu0 %v137
    %855 = vmatprep.subr.mxu0 %v130
    %856 = vmatpush1.msra.mxu0 %v129
    %857 = vmatprep.subr.mxu0 %v122
    %858 = vmatpush1.msra.mxu0 %v121
    %859 = vmatprep.subr.mxu0 %v370
    %860 = vmatpush2.msra.mxu0 %v369
    %861 = vmatprep.subr.mxu0 %v362
    %862 = vmatpush2.msra.mxu0 %v361
    %863 = vmatprep.subr.mxu0 %v354
    %864 = vmatpush2.msra.mxu0 %v353
    %865 = vmatprep.subr.mxu0 %v346
    %866 = vmatpush2.msra.mxu0 %v345
    %867 = vmatprep.subr.mxu0 %v338
    %868 = vmatpush2.msra.mxu0 %v337
    %869 = vmatprep.subr.mxu0 %v330
    %870 = vmatpush2.msra.mxu0 %v329
    %871 = vmatprep.subr.mxu0 %v322
    %872 = vmatpush2.msra.mxu0 %v321
    %873 = vmatprep.subr.mxu0 %v314
    %874 = vmatpush2.msra.mxu0 %v313
    %875 = vmatprep.subr.mxu0 %v306
    %876 = vmatpush2.msra.mxu0 %v305
    %877 = vmatprep.subr.mxu0 %v298
    %878 = vmatpush2.msra.mxu0 %v297
    %879 = vmatprep.subr.mxu0 %v290
    %880 = vmatpush2.msra.mxu0 %v289
    %881 = vmatprep.subr.mxu0 %v282
    %882 = vmatpush2.msra.mxu0 %v281
    %883 = vmatprep.subr.mxu0 %v274
    %884 = vmatpush2.msra.mxu0 %v273
    %885 = vmatprep.subr.mxu0 %v266
    %886 = vmatpush2.msra.mxu0 %v265
    %887 = vmatprep.subr.mxu0 %v258
    %888 = vmatpush2.msra.mxu0 %v257
    %889 = vmatprep.subr.mxu0 %v250
    %890 = vmatpush2.msra.mxu0 %v249
    %891 = vmatprep.mubr.f32.mxu0 %v115
    %892 = vmatmul.mubr.f32.gmra.mxu0 %v114
    %v893 = vpop.f32.mrf.mxu0
    %v894 = vadd.f32 %v522, %v893
    %v895 = vpop.f32.mrf.mxu0
    %v896 = vadd.f32 %v526, %v895
    %897 = vdwg.mxu0
    %898 = vmatprep.subr.mxu0 %v498
    %899 = vmatpush1.msra.mxu0 %v497
    %900 = vmatprep.subr.mxu0 %v490
    %901 = vmatpush1.msra.mxu0 %v489
    %902 = vmatprep.subr.mxu0 %v482
    %903 = vmatpush1.msra.mxu0 %v481
    %904 = vmatprep.subr.mxu0 %v474
    %905 = vmatpush1.msra.mxu0 %v473
    %906 = vmatprep.subr.mxu0 %v466
    %907 = vmatpush1.msra.mxu0 %v465
    %908 = vmatprep.subr.mxu0 %v458
    %909 = vmatpush1.msra.mxu0 %v457
    %910 = vmatprep.subr.mxu0 %v450
    %911 = vmatpush1.msra.mxu0 %v449
    %912 = vmatprep.subr.mxu0 %v442
    %913 = vmatpush1.msra.mxu0 %v441
    %914 = vmatprep.subr.mxu0 %v434
    %915 = vmatpush1.msra.mxu0 %v433
    %916 = vmatprep.subr.mxu0 %v426
    %917 = vmatpush1.msra.mxu0 %v425
    %918 = vmatprep.subr.mxu0 %v418
    %919 = vmatpush1.msra.mxu0 %v417
    %920 = vmatprep.subr.mxu0 %v410
    %921 = vmatpush1.msra.mxu0 %v409
    %922 = vmatprep.subr.mxu0 %v402
    %923 = vmatpush1.msra.mxu0 %v401
    %924 = vmatprep.subr.mxu0 %v394
    %925 = vmatpush1.msra.mxu0 %v393
    %926 = vmatprep.subr.mxu0 %v386
    %927 = vmatpush1.msra.mxu0 %v385
    %928 = vmatprep.subr.mxu0 %v378
    %929 = vmatpush1.msra.mxu0 %v377
    %930 = vmatprep.subr.mxu0 0.0
    %931 = vmatpush2.msra.mxu0 0.0
    %932 = vmatprep.subr.mxu0 0.0
    %933 = vmatpush2.msra.mxu0 0.0
    %934 = vmatprep.subr.mxu0 0.0
    %935 = vmatpush2.msra.mxu0 0.0
    %936 = vmatprep.subr.mxu0 0.0
    %937 = vmatpush2.msra.mxu0 0.0
    %938 = vmatprep.subr.mxu0 0.0
    %939 = vmatpush2.msra.mxu0 0.0
    %940 = vmatprep.subr.mxu0 0.0
    %941 = vmatpush2.msra.mxu0 0.0
    %942 = vmatprep.subr.mxu0 0.0
    %943 = vmatpush2.msra.mxu0 0.0
    %944 = vmatprep.subr.mxu0 0.0
    %945 = vmatpush2.msra.mxu0 0.0
    %946 = vmatprep.subr.mxu0 0.0
    %947 = vmatpush2.msra.mxu0 0.0
    %948 = vmatprep.subr.mxu0 0.0
    %949 = vmatpush2.msra.mxu0 0.0
    %950 = vmatprep.subr.mxu0 0.0
    %951 = vmatpush2.msra.mxu0 0.0
    %952 = vmatprep.subr.mxu0 0.0
    %953 = vmatpush2.msra.mxu0 0.0
    %954 = vmatprep.subr.mxu0 0.0
    %955 = vmatpush2.msra.mxu0 0.0
    %956 = vmatprep.subr.mxu0 0.0
    %957 = vmatpush2.msra.mxu0 0.0
    %958 = vmatprep.subr.mxu0 0.0
    %959 = vmatpush2.msra.mxu0 0.0
    %960 = vmatprep.subr.mxu0 0.0
    %961 = vmatpush2.msra.mxu0 0.0
    %962 = vmatprep.mubr.f32.mxu0 0.0
    %963 = vmatmul.mubr.f32.gmra.mxu0 %v116
    %v964 = vpop.f32.mrf.mxu0
    %v965 = vadd.f32 %v894, %v964
    %v966 = vpop.f32.mrf.mxu0
    %v967 = vadd.f32 %v896, %v966
    %968 = vdwg.mxu0
    %969 = vmatprep.subr.mxu0 %v244
    %970 = vmatpush1.msra.mxu0 %v243
    %971 = vmatprep.subr.mxu0 %v236
    %972 = vmatpush1.msra.mxu0 %v235
    %973 = vmatprep.subr.mxu0 %v228
    %974 = vmatpush1.msra.mxu0 %v227
    %975 = vmatprep.subr.mxu0 %v220
    %976 = vmatpush1.msra.mxu0 %v219
    %977 = vmatprep.subr.mxu0 %v212
    %978 = vmatpush1.msra.mxu0 %v211
    %979 = vmatprep.subr.mxu0 %v204
    %980 = vmatpush1.msra.mxu0 %v203
    %981 = vmatprep.subr.mxu0 %v196
    %982 = vmatpush1.msra.mxu0 %v195
    %983 = vmatprep.subr.mxu0 %v188
    %984 = vmatpush1.msra.mxu0 %v187
    %985 = vmatprep.subr.mxu0 %v180
    %986 = vmatpush1.msra.mxu0 %v179
    %987 = vmatprep.subr.mxu0 %v172
    %988 = vmatpush1.msra.mxu0 %v171
    %989 = vmatprep.subr.mxu0 %v164
    %990 = vmatpush1.msra.mxu0 %v163
    %991 = vmatprep.subr.mxu0 %v156
    %992 = vmatpush1.msra.mxu0 %v155
    %993 = vmatprep.subr.mxu0 %v148
    %994 = vmatpush1.msra.mxu0 %v147
    %995 = vmatprep.subr.mxu0 %v140
    %996 = vmatpush1.msra.mxu0 %v139
    %997 = vmatprep.subr.mxu0 %v132
    %998 = vmatpush1.msra.mxu0 %v131
    %999 = vmatprep.subr.mxu0 %v124
    %1000 = vmatpush1.msra.mxu0 %v123
    %1001 = vmatprep.subr.mxu0 %v372
    %1002 = vmatpush2.msra.mxu0 %v371
    %1003 = vmatprep.subr.mxu0 %v364
    %1004 = vmatpush2.msra.mxu0 %v363
    %1005 = vmatprep.subr.mxu0 %v356
    %1006 = vmatpush2.msra.mxu0 %v355
    %1007 = vmatprep.subr.mxu0 %v348
    %1008 = vmatpush2.msra.mxu0 %v347
    %1009 = vmatprep.subr.mxu0 %v340
    %1010 = vmatpush2.msra.mxu0 %v339
    %1011 = vmatprep.subr.mxu0 %v332
    %1012 = vmatpush2.msra.mxu0 %v331
    %1013 = vmatprep.subr.mxu0 %v324
    %1014 = vmatpush2.msra.mxu0 %v323
    %1015 = vmatprep.subr.mxu0 %v316
    %1016 = vmatpush2.msra.mxu0 %v315
    %1017 = vmatprep.subr.mxu0 %v308
    %1018 = vmatpush2.msra.mxu0 %v307
    %1019 = vmatprep.subr.mxu0 %v300
    %1020 = vmatpush2.msra.mxu0 %v299
    %1021 = vmatprep.subr.mxu0 %v292
    %1022 = vmatpush2.msra.mxu0 %v291
    %1023 = vmatprep.subr.mxu0 %v284
    %1024 = vmatpush2.msra.mxu0 %v283
    %1025 = vmatprep.subr.mxu0 %v276
    %1026 = vmatpush2.msra.mxu0 %v275
    %1027 = vmatprep.subr.mxu0 %v268
    %1028 = vmatpush2.msra.mxu0 %v267
    %1029 = vmatprep.subr.mxu0 %v260
    %1030 = vmatpush2.msra.mxu0 %v259
    %1031 = vmatprep.subr.mxu0 %v252
    %1032 = vmatpush2.msra.mxu0 %v251
    %1033 = vmatprep.mubr.f32.mxu0 %v115
    %1034 = vmatmul.mubr.f32.gmra.mxu0 %v114
    %v1035 = vpop.f32.mrf.mxu0
    %v1036 = vadd.f32 %v530, %v1035
    %v1037 = vpop.f32.mrf.mxu0
    %v1038 = vadd.f32 %v534, %v1037
    %1039 = vdwg.mxu0
    %1040 = vmatprep.subr.mxu0 %v500
    %1041 = vmatpush1.msra.mxu0 %v499
    %1042 = vmatprep.subr.mxu0 %v492
    %1043 = vmatpush1.msra.mxu0 %v491
    %1044 = vmatprep.subr.mxu0 %v484
    %1045 = vmatpush1.msra.mxu0 %v483
    %1046 = vmatprep.subr.mxu0 %v476
    %1047 = vmatpush1.msra.mxu0 %v475
    %1048 = vmatprep.subr.mxu0 %v468
    %1049 = vmatpush1.msra.mxu0 %v467
    %1050 = vmatprep.subr.mxu0 %v460
    %1051 = vmatpush1.msra.mxu0 %v459
    %1052 = vmatprep.subr.mxu0 %v452
    %1053 = vmatpush1.msra.mxu0 %v451
    %1054 = vmatprep.subr.mxu0 %v444
    %1055 = vmatpush1.msra.mxu0 %v443
    %1056 = vmatprep.subr.mxu0 %v436
    %1057 = vmatpush1.msra.mxu0 %v435
    %1058 = vmatprep.subr.mxu0 %v428
    %1059 = vmatpush1.msra.mxu0 %v427
    %1060 = vmatprep.subr.mxu0 %v420
    %1061 = vmatpush1.msra.mxu0 %v419
    %1062 = vmatprep.subr.mxu0 %v412
    %1063 = vmatpush1.msra.mxu0 %v411
    %1064 = vmatprep.subr.mxu0 %v404
    %1065 = vmatpush1.msra.mxu0 %v403
    %1066 = vmatprep.subr.mxu0 %v396
    %1067 = vmatpush1.msra.mxu0 %v395
    %1068 = vmatprep.subr.mxu0 %v388
    %1069 = vmatpush1.msra.mxu0 %v387
    %1070 = vmatprep.subr.mxu0 %v380
    %1071 = vmatpush1.msra.mxu0 %v379
    %1072 = vmatprep.subr.mxu0 0.0
    %1073 = vmatpush2.msra.mxu0 0.0
    %1074 = vmatprep.subr.mxu0 0.0
    %1075 = vmatpush2.msra.mxu0 0.0
    %1076 = vmatprep.subr.mxu0 0.0
    %1077 = vmatpush2.msra.mxu0 0.0
    %1078 = vmatprep.subr.mxu0 0.0
    %1079 = vmatpush2.msra.mxu0 0.0
    %1080 = vmatprep.subr.mxu0 0.0
    %1081 = vmatpush2.msra.mxu0 0.0
    %1082 = vmatprep.subr.mxu0 0.0
    %1083 = vmatpush2.msra.mxu0 0.0
    %1084 = vmatprep.subr.mxu0 0.0
    %1085 = vmatpush2.msra.mxu0 0.0
    %1086 = vmatprep.subr.mxu0 0.0
    %1087 = vmatpush2.msra.mxu0 0.0
    %1088 = vmatprep.subr.mxu0 0.0
    %1089 = vmatpush2.msra.mxu0 0.0
    %1090 = vmatprep.subr.mxu0 0.0
    %1091 = vmatpush2.msra.mxu0 0.0
    %1092 = vmatprep.subr.mxu0 0.0
    %1093 = vmatpush2.msra.mxu0 0.0
    %1094 = vmatprep.subr.mxu0 0.0
    %1095 = vmatpush2.msra.mxu0 0.0
    %1096 = vmatprep.subr.mxu0 0.0
    %1097 = vmatpush2.msra.mxu0 0.0
    %1098 = vmatprep.subr.mxu0 0.0
    %1099 = vmatpush2.msra.mxu0 0.0
    %1100 = vmatprep.subr.mxu0 0.0
    %1101 = vmatpush2.msra.mxu0 0.0
    %1102 = vmatprep.subr.mxu0 0.0
    %1103 = vmatpush2.msra.mxu0 0.0
    %1104 = vmatprep.mubr.f32.mxu0 0.0
    %1105 = vmatmul.mubr.f32.gmra.mxu0 %v116
    %v1106 = vpop.f32.mrf.mxu0
    %v1107 = vadd.f32 %v1036, %v1106
    %v1108 = vpop.f32.mrf.mxu0
    %v1109 = vadd.f32 %v1038, %v1108
    %1110 = vdwg.mxu0
    %v1111 = vmax.f32 %v681, 0.0
    %v1112 = vmax.f32 %v683, 0.0
    %v1113 = vmax.f32 %v823, 0.0
    %v1114 = vmax.f32 %v825, 0.0
    %v1115 = vmax.f32 %v965, 0.0
    %v1116 = vmax.f32 %v967, 0.0
    %v1117 = vmax.f32 %v1107, 0.0
    %v1118 = vmax.f32 %v1109, 0.0
    %v1119 = vld [vmem:[#allocation8] sm:$0xff]
    %v1120 = vld [vmem:[#allocation8 + $0x8] sm:$0xff]
    %v1121 = vld [vmem:[#allocation8 + $0x10] sm:$0xff]
    %v1122 = vld [vmem:[#allocation8 + $0x18] sm:$0xff]
    %v1123 = vld [vmem:[#allocation8 + $0x20] sm:$0xff]
    %v1124 = vld [vmem:[#allocation8 + $0x28] sm:$0xff]
    %v1125 = vld [vmem:[#allocation8 + $0x30] sm:$0xff]
    %v1126 = vld [vmem:[#allocation8 + $0x38] sm:$0xff]
    %v1127 = vld [vmem:[#allocation8 + $0x40] sm:$0xff]
    %v1128 = vld [vmem:[#allocation8 + $0x48] sm:$0xff]
    %v1129 = vld [vmem:[#allocation8 + $0x50] sm:$0xff]
    %v1130 = vld [vmem:[#allocation8 + $0x58] sm:$0xff]
    %v1131 = vld [vmem:[#allocation8 + $0x60] sm:$0xff]
    %v1132 = vld [vmem:[#allocation8 + $0x68] sm:$0xff]
    %v1133 = vld [vmem:[#allocation8 + $0x70] sm:$0xff]
    %v1134 = vld [vmem:[#allocation8 + $0x78] sm:$0xff]
    %v1135 = vld [vmem:[#allocation8 + $0x80] sm:$0xff]
    %v1136 = vld [vmem:[#allocation8 + $0x88] sm:$0xff]
    %v1137 = vld [vmem:[#allocation8 + $0x90] sm:$0xff]
    %v1138 = vld [vmem:[#allocation8 + $0x98] sm:$0xff]
    %v1139 = vld [vmem:[#allocation8 + $0xa0] sm:$0xff]
    %v1140 = vld [vmem:[#allocation8 + $0xa8] sm:$0xff]
    %v1141 = vld [vmem:[#allocation8 + $0xb0] sm:$0xff]
    %v1142 = vld [vmem:[#allocation8 + $0xb8] sm:$0xff]
    %v1143 = vld [vmem:[#allocation8 + $0xc0] sm:$0xff]
    %v1144 = vld [vmem:[#allocation8 + $0xc8] sm:$0xff]
    %v1145 = vld [vmem:[#allocation8 + $0xd0] sm:$0xff]
    %v1146 = vld [vmem:[#allocation8 + $0xd8] sm:$0xff]
    %v1147 = vld [vmem:[#allocation8 + $0xe0] sm:$0xff]
    %v1148 = vld [vmem:[#allocation8 + $0xe8] sm:$0xff]
    %v1149 = vld [vmem:[#allocation8 + $0xf0] sm:$0xff]
    %v1150 = vld [vmem:[#allocation8 + $0xf8] sm:$0xff]
    %v1151 = vld [vmem:[#allocation8 + $0x100] sm:$0xff]
    %v1152 = vld [vmem:[#allocation8 + $0x108] sm:$0xff]
    %v1153 = vld [vmem:[#allocation8 + $0x110] sm:$0xff]
    %v1154 = vld [vmem:[#allocation8 + $0x118] sm:$0xff]
    %v1155 = vld [vmem:[#allocation8 + $0x120] sm:$0xff]
    %v1156 = vld [vmem:[#allocation8 + $0x128] sm:$0xff]
    %v1157 = vld [vmem:[#allocation8 + $0x130] sm:$0xff]
    %v1158 = vld [vmem:[#allocation8 + $0x138] sm:$0xff]
    %v1159 = vld [vmem:[#allocation8 + $0x140] sm:$0xff]
    %v1160 = vld [vmem:[#allocation8 + $0x148] sm:$0xff]
    %v1161 = vld [vmem:[#allocation8 + $0x150] sm:$0xff]
    %v1162 = vld [vmem:[#allocation8 + $0x158] sm:$0xff]
    %v1163 = vld [vmem:[#allocation8 + $0x160] sm:$0xff]
    %v1164 = vld [vmem:[#allocation8 + $0x168] sm:$0xff]
    %v1165 = vld [vmem:[#allocation8 + $0x170] sm:$0xff]
    %v1166 = vld [vmem:[#allocation8 + $0x178] sm:$0xff]
    %v1167 = vld [vmem:[#allocation8 + $0x180] sm:$0xff]
    %v1168 = vld [vmem:[#allocation8 + $0x188] sm:$0xff]
    %v1169 = vld [vmem:[#allocation8 + $0x190] sm:$0xff]
    %v1170 = vld [vmem:[#allocation8 + $0x198] sm:$0xff]
    %v1171 = vld [vmem:[#allocation8 + $0x1a0] sm:$0xff]
    %v1172 = vld [vmem:[#allocation8 + $0x1a8] sm:$0xff]
    %v1173 = vld [vmem:[#allocation8 + $0x1b0] sm:$0xff]
    %v1174 = vld [vmem:[#allocation8 + $0x1b8] sm:$0xff]
    %v1175 = vld [vmem:[#allocation8 + $0x1c0] sm:$0xff]
    %v1176 = vld [vmem:[#allocation8 + $0x1c8] sm:$0xff]
    %v1177 = vld [vmem:[#allocation8 + $0x1d0] sm:$0xff]
    %v1178 = vld [vmem:[#allocation8 + $0x1d8] sm:$0xff]
    %v1179 = vld [vmem:[#allocation8 + $0x1e0] sm:$0xff]
    %v1180 = vld [vmem:[#allocation8 + $0x1e8] sm:$0xff]
    %v1181 = vld [vmem:[#allocation8 + $0x1f0] sm:$0xff]
    %v1182 = vld [vmem:[#allocation8 + $0x1f8] sm:$0xff]
    %v1183 = vld [vmem:[#allocation8 + $0x200] sm:$0xff]
    %v1184 = vld [vmem:[#allocation8 + $0x208] sm:$0xff]
    %v1185 = vld [vmem:[#allocation8 + $0x210] sm:$0xff]
    %v1186 = vld [vmem:[#allocation8 + $0x218] sm:$0xff]
    %v1187 = vld [vmem:[#allocation8 + $0x220] sm:$0xff]
    %v1188 = vld [vmem:[#allocation8 + $0x228] sm:$0xff]
    %v1189 = vld [vmem:[#allocation8 + $0x230] sm:$0xff]
    %v1190 = vld [vmem:[#allocation8 + $0x238] sm:$0xff]
    %v1191 = vld [vmem:[#allocation8 + $0x240] sm:$0xff]
    %v1192 = vld [vmem:[#allocation8 + $0x248] sm:$0xff]
    %v1193 = vld [vmem:[#allocation8 + $0x250] sm:$0xff]
    %v1194 = vld [vmem:[#allocation8 + $0x258] sm:$0xff]
    %v1195 = vld [vmem:[#allocation8 + $0x260] sm:$0xff]
    %v1196 = vld [vmem:[#allocation8 + $0x268] sm:$0xff]
    %v1197 = vld [vmem:[#allocation8 + $0x270] sm:$0xff]
    %v1198 = vld [vmem:[#allocation8 + $0x278] sm:$0xff]
    %v1199 = vld [vmem:[#allocation8 + $0x280] sm:$0xff]
    %v1200 = vld [vmem:[#allocation8 + $0x288] sm:$0xff]
    %v1201 = vld [vmem:[#allocation8 + $0x290] sm:$0xff]
    %v1202 = vld [vmem:[#allocation8 + $0x298] sm:$0xff]
    %v1203 = vld [vmem:[#allocation8 + $0x2a0] sm:$0xff]
    %v1204 = vld [vmem:[#allocation8 + $0x2a8] sm:$0xff]
    %v1205 = vld [vmem:[#allocation8 + $0x2b0] sm:$0xff]
    %v1206 = vld [vmem:[#allocation8 + $0x2b8] sm:$0xff]
    %v1207 = vld [vmem:[#allocation8 + $0x2c0] sm:$0xff]
    %v1208 = vld [vmem:[#allocation8 + $0x2c8] sm:$0xff]
    %v1209 = vld [vmem:[#allocation8 + $0x2d0] sm:$0xff]
    %v1210 = vld [vmem:[#allocation8 + $0x2d8] sm:$0xff]
    %v1211 = vld [vmem:[#allocation8 + $0x2e0] sm:$0xff]
    %v1212 = vld [vmem:[#allocation8 + $0x2e8] sm:$0xff]
    %v1213 = vld [vmem:[#allocation8 + $0x2f0] sm:$0xff]
    %v1214 = vld [vmem:[#allocation8 + $0x2f8] sm:$0xff]
    %v1215 = vld [vmem:[#allocation8 + $0x300] sm:$0xff]
    %v1216 = vld [vmem:[#allocation8 + $0x308] sm:$0xff]
    %v1217 = vld [vmem:[#allocation8 + $0x310] sm:$0xff]
    %v1218 = vld [vmem:[#allocation8 + $0x318] sm:$0xff]
    %v1219 = vld [vmem:[#allocation8 + $0x320] sm:$0xff]
    %v1220 = vld [vmem:[#allocation8 + $0x328] sm:$0xff]
    %v1221 = vld [vmem:[#allocation8 + $0x330] sm:$0xff]
    %v1222 = vld [vmem:[#allocation8 + $0x338] sm:$0xff]
    %v1223 = vld [vmem:[#allocation8 + $0x340] sm:$0xff]
    %v1224 = vld [vmem:[#allocation8 + $0x348] sm:$0xff]
    %v1225 = vld [vmem:[#allocation8 + $0x350] sm:$0xff]
    %v1226 = vld [vmem:[#allocation8 + $0x358] sm:$0xff]
    %v1227 = vld [vmem:[#allocation8 + $0x360] sm:$0xff]
    %v1228 = vld [vmem:[#allocation8 + $0x368] sm:$0xff]
    %v1229 = vld [vmem:[#allocation8 + $0x370] sm:$0xff]
    %v1230 = vld [vmem:[#allocation8 + $0x378] sm:$0xff]
    %v1231 = vld [vmem:[#allocation8 + $0x380] sm:$0xff]
    %v1232 = vld [vmem:[#allocation8 + $0x388] sm:$0xff]
    %v1233 = vld [vmem:[#allocation8 + $0x390] sm:$0xff]
    %v1234 = vld [vmem:[#allocation8 + $0x398] sm:$0xff]
    %v1235 = vld [vmem:[#allocation8 + $0x3a0] sm:$0xff]
    %v1236 = vld [vmem:[#allocation8 + $0x3a8] sm:$0xff]
    %v1237 = vld [vmem:[#allocation8 + $0x3b0] sm:$0xff]
    %v1238 = vld [vmem:[#allocation8 + $0x3b8] sm:$0xff]
    %v1239 = vld [vmem:[#allocation8 + $0x3c0] sm:$0xff]
    %v1240 = vld [vmem:[#allocation8 + $0x3c8] sm:$0xff]
    %v1241 = vld [vmem:[#allocation8 + $0x3d0] sm:$0xff]
    %v1242 = vld [vmem:[#allocation8 + $0x3d8] sm:$0xff]
    %v1243 = vld [vmem:[#allocation8 + $0x3e0] sm:$0xff]
    %v1244 = vld [vmem:[#allocation8 + $0x3e8] sm:$0xff]
    %v1245 = vld [vmem:[#allocation8 + $0x3f0] sm:$0xff]
    %v1246 = vld [vmem:[#allocation8 + $0x3f8] sm:$0xff]
    %v1247 = vld [vmem:[#allocation8 + $0x400] sm:$0xff]
    %v1248 = vld [vmem:[#allocation8 + $0x408] sm:$0xff]
    %v1249 = vld [vmem:[#allocation8 + $0x410] sm:$0xff]
    %v1250 = vld [vmem:[#allocation8 + $0x418] sm:$0xff]
    %v1251 = vld [vmem:[#allocation8 + $0x420] sm:$0xff]
    %v1252 = vld [vmem:[#allocation8 + $0x428] sm:$0xff]
    %v1253 = vld [vmem:[#allocation8 + $0x430] sm:$0xff]
    %v1254 = vld [vmem:[#allocation8 + $0x438] sm:$0xff]
    %v1255 = vld [vmem:[#allocation8 + $0x440] sm:$0xff]
    %v1256 = vld [vmem:[#allocation8 + $0x448] sm:$0xff]
    %v1257 = vld [vmem:[#allocation8 + $0x450] sm:$0xff]
    %v1258 = vld [vmem:[#allocation8 + $0x458] sm:$0xff]
    %v1259 = vld [vmem:[#allocation8 + $0x460] sm:$0xff]
    %v1260 = vld [vmem:[#allocation8 + $0x468] sm:$0xff]
    %v1261 = vld [vmem:[#allocation8 + $0x470] sm:$0xff]
    %v1262 = vld [vmem:[#allocation8 + $0x478] sm:$0xff]
    %v1263 = vld [vmem:[#allocation8 + $0x480] sm:$0xff]
    %v1264 = vld [vmem:[#allocation8 + $0x488] sm:$0xff]
    %v1265 = vld [vmem:[#allocation8 + $0x490] sm:$0xff]
    %v1266 = vld [vmem:[#allocation8 + $0x498] sm:$0xff]
    %v1267 = vld [vmem:[#allocation8 + $0x4a0] sm:$0xff]
    %v1268 = vld [vmem:[#allocation8 + $0x4a8] sm:$0xff]
    %v1269 = vld [vmem:[#allocation8 + $0x4b0] sm:$0xff]
    %v1270 = vld [vmem:[#allocation8 + $0x4b8] sm:$0xff]
    %v1271 = vld [vmem:[#allocation8 + $0x4c0] sm:$0xff]
    %v1272 = vld [vmem:[#allocation8 + $0x4c8] sm:$0xff]
    %v1273 = vld [vmem:[#allocation8 + $0x4d0] sm:$0xff]
    %v1274 = vld [vmem:[#allocation8 + $0x4d8] sm:$0xff]
    %v1275 = vld [vmem:[#allocation8 + $0x4e0] sm:$0xff]
    %v1276 = vld [vmem:[#allocation8 + $0x4e8] sm:$0xff]
    %v1277 = vld [vmem:[#allocation8 + $0x4f0] sm:$0xff]
    %v1278 = vld [vmem:[#allocation8 + $0x4f8] sm:$0xff]
    %v1279 = vld [vmem:[#allocation8 + $0x500] sm:$0xff]
    %v1280 = vld [vmem:[#allocation8 + $0x508] sm:$0xff]
    %v1281 = vld [vmem:[#allocation8 + $0x510] sm:$0xff]
    %v1282 = vld [vmem:[#allocation8 + $0x518] sm:$0xff]
    %v1283 = vld [vmem:[#allocation8 + $0x520] sm:$0xff]
    %v1284 = vld [vmem:[#allocation8 + $0x528] sm:$0xff]
    %v1285 = vld [vmem:[#allocation8 + $0x530] sm:$0xff]
    %v1286 = vld [vmem:[#allocation8 + $0x538] sm:$0xff]
    %v1287 = vld [vmem:[#allocation8 + $0x540] sm:$0xff]
    %v1288 = vld [vmem:[#allocation8 + $0x548] sm:$0xff]
    %v1289 = vld [vmem:[#allocation8 + $0x550] sm:$0xff]
    %v1290 = vld [vmem:[#allocation8 + $0x558] sm:$0xff]
    %v1291 = vld [vmem:[#allocation8 + $0x560] sm:$0xff]
    %v1292 = vld [vmem:[#allocation8 + $0x568] sm:$0xff]
    %v1293 = vld [vmem:[#allocation8 + $0x570] sm:$0xff]
    %v1294 = vld [vmem:[#allocation8 + $0x578] sm:$0xff]
    %v1295 = vld [vmem:[#allocation8 + $0x580] sm:$0xff]
    %v1296 = vld [vmem:[#allocation8 + $0x588] sm:$0xff]
    %v1297 = vld [vmem:[#allocation8 + $0x590] sm:$0xff]
    %v1298 = vld [vmem:[#allocation8 + $0x598] sm:$0xff]
    %v1299 = vld [vmem:[#allocation8 + $0x5a0] sm:$0xff]
    %v1300 = vld [vmem:[#allocation8 + $0x5a8] sm:$0xff]
    %v1301 = vld [vmem:[#allocation8 + $0x5b0] sm:$0xff]
    %v1302 = vld [vmem:[#allocation8 + $0x5b8] sm:$0xff]
    %v1303 = vld [vmem:[#allocation8 + $0x5c0] sm:$0xff]
    %v1304 = vld [vmem:[#allocation8 + $0x5c8] sm:$0xff]
    %v1305 = vld [vmem:[#allocation8 + $0x5d0] sm:$0xff]
    %v1306 = vld [vmem:[#allocation8 + $0x5d8] sm:$0xff]
    %v1307 = vld [vmem:[#allocation8 + $0x5e0] sm:$0xff]
    %v1308 = vld [vmem:[#allocation8 + $0x5e8] sm:$0xff]
    %v1309 = vld [vmem:[#allocation8 + $0x5f0] sm:$0xff]
    %v1310 = vld [vmem:[#allocation8 + $0x5f8] sm:$0xff]
    %v1311 = vld [vmem:[#allocation8 + $0x600] sm:$0xff]
    %v1312 = vld [vmem:[#allocation8 + $0x608] sm:$0xff]
    %v1313 = vld [vmem:[#allocation8 + $0x610] sm:$0xff]
    %v1314 = vld [vmem:[#allocation8 + $0x618] sm:$0xff]
    %v1315 = vld [vmem:[#allocation8 + $0x620] sm:$0xff]
    %v1316 = vld [vmem:[#allocation8 + $0x628] sm:$0xff]
    %v1317 = vld [vmem:[#allocation8 + $0x630] sm:$0xff]
    %v1318 = vld [vmem:[#allocation8 + $0x638] sm:$0xff]
    %v1319 = vld [vmem:[#allocation8 + $0x640] sm:$0xff]
    %v1320 = vld [vmem:[#allocation8 + $0x648] sm:$0xff]
    %v1321 = vld [vmem:[#allocation8 + $0x650] sm:$0xff]
    %v1322 = vld [vmem:[#allocation8 + $0x658] sm:$0xff]
    %v1323 = vld [vmem:[#allocation8 + $0x660] sm:$0xff]
    %v1324 = vld [vmem:[#allocation8 + $0x668] sm:$0xff]
    %v1325 = vld [vmem:[#allocation8 + $0x670] sm:$0xff]
    %v1326 = vld [vmem:[#allocation8 + $0x678] sm:$0xff]
    %v1327 = vld [vmem:[#allocation8 + $0x680] sm:$0xff]
    %v1328 = vld [vmem:[#allocation8 + $0x688] sm:$0xff]
    %v1329 = vld [vmem:[#allocation8 + $0x690] sm:$0xff]
    %v1330 = vld [vmem:[#allocation8 + $0x698] sm:$0xff]
    %v1331 = vld [vmem:[#allocation8 + $0x6a0] sm:$0xff]
    %v1332 = vld [vmem:[#allocation8 + $0x6a8] sm:$0xff]
    %v1333 = vld [vmem:[#allocation8 + $0x6b0] sm:$0xff]
    %v1334 = vld [vmem:[#allocation8 + $0x6b8] sm:$0xff]
    %v1335 = vld [vmem:[#allocation8 + $0x6c0] sm:$0xff]
    %v1336 = vld [vmem:[#allocation8 + $0x6c8] sm:$0xff]
    %v1337 = vld [vmem:[#allocation8 + $0x6d0] sm:$0xff]
    %v1338 = vld [vmem:[#allocation8 + $0x6d8] sm:$0xff]
    %v1339 = vld [vmem:[#allocation8 + $0x6e0] sm:$0xff]
    %v1340 = vld [vmem:[#allocation8 + $0x6e8] sm:$0xff]
    %v1341 = vld [vmem:[#allocation8 + $0x6f0] sm:$0xff]
    %v1342 = vld [vmem:[#allocation8 + $0x6f8] sm:$0xff]
    %v1343 = vld [vmem:[#allocation8 + $0x700] sm:$0xff]
    %v1344 = vld [vmem:[#allocation8 + $0x708] sm:$0xff]
    %v1345 = vld [vmem:[#allocation8 + $0x710] sm:$0xff]
    %v1346 = vld [vmem:[#allocation8 + $0x718] sm:$0xff]
    %v1347 = vld [vmem:[#allocation8 + $0x720] sm:$0xff]
    %v1348 = vld [vmem:[#allocation8 + $0x728] sm:$0xff]
    %v1349 = vld [vmem:[#allocation8 + $0x730] sm:$0xff]
    %v1350 = vld [vmem:[#allocation8 + $0x738] sm:$0xff]
    %v1351 = vld [vmem:[#allocation8 + $0x740] sm:$0xff]
    %v1352 = vld [vmem:[#allocation8 + $0x748] sm:$0xff]
    %v1353 = vld [vmem:[#allocation8 + $0x750] sm:$0xff]
    %v1354 = vld [vmem:[#allocation8 + $0x758] sm:$0xff]
    %v1355 = vld [vmem:[#allocation8 + $0x760] sm:$0xff]
    %v1356 = vld [vmem:[#allocation8 + $0x768] sm:$0xff]
    %v1357 = vld [vmem:[#allocation8 + $0x770] sm:$0xff]
    %v1358 = vld [vmem:[#allocation8 + $0x778] sm:$0xff]
    %v1359 = vld [vmem:[#allocation8 + $0x780] sm:$0xff]
    %v1360 = vld [vmem:[#allocation8 + $0x788] sm:$0xff]
    %v1361 = vld [vmem:[#allocation8 + $0x790] sm:$0xff]
    %v1362 = vld [vmem:[#allocation8 + $0x798] sm:$0xff]
    %v1363 = vld [vmem:[#allocation8 + $0x7a0] sm:$0xff]
    %v1364 = vld [vmem:[#allocation8 + $0x7a8] sm:$0xff]
    %v1365 = vld [vmem:[#allocation8 + $0x7b0] sm:$0xff]
    %v1366 = vld [vmem:[#allocation8 + $0x7b8] sm:$0xff]
    %v1367 = vld [vmem:[#allocation8 + $0x7c0] sm:$0xff]
    %v1368 = vld [vmem:[#allocation8 + $0x7c8] sm:$0xff]
    %v1369 = vld [vmem:[#allocation8 + $0x7d0] sm:$0xff]
    %v1370 = vld [vmem:[#allocation8 + $0x7d8] sm:$0xff]
    %v1371 = vld [vmem:[#allocation8 + $0x7e0] sm:$0xff]
    %v1372 = vld [vmem:[#allocation8 + $0x7e8] sm:$0xff]
    %v1373 = vld [vmem:[#allocation8 + $0x7f0] sm:$0xff]
    %v1374 = vld [vmem:[#allocation8 + $0x7f8] sm:$0xff]
    %v1375 = vld [vmem:[#allocation10] sm:$0x3]
    %v1377 = vlaneseq
    %v1378 = vshrl.u32 %v1377, 7
    %v1379 = vsub.s32 0, %v1378
    %v1380 = vrot.slane %v1375, %v1379
    %v1381 = vlaneseq
    %v1382 = vshrl.u32 %v1381, 7
    %v1383 = vsub.s32 1, %v1382
    %v1384 = vrot.slane %v1375, %v1383
    %1387 = vmatprep.subr.mxu0 %v1150
    %1388 = vmatpush1.msra.mxu0 %v1149
    %1389 = vmatprep.subr.mxu0 %v1148
    %1390 = vmatpush1.msra.mxu0 %v1147
    %1391 = vmatprep.subr.mxu0 %v1146
    %1392 = vmatpush1.msra.mxu0 %v1145
    %1393 = vmatprep.subr.mxu0 %v1144
    %1394 = vmatpush1.msra.mxu0 %v1143
    %1395 = vmatprep.subr.mxu0 %v1142
    %1396 = vmatpush1.msra.mxu0 %v1141
    %1397 = vmatprep.subr.mxu0 %v1140
    %1398 = vmatpush1.msra.mxu0 %v1139
    %1399 = vmatprep.subr.mxu0 %v1138
    %1400 = vmatpush1.msra.mxu0 %v1137
    %1401 = vmatprep.subr.mxu0 %v1136
    %1402 = vmatpush1.msra.mxu0 %v1135
    %1403 = vmatprep.subr.mxu0 %v1134
    %1404 = vmatpush1.msra.mxu0 %v1133
    %1405 = vmatprep.subr.mxu0 %v1132
    %1406 = vmatpush1.msra.mxu0 %v1131
    %1407 = vmatprep.subr.mxu0 %v1130
    %1408 = vmatpush1.msra.mxu0 %v1129
    %1409 = vmatprep.subr.mxu0 %v1128
    %1410 = vmatpush1.msra.mxu0 %v1127
    %1411 = vmatprep.subr.mxu0 %v1126
    %1412 = vmatpush1.msra.mxu0 %v1125
    %1413 = vmatprep.subr.mxu0 %v1124
    %1414 = vmatpush1.msra.mxu0 %v1123
    %1415 = vmatprep.subr.mxu0 %v1122
    %1416 = vmatpush1.msra.mxu0 %v1121
    %1417 = vmatprep.subr.mxu0 %v1120
    %1418 = vmatpush1.msra.mxu0 %v1119
    %1419 = vmatprep.subr.mxu0 %v1182
    %1420 = vmatpush2.msra.mxu0 %v1181
    %1421 = vmatprep.subr.mxu0 %v1180
    %1422 = vmatpush2.msra.mxu0 %v1179
    %1423 = vmatprep.subr.mxu0 %v1178
    %1424 = vmatpush2.msra.mxu0 %v1177
    %1425 = vmatprep.subr.mxu0 %v1176
    %1426 = vmatpush2.msra.mxu0 %v1175
    %1427 = vmatprep.subr.mxu0 %v1174
    %1428 = vmatpush2.msra.mxu0 %v1173
    %1429 = vmatprep.subr.mxu0 %v1172
    %1430 = vmatpush2.msra.mxu0 %v1171
    %1431 = vmatprep.subr.mxu0 %v1170
    %1432 = vmatpush2.msra.mxu0 %v1169
    %1433 = vmatprep.subr.mxu0 %v1168
    %1434 = vmatpush2.msra.mxu0 %v1167
    %1435 = vmatprep.subr.mxu0 %v1166
    %1436 = vmatpush2.msra.mxu0 %v1165
    %1437 = vmatprep.subr.mxu0 %v1164
    %1438 = vmatpush2.msra.mxu0 %v1163
    %1439 = vmatprep.subr.mxu0 %v1162
    %1440 = vmatpush2.msra.mxu0 %v1161
    %1441 = vmatprep.subr.mxu0 %v1160
    %1442 = vmatpush2.msra.mxu0 %v1159
    %1443 = vmatprep.subr.mxu0 %v1158
    %1444 = vmatpush2.msra.mxu0 %v1157
    %1445 = vmatprep.subr.mxu0 %v1156
    %1446 = vmatpush2.msra.mxu0 %v1155
    %1447 = vmatprep.subr.mxu0 %v1154
    %1448 = vmatpush2.msra.mxu0 %v1153
    %1449 = vmatprep.subr.mxu0 %v1152
    %1450 = vmatpush2.msra.mxu0 %v1151
    %1451 = vmatprep.mubr.f32.mxu0 %v1112
    %1452 = vmatmul.mubr.f32.gmra.mxu0 %v1111
    %v1453 = vpop.f32.mrf.mxu0
    %v1454 = vadd.f32 %v1380, %v1453
    %v1455 = vpop.f32.mrf.mxu0
    %v1456 = vadd.f32 %v1384, %v1455
    %1457 = vdwg.mxu0
    %1458 = vmatprep.subr.mxu0 %v1214
    %1459 = vmatpush1.msra.mxu0 %v1213
    %1460 = vmatprep.subr.mxu0 %v1212
    %1461 = vmatpush1.msra.mxu0 %v1211
    %1462 = vmatprep.subr.mxu0 %v1210
    %1463 = vmatpush1.msra.mxu0 %v1209
    %1464 = vmatprep.subr.mxu0 %v1208
    %1465 = vmatpush1.msra.mxu0 %v1207
    %1466 = vmatprep.subr.mxu0 %v1206
    %1467 = vmatpush1.msra.mxu0 %v1205
    %1468 = vmatprep.subr.mxu0 %v1204
    %1469 = vmatpush1.msra.mxu0 %v1203
    %1470 = vmatprep.subr.mxu0 %v1202
    %1471 = vmatpush1.msra.mxu0 %v1201
    %1472 = vmatprep.subr.mxu0 %v1200
    %1473 = vmatpush1.msra.mxu0 %v1199
    %1474 = vmatprep.subr.mxu0 %v1198
    %1475 = vmatpush1.msra.mxu0 %v1197
    %1476 = vmatprep.subr.mxu0 %v1196
    %1477 = vmatpush1.msra.mxu0 %v1195
    %1478 = vmatprep.subr.mxu0 %v1194
    %1479 = vmatpush1.msra.mxu0 %v1193
    %1480 = vmatprep.subr.mxu0 %v1192
    %1481 = vmatpush1.msra.mxu0 %v1191
    %1482 = vmatprep.subr.mxu0 %v1190
    %1483 = vmatpush1.msra.mxu0 %v1189
    %1484 = vmatprep.subr.mxu0 %v1188
    %1485 = vmatpush1.msra.mxu0 %v1187
    %1486 = vmatprep.subr.mxu0 %v1186
    %1487 = vmatpush1.msra.mxu0 %v1185
    %1488 = vmatprep.subr.mxu0 %v1184
    %1489 = vmatpush1.msra.mxu0 %v1183
    %1490 = vmatprep.subr.mxu0 %v1246
    %1491 = vmatpush2.msra.mxu0 %v1245
    %1492 = vmatprep.subr.mxu0 %v1244
    %1493 = vmatpush2.msra.mxu0 %v1243
    %1494 = vmatprep.subr.mxu0 %v1242
    %1495 = vmatpush2.msra.mxu0 %v1241
    %1496 = vmatprep.subr.mxu0 %v1240
    %1497 = vmatpush2.msra.mxu0 %v1239
    %1498 = vmatprep.subr.mxu0 %v1238
    %1499 = vmatpush2.msra.mxu0 %v1237
    %1500 = vmatprep.subr.mxu0 %v1236
    %1501 = vmatpush2.msra.mxu0 %v1235
    %1502 = vmatprep.subr.mxu0 %v1234
    %1503 = vmatpush2.msra.mxu0 %v1233
    %1504 = vmatprep.subr.mxu0 %v1232
    %1505 = vmatpush2.msra.mxu0 %v1231
    %1506 = vmatprep.subr.mxu0 %v1230
    %1507 = vmatpush2.msra.mxu0 %v1229
    %1508 = vmatprep.subr.mxu0 %v1228
    %1509 = vmatpush2.msra.mxu0 %v1227
    %1510 = vmatprep.subr.mxu0 %v1226
    %1511 = vmatpush2.msra.mxu0 %v1225
    %1512 = vmatprep.subr.mxu0 %v1224
    %1513 = vmatpush2.msra.mxu0 %v1223
    %1514 = vmatprep.subr.mxu0 %v1222
    %1515 = vmatpush2.msra.mxu0 %v1221
    %1516 = vmatprep.subr.mxu0 %v1220
    %1517 = vmatpush2.msra.mxu0 %v1219
    %1518 = vmatprep.subr.mxu0 %v1218
    %1519 = vmatpush2.msra.mxu0 %v1217
    %1520 = vmatprep.subr.mxu0 %v1216
    %1521 = vmatpush2.msra.mxu0 %v1215
    %1522 = vmatprep.mubr.f32.mxu0 %v1114
    %1523 = vmatmul.mubr.f32.gmra.mxu0 %v1113
    %v1524 = vpop.f32.mrf.mxu0
    %v1525 = vadd.f32 %v1454, %v1524
    %v1526 = vpop.f32.mrf.mxu0
    %v1527 = vadd.f32 %v1456, %v1526
    %1528 = vdwg.mxu0
    %1529 = vmatprep.subr.mxu0 %v1278
    %1530 = vmatpush1.msra.mxu0 %v1277
    %1531 = vmatprep.subr.mxu0 %v1276
    %1532 = vmatpush1.msra.mxu0 %v1275
    %1533 = vmatprep.subr.mxu0 %v1274
    %1534 = vmatpush1.msra.mxu0 %v1273
    %1535 = vmatprep.subr.mxu0 %v1272
    %1536 = vmatpush1.msra.mxu0 %v1271
    %1537 = vmatprep.subr.mxu0 %v1270
    %1538 = vmatpush1.msra.mxu0 %v1269
    %1539 = vmatprep.subr.mxu0 %v1268
    %1540 = vmatpush1.msra.mxu0 %v1267
    %1541 = vmatprep.subr.mxu0 %v1266
    %1542 = vmatpush1.msra.mxu0 %v1265
    %1543 = vmatprep.subr.mxu0 %v1264
    %1544 = vmatpush1.msra.mxu0 %v1263
    %1545 = vmatprep.subr.mxu0 %v1262
    %1546 = vmatpush1.msra.mxu0 %v1261
    %1547 = vmatprep.subr.mxu0 %v1260
    %1548 = vmatpush1.msra.mxu0 %v1259
    %1549 = vmatprep.subr.mxu0 %v1258
    %1550 = vmatpush1.msra.mxu0 %v1257
    %1551 = vmatprep.subr.mxu0 %v1256
    %1552 = vmatpush1.msra.mxu0 %v1255
    %1553 = vmatprep.subr.mxu0 %v1254
    %1554 = vmatpush1.msra.mxu0 %v1253
    %1555 = vmatprep.subr.mxu0 %v1252
    %1556 = vmatpush1.msra.mxu0 %v1251
    %1557 = vmatprep.subr.mxu0 %v1250
    %1558 = vmatpush1.msra.mxu0 %v1249
    %1559 = vmatprep.subr.mxu0 %v1248
    %1560 = vmatpush1.msra.mxu0 %v1247
    %1561 = vmatprep.subr.mxu0 %v1310
    %1562 = vmatpush2.msra.mxu0 %v1309
    %1563 = vmatprep.subr.mxu0 %v1308
    %1564 = vmatpush2.msra.mxu0 %v1307
    %1565 = vmatprep.subr.mxu0 %v1306
    %1566 = vmatpush2.msra.mxu0 %v1305
    %1567 = vmatprep.subr.mxu0 %v1304
    %1568 = vmatpush2.msra.mxu0 %v1303
    %1569 = vmatprep.subr.mxu0 %v1302
    %1570 = vmatpush2.msra.mxu0 %v1301
    %1571 = vmatprep.subr.mxu0 %v1300
    %1572 = vmatpush2.msra.mxu0 %v1299
    %1573 = vmatprep.subr.mxu0 %v1298
    %1574 = vmatpush2.msra.mxu0 %v1297
    %1575 = vmatprep.subr.mxu0 %v1296
    %1576 = vmatpush2.msra.mxu0 %v1295
    %1577 = vmatprep.subr.mxu0 %v1294
    %1578 = vmatpush2.msra.mxu0 %v1293
    %1579 = vmatprep.subr.mxu0 %v1292
    %1580 = vmatpush2.msra.mxu0 %v1291
    %1581 = vmatprep.subr.mxu0 %v1290
    %1582 = vmatpush2.msra.mxu0 %v1289
    %1583 = vmatprep.subr.mxu0 %v1288
    %1584 = vmatpush2.msra.mxu0 %v1287
    %1585 = vmatprep.subr.mxu0 %v1286
    %1586 = vmatpush2.msra.mxu0 %v1285
    %1587 = vmatprep.subr.mxu0 %v1284
    %1588 = vmatpush2.msra.mxu0 %v1283
    %1589 = vmatprep.subr.mxu0 %v1282
    %1590 = vmatpush2.msra.mxu0 %v1281
    %1591 = vmatprep.subr.mxu0 %v1280
    %1592 = vmatpush2.msra.mxu0 %v1279
    %1593 = vmatprep.mubr.f32.mxu0 %v1116
    %1594 = vmatmul.mubr.f32.gmra.mxu0 %v1115
    %v1595 = vpop.f32.mrf.mxu0
    %v1596 = vadd.f32 %v1525, %v1595
    %v1597 = vpop.f32.mrf.mxu0
    %v1598 = vadd.f32 %v1527, %v1597
    %1599 = vdwg.mxu0
    %1600 = vmatprep.subr.mxu0 %v1342
    %1601 = vmatpush1.msra.mxu0 %v1341
    %1602 = vmatprep.subr.mxu0 %v1340
    %1603 = vmatpush1.msra.mxu0 %v1339
    %1604 = vmatprep.subr.mxu0 %v1338
    %1605 = vmatpush1.msra.mxu0 %v1337
    %1606 = vmatprep.subr.mxu0 %v1336
    %1607 = vmatpush1.msra.mxu0 %v1335
    %1608 = vmatprep.subr.mxu0 %v1334
    %1609 = vmatpush1.msra.mxu0 %v1333
    %1610 = vmatprep.subr.mxu0 %v1332
    %1611 = vmatpush1.msra.mxu0 %v1331
    %1612 = vmatprep.subr.mxu0 %v1330
    %1613 = vmatpush1.msra.mxu0 %v1329
    %1614 = vmatprep.subr.mxu0 %v1328
    %1615 = vmatpush1.msra.mxu0 %v1327
    %1616 = vmatprep.subr.mxu0 %v1326
    %1617 = vmatpush1.msra.mxu0 %v1325
    %1618 = vmatprep.subr.mxu0 %v1324
    %1619 = vmatpush1.msra.mxu0 %v1323
    %1620 = vmatprep.subr.mxu0 %v1322
    %1621 = vmatpush1.msra.mxu0 %v1321
    %1622 = vmatprep.subr.mxu0 %v1320
    %1623 = vmatpush1.msra.mxu0 %v1319
    %1624 = vmatprep.subr.mxu0 %v1318
    %1625 = vmatpush1.msra.mxu0 %v1317
    %1626 = vmatprep.subr.mxu0 %v1316
    %1627 = vmatpush1.msra.mxu0 %v1315
    %1628 = vmatprep.subr.mxu0 %v1314
    %1629 = vmatpush1.msra.mxu0 %v1313
    %1630 = vmatprep.subr.mxu0 %v1312
    %1631 = vmatpush1.msra.mxu0 %v1311
    %1632 = vmatprep.subr.mxu0 %v1374
    %1633 = vmatpush2.msra.mxu0 %v1373
    %1634 = vmatprep.subr.mxu0 %v1372
    %1635 = vmatpush2.msra.mxu0 %v1371
    %1636 = vmatprep.subr.mxu0 %v1370
    %1637 = vmatpush2.msra.mxu0 %v1369
    %1638 = vmatprep.subr.mxu0 %v1368
    %1639 = vmatpush2.msra.mxu0 %v1367
    %1640 = vmatprep.subr.mxu0 %v1366
    %1641 = vmatpush2.msra.mxu0 %v1365
    %1642 = vmatprep.subr.mxu0 %v1364
    %1643 = vmatpush2.msra.mxu0 %v1363
    %1644 = vmatprep.subr.mxu0 %v1362
    %1645 = vmatpush2.msra.mxu0 %v1361
    %1646 = vmatprep.subr.mxu0 %v1360
    %1647 = vmatpush2.msra.mxu0 %v1359
    %1648 = vmatprep.subr.mxu0 %v1358
    %1649 = vmatpush2.msra.mxu0 %v1357
    %1650 = vmatprep.subr.mxu0 %v1356
    %1651 = vmatpush2.msra.mxu0 %v1355
    %1652 = vmatprep.subr.mxu0 %v1354
    %1653 = vmatpush2.msra.mxu0 %v1353
    %1654 = vmatprep.subr.mxu0 %v1352
    %1655 = vmatpush2.msra.mxu0 %v1351
    %1656 = vmatprep.subr.mxu0 %v1350
    %1657 = vmatpush2.msra.mxu0 %v1349
    %1658 = vmatprep.subr.mxu0 %v1348
    %1659 = vmatpush2.msra.mxu0 %v1347
    %1660 = vmatprep.subr.mxu0 %v1346
    %1661 = vmatpush2.msra.mxu0 %v1345
    %1662 = vmatprep.subr.mxu0 %v1344
    %1663 = vmatpush2.msra.mxu0 %v1343
    %1664 = vmatprep.mubr.f32.mxu0 %v1118
    %1665 = vmatmul.mubr.f32.gmra.mxu0 %v1117
    %v1666 = vpop.f32.mrf.mxu0
    %v1667 = vadd.f32 %v1596, %v1666
    %v1668 = vpop.f32.mrf.mxu0
    %v1669 = vadd.f32 %v1598, %v1668
    %1670 = vdwg.mxu0
    %v1671 = vmax.f32 %v1667, 0.0
    %v1672 = vmax.f32 %v1669, 0.0
    %v1673 = vld [vmem:[#allocation11] sm:$0xff]
    %v1674 = vld [vmem:[#allocation11 + $0x8] sm:$0xff]
    %v1675 = vld [vmem:[#allocation11 + $0x10] sm:$0xff]
    %v1676 = vld [vmem:[#allocation11 + $0x18] sm:$0xff]
    %v1677 = vld [vmem:[#allocation11 + $0x20] sm:$0xff]
    %v1678 = vld [vmem:[#allocation11 + $0x28] sm:$0xff]
    %v1679 = vld [vmem:[#allocation11 + $0x30] sm:$0xff]
    %v1680 = vld [vmem:[#allocation11 + $0x38] sm:$0xff]
    %v1681 = vld [vmem:[#allocation11 + $0x40] sm:$0xff]
    %v1682 = vld [vmem:[#allocation11 + $0x48] sm:$0xff]
    %v1683 = vld [vmem:[#allocation11 + $0x50] sm:$0xff]
    %v1684 = vld [vmem:[#allocation11 + $0x58] sm:$0xff]
    %v1685 = vld [vmem:[#allocation11 + $0x60] sm:$0xff]
    %v1686 = vld [vmem:[#allocation11 + $0x68] sm:$0xff]
    %v1687 = vld [vmem:[#allocation11 + $0x70] sm:$0xff]
    %v1688 = vld [vmem:[#allocation11 + $0x78] sm:$0xff]
    %v1689 = vld [vmem:[#allocation11 + $0x80] sm:$0xff]
    %v1690 = vld [vmem:[#allocation11 + $0x88] sm:$0xff]
    %v1691 = vld [vmem:[#allocation11 + $0x90] sm:$0xff]
    %v1692 = vld [vmem:[#allocation11 + $0x98] sm:$0xff]
    %v1693 = vld [vmem:[#allocation11 + $0xa0] sm:$0xff]
    %v1694 = vld [vmem:[#allocation11 + $0xa8] sm:$0xff]
    %v1695 = vld [vmem:[#allocation11 + $0xb0] sm:$0xff]
    %v1696 = vld [vmem:[#allocation11 + $0xb8] sm:$0xff]
    %v1697 = vld [vmem:[#allocation11 + $0xc0] sm:$0xff]
    %v1698 = vld [vmem:[#allocation11 + $0xc8] sm:$0xff]
    %v1699 = vld [vmem:[#allocation11 + $0xd0] sm:$0xff]
    %v1700 = vld [vmem:[#allocation11 + $0xd8] sm:$0xff]
    %v1701 = vld [vmem:[#allocation11 + $0xe0] sm:$0xff]
    %v1702 = vld [vmem:[#allocation11 + $0xe8] sm:$0xff]
    %v1703 = vld [vmem:[#allocation11 + $0xf0] sm:$0xff]
    %v1704 = vld [vmem:[#allocation11 + $0xf8] sm:$0xff]
    %v1705 = vld [vmem:[#allocation13] sm:$0x1]
    %v1707 = vlaneseq
    %v1708 = vshrl.u32 %v1707, 7
    %v1709 = vsub.s32 0, %v1708
    %v1710 = vrot.slane %v1705, %v1709
    %1712 = vmatprep.subr.mxu0 0.0
    %1713 = vmatpush1.msra.mxu0 %v1688
    %1714 = vmatprep.subr.mxu0 0.0
    %1715 = vmatpush1.msra.mxu0 %v1687
    %1716 = vmatprep.subr.mxu0 0.0
    %1717 = vmatpush1.msra.mxu0 %v1686
    %1718 = vmatprep.subr.mxu0 0.0
    %1719 = vmatpush1.msra.mxu0 %v1685
    %1720 = vmatprep.subr.mxu0 0.0
    %1721 = vmatpush1.msra.mxu0 %v1684
    %1722 = vmatprep.subr.mxu0 0.0
    %1723 = vmatpush1.msra.mxu0 %v1683
    %1724 = vmatprep.subr.mxu0 0.0
    %1725 = vmatpush1.msra.mxu0 %v1682
    %1726 = vmatprep.subr.mxu0 0.0
    %1727 = vmatpush1.msra.mxu0 %v1681
    %1728 = vmatprep.subr.mxu0 0.0
    %1729 = vmatpush1.msra.mxu0 %v1680
    %1730 = vmatprep.subr.mxu0 0.0
    %1731 = vmatpush1.msra.mxu0 %v1679
    %1732 = vmatprep.subr.mxu0 0.0
    %1733 = vmatpush1.msra.mxu0 %v1678
    %1734 = vmatprep.subr.mxu0 0.0
    %1735 = vmatpush1.msra.mxu0 %v1677
    %1736 = vmatprep.subr.mxu0 0.0
    %1737 = vmatpush1.msra.mxu0 %v1676
    %1738 = vmatprep.subr.mxu0 0.0
    %1739 = vmatpush1.msra.mxu0 %v1675
    %1740 = vmatprep.subr.mxu0 0.0
    %1741 = vmatpush1.msra.mxu0 %v1674
    %1742 = vmatprep.subr.mxu0 0.0
    %1743 = vmatpush1.msra.mxu0 %v1673
    %1744 = vmatprep.subr.mxu0 0.0
    %1745 = vmatpush2.msra.mxu0 %v1704
    %1746 = vmatprep.subr.mxu0 0.0
    %1747 = vmatpush2.msra.mxu0 %v1703
    %1748 = vmatprep.subr.mxu0 0.0
    %1749 = vmatpush2.msra.mxu0 %v1702
    %1750 = vmatprep.subr.mxu0 0.0
    %1751 = vmatpush2.msra.mxu0 %v1701
    %1752 = vmatprep.subr.mxu0 0.0
    %1753 = vmatpush2.msra.mxu0 %v1700
    %1754 = vmatprep.subr.mxu0 0.0
    %1755 = vmatpush2.msra.mxu0 %v1699
    %1756 = vmatprep.subr.mxu0 0.0
    %1757 = vmatpush2.msra.mxu0 %v1698
    %1758 = vmatprep.subr.mxu0 0.0
    %1759 = vmatpush2.msra.mxu0 %v1697
    %1760 = vmatprep.subr.mxu0 0.0
    %1761 = vmatpush2.msra.mxu0 %v1696
    %1762 = vmatprep.subr.mxu0 0.0
    %1763 = vmatpush2.msra.mxu0 %v1695
    %1764 = vmatprep.subr.mxu0 0.0
    %1765 = vmatpush2.msra.mxu0 %v1694
    %1766 = vmatprep.subr.mxu0 0.0
    %1767 = vmatpush2.msra.mxu0 %v1693
    %1768 = vmatprep.subr.mxu0 0.0
    %1769 = vmatpush2.msra.mxu0 %v1692
    %1770 = vmatprep.subr.mxu0 0.0
    %1771 = vmatpush2.msra.mxu0 %v1691
    %1772 = vmatprep.subr.mxu0 0.0
    %1773 = vmatpush2.msra.mxu0 %v1690
    %1774 = vmatprep.subr.mxu0 0.0
    %1775 = vmatpush2.msra.mxu0 %v1689
    %1776 = vmatprep.mubr.f32.mxu0 %v1672
    %1777 = vmatmul.mubr.f32.gmra.mxu0 %v1671
    %v1778 = vpop.f32.mrf.mxu0
    %v1779 = vadd.f32 %v1710, %v1778
    %v1780 = vpop.f32.mrf.mxu0
    %1781 = vdwg.mxu0
    %1782 = vmax.xlane.f32.xlu0 %v1779
    %v1783 = vpop.xlane.xlu0 %1782
    %v1784 = vsub.f32 %v1779, %v1783
    %v1785 = vmul.f32 %v1784, 1.442695
    %v1786 = vpow.pop %v1785
    %1787 = vadd.xlane.f32.xlu0 %v1786
    %v1788 = vpop.xlane.xlu0 %1787
    %v1789 = vrcp.pop %v1788
    %v1790 = vmul.f32 %v1786, %v1789
    %1791 = vst [vmem:[#allocation14] sm:$0xff] %v1790
    // Predicated region
    $region58: #{tpu_custom_call.1} parent=1 // pred_check
      _
    $region59: #{tpu_custom_call.1} parent=1 // pred_check_branch
      %1793 = sbr.rel (0) target = $region61
    $region60: #{tpu_custom_call.1} parent=1 // pred_region
      %s1795 = ssub.s32 128, 128
      %1796 = vsyncadd [#allocation4], %s1795
      %s1798 = sshll.u32 [#allocation14], 4
      %s1799 = int_to_ptr.vmem [resolvable:$true] %s1798
      %1801 = dma.vmem_to_hbm [thread:$0]  %s1799, 128, %s7, [#allocation4]
    $region61: #{tpu_custom_call.1} parent=1 // pred_fallthru
      _
    // Predicated region
    $region62: #{tpu_custom_call.1} parent=1 // pred_check
      _
    $region63: #{tpu_custom_call.1} parent=1 // pred_check_branch
      %1803 = sbr.rel (0) target = $region65
    $region64: #{tpu_custom_call.1} parent=1 // pred_region
      %1804 = dma.done [#allocation4], 128
    $region65: #{tpu_custom_call.1} parent=1 // pred_fallthru
      _
    %1805 = vsyncpa [#allocation3], 1
    %1806 = vsyncpa [#allocation6], 1
    %1807 = vsyncpa [#allocation9], 1
    %1808 = vsyncpa [#allocation12], 1
    %1809 = vsyncpa [#allocation4], 1

</llo_original>
